<compile_context>
chip_gen: v5e
topology: v5e:2x2
jax: 0.10.0
libtpu: 0.0.40
codegen_flags: <defaults>
</compile_context>

<pallas_src>
import functools

import numpy as np
import jax
import jax.numpy as jnp
from jax import lax
from jax.experimental import pallas as pl
from jax.experimental.pallas import tpu as pltpu


KPAD = 128  # lane width of the score / attention tiles (>= rmax); full-lane stores


# ---------------------------- Pallas kernel ----------------------------

def _circ_shift(x, shift):
    """Circular shift along sublane axis 0: result[r] = x[(r - shift) % n].
    Shifts here are multiples of BC (=8), i.e. sublane-tile aligned slices."""
    n = x.shape[0]
    shift = shift % n
    if shift == 0:
        return x
    return jnp.concatenate([x[n - shift:, :], x[:n - shift, :]], axis=0)


def _fused_temporal_kernel(rvals_ref, x_ref, wc_ref, pos_ref,
                           wq_ref, bq_ref, wk_ref, bk_ref, o_ref,
                           *, bc, rmax, n_heads, n_layers):
    """Fused DataEmbedding (circular conv1d k=3 + positional embedding) +
    TemporalLayer/PatchAttention (Q/K projections + per-head softmax maps).

    Row layout is t-major: row r = t*bc + b.  The circular shift over the
    patch axis t is therefore a plain sublane roll by bc, and "same (b*c)
    element" score pairs satisfy r % bc == c % bc (block mask on the scores).
    Rows are periodically tiled to rmax, padded key columns are masked with
    col < r (r = valid row count for this config, from scalar prefetch).
    """
    i = pl.program_id(0)
    r = rvals_ref[i]                                   # valid rows for this config

    # ---- DataEmbedding: in-kernel circular im2col + conv as 3 tap matmuls ----
    x = x_ref[0]                                       # (rmax, cin_max)
    x_prev = _circ_shift(x, bc)                        # x[(t-1) mod P]
    x_next = _circ_shift(x, -bc)                       # x[(t+1) mod P]
    y = (jnp.dot(x_prev, wc_ref[0, 0], preferred_element_type=jnp.float32)
         + jnp.dot(x,      wc_ref[0, 1], preferred_element_type=jnp.float32)
         + jnp.dot(x_next, wc_ref[0, 2], preferred_element_type=jnp.float32)
         + pos_ref[0])                                 # (rmax, D)

    D = y.shape[1]
    dh = D // n_heads
    scale = 1.0 / float(np.sqrt(dh))

    # Score mask, hoisted out of the layer/head loops:
    # same (b*c) element AND a real (non-padded, non-duplicate) key column.
    row_ids = lax.broadcasted_iota(jnp.int32, (rmax, KPAD), 0)
    col_ids = lax.broadcasted_iota(jnp.int32, (rmax, KPAD), 1)
    mask = (col_ids % bc == row_ids % bc) & (col_ids < r)
    neg = jnp.float32(-1e30)
    kzero = jnp.zeros((KPAD - rmax, D), jnp.float32)

    for l in range(n_layers):                          # static unroll (e_layers)
        q = jnp.dot(y, wq_ref[l], preferred_element_type=jnp.float32) + bq_ref[l]
        k = jnp.dot(y, wk_ref[l], preferred_element_type=jnp.float32) + bk_ref[l]
        k_pad = jnp.concatenate([k, kzero], axis=0)    # (KPAD, D), sublane-aligned
        for h in range(n_heads):                       # static unroll (n_heads)
            qh = q[:, h * dh:(h + 1) * dh]             # (rmax, dh)
            kh = k_pad[:, h * dh:(h + 1) * dh]         # (KPAD, dh)
            s = lax.dot_general(qh, kh, (((1,), (1,)), ((), ())),
                                preferred_element_type=jnp.float32) * scale
            s = jnp.where(mask, s, neg)
            s = s - jnp.max(s, axis=-1, keepdims=True)
            e = jnp.exp(s)
            attn = e * pl.reciprocal(jnp.sum(e, axis=-1, keepdims=True),
                                     approx=True)
            o_ref[0, l, h] = attn                      # full (rmax, 128) lane-dense store


# ---------------------------- kernel wrapper ----------------------------

def temporal_branch(x_reshape, params, cfg):
    """x_reshape: (B, C, L).  Returns (high_attention_list, low_attention_list),
    each a flat list of per-layer attention maps of shape (B*C, H, P, P)."""
    B, C, L = x_reshape.shape
    BC = B * C
    D = cfg.d_model
    H = cfg.n_heads
    NL = cfg.e_layers
    patch_sizes = list(cfg.patch_size_high) + list(cfg.patch_size_low)
    n_cfg = len(patch_sizes)
    p_max = max(patch_sizes)
    rmax = p_max * BC
    cin_max = max(L // p for p in patch_sizes)
    assert rmax <= KPAD and rmax % 8 == 0
    for p in patch_sizes:
        # p_max % p == 0 keeps the periodically tiled rows circular-consistent.
        assert L % p == 0 and p_max % p == 0

    conv_ws = list(params["emb_high"]) + list(params["emb_low"])
    xs, wcs, poss, rvals = [], [], [], []
    for idx, p in enumerate(patch_sizes):
        n = L // p
        R = p * BC
        # rearrange 'b c (p n) -> (b c) p n', then t-major rows (r = t*BC + b).
        xp = x_reshape.reshape(BC, p, n)
        xt = jnp.transpose(xp, (1, 0, 2)).reshape(R, n)
        xt = jnp.tile(xt, (rmax // R, 1))                         # periodic fill to rmax
        xs.append(jnp.pad(xt, ((0, 0), (0, cin_max - n))))
        wcs.append(jnp.pad(conv_ws[idx], ((0, 0), (0, cin_max - n), (0, 0))))
        pos = jnp.repeat(params["pe"][:p], BC, axis=0)            # pe[t] per row
        poss.append(jnp.tile(pos, (rmax // R, 1)))
        rvals.append(R)

    x_all = jnp.stack(xs)                        # (n_cfg, rmax, cin_max)
    wc_all = jnp.stack(wcs)                      # (n_cfg, 3, cin_max, D)
    pos_all = jnp.stack(poss)                    # (n_cfg, rmax, D)
    rvals = jnp.asarray(rvals, jnp.int32)        # (n_cfg,) scalar prefetch

    kernel = functools.partial(_fused_temporal_kernel, bc=BC, rmax=rmax,
                               n_heads=H, n_layers=NL)
    out = pl.pallas_call(
        kernel,
        out_shape=jax.ShapeDtypeStruct((n_cfg, NL, H, rmax, KPAD), jnp.float32),
        grid_spec=pltpu.PrefetchScalarGridSpec(
            num_scalar_prefetch=1,
            grid=(n_cfg,),
            in_specs=[
                pl.BlockSpec((1, rmax, cin_max), lambda i, rv: (i, 0, 0)),
                pl.BlockSpec((1, 3, cin_max, D), lambda i, rv: (i, 0, 0, 0)),
                pl.BlockSpec((1, rmax, D), lambda i, rv: (i, 0, 0)),
                pl.BlockSpec((NL, D, D), lambda i, rv: (0, 0, 0)),
                pl.BlockSpec((NL, 1, D), lambda i, rv: (0, 0, 0)),
                pl.BlockSpec((NL, D, D), lambda i, rv: (0, 0, 0)),
                pl.BlockSpec((NL, 1, D), lambda i, rv: (0, 0, 0)),
            ],
            out_specs=pl.BlockSpec((1, NL, H, rmax, KPAD),
                                   lambda i, rv: (i, 0, 0, 0, 0)),
        ),
        compiler_params=pltpu.CompilerParams(
            dimension_semantics=("parallel",)),
    )(rvals, x_all, wc_all, pos_all,
      params["wq"], params["bq"], params["wk"], params["bk"])

    # Cheap XLA glue: pull the per-(b*c) PxP blocks out of the lane-dense tiles.
    eye = jnp.eye(BC, dtype=out.dtype)
    high_list, low_list = [], []
    for idx, p in enumerate(patch_sizes):
        R = p * BC
        A = out[idx, :, :, :R, :R].reshape(NL, H, p, BC, p, BC)
        attn = jnp.einsum('lhpaqb,ab->lahpq', A, eye)   # (NL, BC, H, p, p)
        dest = high_list if idx < len(cfg.patch_size_high) else low_list
        for l in range(NL):
            dest.append(attn[l])
    return high_list, low_list


# ---------------------------- model glue ----------------------------

class Config:
    win_size = 16
    channel = 4
    d_model = 32
    n_heads = 2
    e_layers = 1
    dropout = 0.0
    revin = 1
    aug_rate = 0.0
    patch_size_high = (2, 4)
    patch_size_low = (8,)


def sinusoidal_pe(max_len, d_model):
    pos = np.arange(max_len, dtype=np.float32)[:, None]
    div = np.exp(np.arange(0, d_model, 2, dtype=np.float32)
                 * -(np.log(10000.0) / d_model))
    pe = np.zeros((max_len, d_model), np.float32)
    pe[:, 0::2] = np.sin(pos * div)
    pe[:, 1::2] = np.cos(pos * div)
    return jnp.asarray(pe)


def init_params(key, cfg):
    D = cfg.d_model
    NL = cfg.e_layers
    k_eh, k_el, k_q, k_k = jax.random.split(key, 4)
    params = {"pe": sinusoidal_pe(cfg.win_size, D)}

    def conv_weights(base_key, patch_sizes):
        ws = []
        for i, p in enumerate(patch_sizes):
            cin = cfg.win_size // p
            # (3, cin, D): taps ordered [x[t-1], x[t], x[t+1]]
            ws.append(0.02 * jax.random.normal(
                jax.random.fold_in(base_key, i), (3, cin, D), jnp.float32))
        return ws

    params["emb_high"] = conv_weights(k_eh, cfg.patch_size_high)
    params["emb_low"] = conv_weights(k_el, cfg.patch_size_low)

    # Temporal layers stacked along a leading e_layers axis (fused kernel loops).
    params["wq"] = 0.02 * jax.random.normal(k_q, (NL, D, D), jnp.float32)
    params["bq"] = jnp.zeros((NL, 1, D), jnp.float32)
    params["wk"] = 0.02 * jax.random.normal(k_k, (NL, D, D), jnp.float32)
    params["bk"] = jnp.zeros((NL, 1, D), jnp.float32)

    params["revin_w"] = jnp.ones((cfg.channel,), jnp.float32)
    params["revin_b"] = jnp.zeros((cfg.channel,), jnp.float32)
    return params


def transmamba_forward(x, params, cfg):
    B, L, C = x.shape
    eps = 1e-5

    # RevIN 'norm' (plain-JAX glue: per-instance mean/std over the time axis).
    if cfg.revin == 1:
        mean = jnp.mean(x, axis=1, keepdims=True)
        stdev = jnp.sqrt(jnp.var(x, axis=1, keepdims=True) + eps)
        xn = (x - mean) / stdev
        xn = xn * params["revin_w"] + params["revin_b"]
    else:
        mean = stdev = None
        xn = x

    x_reshape = jnp.transpose(xn, (0, 2, 1))        # (B, C, L)

    # Fused Pallas kernel: all patch configs x all temporal layers in one call.
    high_attention_mean, low_attention_mean = temporal_branch(x_reshape, params, cfg)

    # TODO(synk): FrequencyMamba (Mamba selective-scan frequency branch) source
    # is not provided; emit identity reconstruction with zero auxiliary losses.
    output = xn
    loss_cl = jnp.float32(0.0)
    recon_loss_f = jnp.float32(0.0)

    # RevIN 'denorm'
    if cfg.revin == 1:
        out = (output - params["revin_b"]) / (params["revin_w"] + eps * eps)
        out = out * stdev + mean
    else:
        out = output

    return high_attention_mean, low_attention_mean, out, loss_cl, recon_loss_f


if __name__ == "__main__":
    cfg = Config()
    x = jax.random.normal(jax.random.PRNGKey(0),
                          (2, cfg.win_size, cfg.channel), jnp.float32)
    params = init_params(jax.random.PRNGKey(1), cfg)

    fwd = jax.jit(functools.partial(transmamba_forward, cfg=cfg))
    high, low, out, loss_cl, recon_loss_f = fwd(x, params)

    jax.block_until_ready(out)
    for a in high + low:
        jax.block_until_ready(a)
    jax.block_until_ready(loss_cl)
    jax.block_until_ready(recon_loss_f)
    print("KERNEL_OK")
</pallas_src>

<mosaic_0001>
module attributes {stable_mosaic.version = 11 : i64} {
  func.func @_fused_temporal_kernel(%arg0: i32, %arg1: memref<3xi32, #tpu.memory_space<smem>>, %arg2: memref<1x64x8xf32, #tpu.memory_space<vmem>>, %arg3: memref<1x3x8x32xf32, #tpu.memory_space<vmem>>, %arg4: memref<1x64x32xf32, #tpu.memory_space<vmem>>, %arg5: memref<1x32x32xf32, #tpu.memory_space<vmem>>, %arg6: memref<1x1x32xf32, #tpu.memory_space<vmem>>, %arg7: memref<1x32x32xf32, #tpu.memory_space<vmem>>, %arg8: memref<1x1x32xf32, #tpu.memory_space<vmem>>, %arg9: memref<1x1x2x64x128xf32, #tpu.memory_space<vmem>>) attributes {dimension_semantics = [#tpu.dimension_semantics<parallel>], iteration_bounds = array<i64: 3>, scalar_prefetch = 1 : i64, scratch_operands = 0 : i64, tpu.core_type = #tpu.core_type<tc>, window_params = [{transform_indices = @transform_0, window_bounds = array<i64: 1, 64, 8>}, {transform_indices = @transform_1, window_bounds = array<i64: 1, 3, 8, 32>}, {transform_indices = @transform_2, window_bounds = array<i64: 1, 64, 32>}, {pipeline_mode = #tpu.pipeline_mode<synchronous>, transform_indices = @transform_3, window_bounds = array<i64: 1, 32, 32>}, {pipeline_mode = #tpu.pipeline_mode<synchronous>, transform_indices = @transform_4, window_bounds = array<i64: 1, 1, 32>}, {pipeline_mode = #tpu.pipeline_mode<synchronous>, transform_indices = @transform_5, window_bounds = array<i64: 1, 32, 32>}, {pipeline_mode = #tpu.pipeline_mode<synchronous>, transform_indices = @transform_6, window_bounds = array<i64: 1, 1, 32>}, {transform_indices = @transform_7, window_bounds = array<i64: 1, 1, 2, 64, 128>}]} {
    %0 = arith.index_cast %arg0 : i32 to index
    %1 = memref.load %arg1[%0] : memref<3xi32, #tpu.memory_space<smem>>
    %c0 = arith.constant 0 : index
    %c0_0 = arith.constant 0 : index
    %c0_1 = arith.constant 0 : index
    %2 = vector.load %arg2[%c0, %c0_0, %c0_1] : memref<1x64x8xf32, #tpu.memory_space<vmem>>, vector<1x64x8xf32>
    %3 = vector.shape_cast %2 : vector<1x64x8xf32> to vector<64x8xf32>
    %4 = vector.extract_strided_slice %3 {offsets = [56, 0], sizes = [8, 8], strides = [1, 1]} : vector<64x8xf32> to vector<8x8xf32>
    %5 = vector.extract_strided_slice %3 {offsets = [0, 0], sizes = [56, 8], strides = [1, 1]} : vector<64x8xf32> to vector<56x8xf32>
    %6 = tpu.concatenate %4, %5 in 0 : vector<8x8xf32>, vector<56x8xf32> -> vector<64x8xf32>
    %7 = vector.extract_strided_slice %3 {offsets = [8, 0], sizes = [56, 8], strides = [1, 1]} : vector<64x8xf32> to vector<56x8xf32>
    %8 = vector.extract_strided_slice %3 {offsets = [0, 0], sizes = [8, 8], strides = [1, 1]} : vector<64x8xf32> to vector<8x8xf32>
    %9 = tpu.concatenate %7, %8 in 0 : vector<56x8xf32>, vector<8x8xf32> -> vector<64x8xf32>
    %c0_2 = arith.constant 0 : index
    %c0_3 = arith.constant 0 : index
    %c0_4 = arith.constant 0 : index
    %c0_5 = arith.constant 0 : index
    %10 = vector.load %arg3[%c0_2, %c0_3, %c0_4, %c0_5] : memref<1x3x8x32xf32, #tpu.memory_space<vmem>>, vector<1x1x8x32xf32>
    %11 = vector.shape_cast %10 : vector<1x1x8x32xf32> to vector<8x32xf32>
    %cst = arith.constant dense<0.000000e+00> : vector<64x32xf32>
    %12 = tpu.matmul %6, %11, %cst {dimension_numbers = #tpu.dot_dimension_numbers<[1], [0], [0], [1], [0, 0, 1, 1], [], []>} : vector<64x8xf32>, vector<8x32xf32>, vector<64x32xf32> -> vector<64x32xf32>
    %c0_6 = arith.constant 0 : index
    %c1 = arith.constant 1 : index
    %c0_7 = arith.constant 0 : index
    %c0_8 = arith.constant 0 : index
    %13 = vector.load %arg3[%c0_6, %c1, %c0_7, %c0_8] : memref<1x3x8x32xf32, #tpu.memory_space<vmem>>, vector<1x1x8x32xf32>
    %14 = vector.shape_cast %13 : vector<1x1x8x32xf32> to vector<8x32xf32>
    %cst_9 = arith.constant dense<0.000000e+00> : vector<64x32xf32>
    %15 = tpu.matmul %3, %14, %cst_9 {dimension_numbers = #tpu.dot_dimension_numbers<[1], [0], [0], [1], [0, 0, 1, 1], [], []>} : vector<64x8xf32>, vector<8x32xf32>, vector<64x32xf32> -> vector<64x32xf32>
    %16 = arith.addf %12, %15 : vector<64x32xf32>
    %c0_10 = arith.constant 0 : index
    %c2 = arith.constant 2 : index
    %c0_11 = arith.constant 0 : index
    %c0_12 = arith.constant 0 : index
    %17 = vector.load %arg3[%c0_10, %c2, %c0_11, %c0_12] : memref<1x3x8x32xf32, #tpu.memory_space<vmem>>, vector<1x1x8x32xf32>
    %18 = vector.shape_cast %17 : vector<1x1x8x32xf32> to vector<8x32xf32>
    %cst_13 = arith.constant dense<0.000000e+00> : vector<64x32xf32>
    %19 = tpu.matmul %9, %18, %cst_13 {dimension_numbers = #tpu.dot_dimension_numbers<[1], [0], [0], [1], [0, 0, 1, 1], [], []>} : vector<64x8xf32>, vector<8x32xf32>, vector<64x32xf32> -> vector<64x32xf32>
    %20 = arith.addf %16, %19 : vector<64x32xf32>
    %c0_14 = arith.constant 0 : index
    %c0_15 = arith.constant 0 : index
    %c0_16 = arith.constant 0 : index
    %21 = vector.load %arg4[%c0_14, %c0_15, %c0_16] : memref<1x64x32xf32, #tpu.memory_space<vmem>>, vector<1x64x32xf32>
    %22 = vector.shape_cast %21 : vector<1x64x32xf32> to vector<64x32xf32>
    %23 = arith.addf %20, %22 : vector<64x32xf32>
    %24 = tpu.iota {dimensions = array<i32: 0>} : vector<64x128xi32>
    %25 = tpu.iota {dimensions = array<i32: 1>} : vector<64x128xi32>
    %c8_i32 = arith.constant 8 : i32
    %c0_i32 = arith.constant 0 : i32
    %26 = arith.cmpi eq, %c8_i32, %c0_i32 : i32
    %c1_i32 = arith.constant 1 : i32
    %27 = arith.select %26, %c1_i32, %c8_i32 : i32
    %28 = vector.broadcast %27 : i32 to vector<64x128xi32>
    %29 = arith.remsi %25, %28 : vector<64x128xi32>
    %c0_i32_17 = arith.constant 0 : i32
    %30 = vector.broadcast %c0_i32_17 : i32 to vector<64x128xi32>
    %31 = arith.cmpi ne, %29, %30 : vector<64x128xi32>
    %c0_i32_18 = arith.constant 0 : i32
    %32 = vector.broadcast %c0_i32_18 : i32 to vector<64x128xi32>
    %33 = arith.cmpi slt, %29, %32 : vector<64x128xi32>
    %c0_i32_19 = arith.constant 0 : i32
    %34 = arith.cmpi slt, %27, %c0_i32_19 : i32
    %35 = vector.broadcast %34 : i1 to vector<64x128xi1>
    %36 = vector.broadcast %35 : vector<64x128xi1> to vector<64x128xi1>
    %37 = arith.xori %33, %36 : vector<64x128xi1>
    %38 = arith.andi %37, %31 : vector<64x128xi1>
    %39 = vector.broadcast %27 : i32 to vector<64x128xi32>
    %40 = arith.addi %29, %39 : vector<64x128xi32>
    %41 = arith.select %38, %40, %29 : vector<64x128xi1>, vector<64x128xi32>
    %c8_i32_20 = arith.constant 8 : i32
    %c0_i32_21 = arith.constant 0 : i32
    %42 = arith.cmpi eq, %c8_i32_20, %c0_i32_21 : i32
    %c1_i32_22 = arith.constant 1 : i32
    %43 = arith.select %42, %c1_i32_22, %c8_i32_20 : i32
    %44 = vector.broadcast %43 : i32 to vector<64x128xi32>
    %45 = arith.remsi %24, %44 : vector<64x128xi32>
    %c0_i32_23 = arith.constant 0 : i32
    %46 = vector.broadcast %c0_i32_23 : i32 to vector<64x128xi32>
    %47 = arith.cmpi ne, %45, %46 : vector<64x128xi32>
    %c0_i32_24 = arith.constant 0 : i32
    %48 = vector.broadcast %c0_i32_24 : i32 to vector<64x128xi32>
    %49 = arith.cmpi slt, %45, %48 : vector<64x128xi32>
    %c0_i32_25 = arith.constant 0 : i32
    %50 = arith.cmpi slt, %43, %c0_i32_25 : i32
    %51 = vector.broadcast %50 : i1 to vector<64x128xi1>
    %52 = vector.broadcast %51 : vector<64x128xi1> to vector<64x128xi1>
    %53 = arith.xori %49, %52 : vector<64x128xi1>
    %54 = arith.andi %53, %47 : vector<64x128xi1>
    %55 = vector.broadcast %43 : i32 to vector<64x128xi32>
    %56 = arith.addi %45, %55 : vector<64x128xi32>
    %57 = arith.select %54, %56, %45 : vector<64x128xi1>, vector<64x128xi32>
    %58 = arith.cmpi eq, %41, %57 : vector<64x128xi32>
    %59 = vector.broadcast %1 : i32 to vector<64x128xi32>
    %60 = arith.cmpi slt, %25, %59 : vector<64x128xi32>
    %61 = arith.andi %58, %60 : vector<64x128xi1>
    %cst_26 = arith.constant 0.000000e+00 : f32
    %62 = vector.broadcast %cst_26 : f32 to vector<64x32xf32>
    %c0_27 = arith.constant 0 : index
    %c0_28 = arith.constant 0 : index
    %c0_29 = arith.constant 0 : index
    %63 = vector.load %arg5[%c0_27, %c0_28, %c0_29] : memref<1x32x32xf32, #tpu.memory_space<vmem>>, vector<1x32x32xf32>
    %64 = vector.shape_cast %63 : vector<1x32x32xf32> to vector<32x32xf32>
    %cst_30 = arith.constant dense<0.000000e+00> : vector<64x32xf32>
    %65 = tpu.matmul %23, %64, %cst_30 {dimension_numbers = #tpu.dot_dimension_numbers<[1], [0], [0], [1], [0, 0, 1, 1], [], []>} : vector<64x32xf32>, vector<32x32xf32>, vector<64x32xf32> -> vector<64x32xf32>
    %c0_31 = arith.constant 0 : index
    %c0_32 = arith.constant 0 : index
    %c0_33 = arith.constant 0 : index
    %66 = vector.load %arg6[%c0_31, %c0_32, %c0_33] : memref<1x1x32xf32, #tpu.memory_space<vmem>>, vector<1x1x32xf32>
    %67 = vector.shape_cast %66 : vector<1x1x32xf32> to vector<1x32xf32>
    %68 = vector.broadcast %67 : vector<1x32xf32> to vector<64x32xf32>
    %69 = arith.addf %65, %68 : vector<64x32xf32>
    %c0_34 = arith.constant 0 : index
    %c0_35 = arith.constant 0 : index
    %c0_36 = arith.constant 0 : index
    %70 = vector.load %arg7[%c0_34, %c0_35, %c0_36] : memref<1x32x32xf32, #tpu.memory_space<vmem>>, vector<1x32x32xf32>
    %71 = vector.shape_cast %70 : vector<1x32x32xf32> to vector<32x32xf32>
    %cst_37 = arith.constant dense<0.000000e+00> : vector<64x32xf32>
    %72 = tpu.matmul %23, %71, %cst_37 {dimension_numbers = #tpu.dot_dimension_numbers<[1], [0], [0], [1], [0, 0, 1, 1], [], []>} : vector<64x32xf32>, vector<32x32xf32>, vector<64x32xf32> -> vector<64x32xf32>
    %c0_38 = arith.constant 0 : index
    %c0_39 = arith.constant 0 : index
    %c0_40 = arith.constant 0 : index
    %73 = vector.load %arg8[%c0_38, %c0_39, %c0_40] : memref<1x1x32xf32, #tpu.memory_space<vmem>>, vector<1x1x32xf32>
    %74 = vector.shape_cast %73 : vector<1x1x32xf32> to vector<1x32xf32>
    %75 = vector.broadcast %74 : vector<1x32xf32> to vector<64x32xf32>
    %76 = arith.addf %72, %75 : vector<64x32xf32>
    %77 = tpu.concatenate %76, %62 in 0 : vector<64x32xf32>, vector<64x32xf32> -> vector<128x32xf32>
    %78 = vector.extract_strided_slice %69 {offsets = [0, 0], sizes = [64, 16], strides = [1, 1]} : vector<64x32xf32> to vector<64x16xf32>
    %79 = vector.extract_strided_slice %77 {offsets = [0, 0], sizes = [128, 16], strides = [1, 1]} : vector<128x32xf32> to vector<128x16xf32>
    %cst_41 = arith.constant dense<0.000000e+00> : vector<64x128xf32>
    %80 = tpu.matmul %78, %79, %cst_41 {dimension_numbers = #tpu.dot_dimension_numbers<[1], [1], [0], [0], [0, 0, 1, 0], [], []>} : vector<64x16xf32>, vector<128x16xf32>, vector<64x128xf32> -> vector<64x128xf32>
    %cst_42 = arith.constant 2.500000e-01 : f32
    %81 = vector.broadcast %cst_42 : f32 to vector<64x128xf32>
    %82 = arith.mulf %80, %81 : vector<64x128xf32>
    %cst_43 = arith.constant -1.000000e+30 : f32
    %83 = vector.broadcast %cst_43 : f32 to vector<64x128xf32>
    %84 = arith.select %61, %82, %83 : vector<64x128xi1>, vector<64x128xf32>
    %cst_44 = arith.constant dense<0xFF800000> : vector<64xf32>
    %85 = vector.multi_reduction <maximumf>, %84, %cst_44 [1] : vector<64x128xf32> to vector<64xf32>
    %86 = vector.shape_cast %85 : vector<64xf32> to vector<64x1xf32>
    %87 = vector.broadcast %86 : vector<64x1xf32> to vector<64x128xf32>
    %88 = arith.subf %84, %87 : vector<64x128xf32>
    %89 = math.exp %88 : vector<64x128xf32>
    %cst_45 = arith.constant dense<0.000000e+00> : vector<64xf32>
    %90 = vector.multi_reduction <add>, %89, %cst_45 [1] : vector<64x128xf32> to vector<64xf32>
    %91 = vector.shape_cast %90 : vector<64xf32> to vector<64x1xf32>
    %92 = tpu.reciprocal %91 {approx = true} : vector<64x1xf32> -> vector<64x1xf32>
    %93 = vector.broadcast %92 : vector<64x1xf32> to vector<64x128xf32>
    %94 = arith.mulf %89, %93 : vector<64x128xf32>
    %c0_46 = arith.constant 0 : index
    %c0_47 = arith.constant 0 : index
    %c0_48 = arith.constant 0 : index
    %c0_49 = arith.constant 0 : index
    %c0_50 = arith.constant 0 : index
    %95 = vector.load %arg9[%c0_46, %c0_47, %c0_48, %c0_49, %c0_50] : memref<1x1x2x64x128xf32, #tpu.memory_space<vmem>>, vector<1x1x1x64x128xf32>
    %96 = vector.shape_cast %95 : vector<1x1x1x64x128xf32> to vector<64x128xf32>
    %97 = vector.shape_cast %94 : vector<64x128xf32> to vector<1x1x1x64x128xf32>
    tpu.vector_store %arg9[%c0_46, %c0_47, %c0_48, %c0_49, %c0_50], %97 {strides = array<i32>} : memref<1x1x2x64x128xf32, #tpu.memory_space<vmem>>, vector<1x1x1x64x128xf32>,
    %98 = vector.extract_strided_slice %69 {offsets = [0, 16], sizes = [64, 16], strides = [1, 1]} : vector<64x32xf32> to vector<64x16xf32>
    %99 = vector.extract_strided_slice %77 {offsets = [0, 16], sizes = [128, 16], strides = [1, 1]} : vector<128x32xf32> to vector<128x16xf32>
    %cst_51 = arith.constant dense<0.000000e+00> : vector<64x128xf32>
    %100 = tpu.matmul %98, %99, %cst_51 {dimension_numbers = #tpu.dot_dimension_numbers<[1], [1], [0], [0], [0, 0, 1, 0], [], []>} : vector<64x16xf32>, vector<128x16xf32>, vector<64x128xf32> -> vector<64x128xf32>
    %cst_52 = arith.constant 2.500000e-01 : f32
    %101 = vector.broadcast %cst_52 : f32 to vector<64x128xf32>
    %102 = arith.mulf %100, %101 : vector<64x128xf32>
    %cst_53 = arith.constant -1.000000e+30 : f32
    %103 = vector.broadcast %cst_53 : f32 to vector<64x128xf32>
    %104 = arith.select %61, %102, %103 : vector<64x128xi1>, vector<64x128xf32>
    %cst_54 = arith.constant dense<0xFF800000> : vector<64xf32>
    %105 = vector.multi_reduction <maximumf>, %104, %cst_54 [1] : vector<64x128xf32> to vector<64xf32>
    %106 = vector.shape_cast %105 : vector<64xf32> to vector<64x1xf32>
    %107 = vector.broadcast %106 : vector<64x1xf32> to vector<64x128xf32>
    %108 = arith.subf %104, %107 : vector<64x128xf32>
    %109 = math.exp %108 : vector<64x128xf32>
    %cst_55 = arith.constant dense<0.000000e+00> : vector<64xf32>
    %110 = vector.multi_reduction <add>, %109, %cst_55 [1] : vector<64x128xf32> to vector<64xf32>
    %111 = vector.shape_cast %110 : vector<64xf32> to vector<64x1xf32>
    %112 = tpu.reciprocal %111 {approx = true} : vector<64x1xf32> -> vector<64x1xf32>
    %113 = vector.broadcast %112 : vector<64x1xf32> to vector<64x128xf32>
    %114 = arith.mulf %109, %113 : vector<64x128xf32>
    %c0_56 = arith.constant 0 : index
    %c0_57 = arith.constant 0 : index
    %c1_58 = arith.constant 1 : index
    %c0_59 = arith.constant 0 : index
    %c0_60 = arith.constant 0 : index
    %115 = vector.load %arg9[%c0_56, %c0_57, %c1_58, %c0_59, %c0_60] : memref<1x1x2x64x128xf32, #tpu.memory_space<vmem>>, vector<1x1x1x64x128xf32>
    %116 = vector.shape_cast %115 : vector<1x1x1x64x128xf32> to vector<64x128xf32>
    %117 = vector.shape_cast %114 : vector<64x128xf32> to vector<1x1x1x64x128xf32>
    tpu.vector_store %arg9[%c0_56, %c0_57, %c1_58, %c0_59, %c0_60], %117 {strides = array<i32>} : memref<1x1x2x64x128xf32, #tpu.memory_space<vmem>>, vector<1x1x1x64x128xf32>,
    return
  }
  func.func @transform_0(%arg0: i32, %arg1: memref<3xi32, #tpu.memory_space<smem>>) -> (i32, i32, i32) {
    %c0_i32 = arith.constant 0 : i32
    %c0_i32_0 = arith.constant 0 : i32
    %c0_i32_1 = arith.constant 0 : i32
    return %arg0, %c0_i32, %c0_i32_0 : i32, i32, i32
  }
  func.func @transform_1(%arg0: i32, %arg1: memref<3xi32, #tpu.memory_space<smem>>) -> (i32, i32, i32, i32) {
    %c0_i32 = arith.constant 0 : i32
    %c0_i32_0 = arith.constant 0 : i32
    %c0_i32_1 = arith.constant 0 : i32
    %c0_i32_2 = arith.constant 0 : i32
    return %arg0, %c0_i32, %c0_i32_0, %c0_i32_1 : i32, i32, i32, i32
  }
  func.func @transform_2(%arg0: i32, %arg1: memref<3xi32, #tpu.memory_space<smem>>) -> (i32, i32, i32) {
    %c0_i32 = arith.constant 0 : i32
    %c0_i32_0 = arith.constant 0 : i32
    %c0_i32_1 = arith.constant 0 : i32
    return %arg0, %c0_i32, %c0_i32_0 : i32, i32, i32
  }
  func.func @transform_3(%arg0: i32, %arg1: memref<3xi32, #tpu.memory_space<smem>>) -> (i32, i32, i32) {
    %c0_i32 = arith.constant 0 : i32
    %c0_i32_0 = arith.constant 0 : i32
    %c0_i32_1 = arith.constant 0 : i32
    %c0_i32_2 = arith.constant 0 : i32
    return %c0_i32, %c0_i32_0, %c0_i32_1 : i32, i32, i32
  }
  func.func @transform_4(%arg0: i32, %arg1: memref<3xi32, #tpu.memory_space<smem>>) -> (i32, i32, i32) {
    %c0_i32 = arith.constant 0 : i32
    %c0_i32_0 = arith.constant 0 : i32
    %c0_i32_1 = arith.constant 0 : i32
    %c0_i32_2 = arith.constant 0 : i32
    return %c0_i32, %c0_i32_0, %c0_i32_1 : i32, i32, i32
  }
  func.func @transform_5(%arg0: i32, %arg1: memref<3xi32, #tpu.memory_space<smem>>) -> (i32, i32, i32) {
    %c0_i32 = arith.constant 0 : i32
    %c0_i32_0 = arith.constant 0 : i32
    %c0_i32_1 = arith.constant 0 : i32
    %c0_i32_2 = arith.constant 0 : i32
    return %c0_i32, %c0_i32_0, %c0_i32_1 : i32, i32, i32
  }
  func.func @transform_6(%arg0: i32, %arg1: memref<3xi32, #tpu.memory_space<smem>>) -> (i32, i32, i32) {
    %c0_i32 = arith.constant 0 : i32
    %c0_i32_0 = arith.constant 0 : i32
    %c0_i32_1 = arith.constant 0 : i32
    %c0_i32_2 = arith.constant 0 : i32
    return %c0_i32, %c0_i32_0, %c0_i32_1 : i32, i32, i32
  }
  func.func @transform_7(%arg0: i32, %arg1: memref<3xi32, #tpu.memory_space<smem>>) -> (i32, i32, i32, i32, i32) {
    %c0_i32 = arith.constant 0 : i32
    %c0_i32_0 = arith.constant 0 : i32
    %c0_i32_1 = arith.constant 0 : i32
    %c0_i32_2 = arith.constant 0 : i32
    %c0_i32_3 = arith.constant 0 : i32
    return %arg0, %c0_i32, %c0_i32_0, %c0_i32_1, %c0_i32_2 : i32, i32, i32, i32, i32
  }
}

</mosaic_0001>

<llo_original>
// kernel: tile.26
$region0: #{tile.26}
  %s0 = inlined_call_operand.vmem [shape: f32[2,32,4], index: 0, kind: input, shape index: {}]
  %s1 = inlined_call_operand.vmem [shape: f32[64,4], index: 1, kind: output, shape index: {}]
  $region1: #{tile.26} parent=0
    #allocation0 [shape = 'u8[4096]{0}', space=vmem, size = 0x1000, scoped, tag = 'scoped mem for output reshape']
    #allocation1 [shape = 'u8[16384]{0}', space=vmem, size = 0x4000, scoped, tag = 'scoped mem for input reshape']
    %s3 = ssub.s32 4, 1
    %s4 = scalar_lea.vmem %s0, 6
    %v5 = vld [vmem:[%s4] sm:%s3]
    %s6 = scalar_lea.vmem [#allocation1], 24
    %7 = vst [vmem:[%s6] sm:%s3] %v5
    %s8 = scalar_lea.vmem %s0, 4
    %v9 = vld [vmem:[%s8] sm:%s3]
    %s10 = scalar_lea.vmem [#allocation1], 16
    %11 = vst [vmem:[%s10] sm:%s3] %v9
    %s12 = scalar_lea.vmem %s0, 2
    %v13 = vld [vmem:[%s12] sm:%s3]
    %s14 = scalar_lea.vmem [#allocation1], 8
    %15 = vst [vmem:[%s14] sm:%s3] %v13
    %v16 = vld [vmem:[%s0] sm:%s3]
    %17 = vst [vmem:[#allocation1] sm:%s3] %v16
    %v18 = vld [vmem:[#allocation1] ss:$8 sm:$0xf]
    %vm19 = vcmask 261120
    %20 = vst.msk [vmem:[#allocation0] sm:$0xf] %vm19, %v18
    %s21 = scalar_lea.vmem [#allocation1], 1
    %v22 = vld [vmem:[%s21] ss:$8 sm:$0xf]
    %23 = vrot.lane.b32.xlu0 %v22, 32
    %v24 = vpop.permute.xlu0 %23
    %vm25 = vcmask 523520
    %26 = vst.msk [vmem:[#allocation0] sm:$0xf] %vm25, %v24
    %s28 = ssub.s32 16, 1
    %v29 = vld [vmem:[#allocation0] sm:%s28]
    %s31 = ssub.s32 16, 1
    %32 = vst [vmem:[%s1] sm:%s31] %v29

// kernel: squeeze.3
$region0: #{squeeze.3}
  %s0 = inlined_call_operand.vmem [shape: f32[1,1,2,16,16], index: 0, kind: input, shape index: {}]
  %s1 = inlined_call_operand.vmem [shape: f32[1,2,2,8,2,8], index: 1, kind: output, shape index: {}]
  $region1: #{squeeze.3} parent=0
    #allocation0 [shape = 'u8[131072]{0}', space=vmem, size = 0x20000, scoped, tag = 'scoped mem for output reshape']
    %v2 = vld [vmem:[%s0] sm:$0xff]
    %vm3 = vcmask 64512
    %4 = vst.msk [vmem:[#allocation0] ss:$8 sm:$0xf] %vm3, %v2
    %5 = vst.msk [vmem:[#allocation0] ss:$8 sm:$0xf0] %vm3, %v2
    %s6 = scalar_lea.vmem %s0, 8
    %v7 = vld [vmem:[%s6] sm:$0xff]
    %vm8 = vcmask 64512
    %s9 = scalar_lea.vmem [#allocation0], 64
    %10 = vst.msk [vmem:[%s9] ss:$8 sm:$0xf] %vm8, %v7
    %s11 = scalar_lea.vmem [#allocation0], 64
    %12 = vst.msk [vmem:[%s11] ss:$8 sm:$0xf0] %vm8, %v7
    %s13 = scalar_lea.vmem %s0, 16
    %v14 = vld [vmem:[%s13] sm:$0xff]
    %vm15 = vcmask 64512
    %s16 = scalar_lea.vmem [#allocation0], 128
    %17 = vst.msk [vmem:[%s16] ss:$8 sm:$0xf] %vm15, %v14
    %s18 = scalar_lea.vmem [#allocation0], 128
    %19 = vst.msk [vmem:[%s18] ss:$8 sm:$0xf0] %vm15, %v14
    %s20 = scalar_lea.vmem %s0, 24
    %v21 = vld [vmem:[%s20] sm:$0xff]
    %vm22 = vcmask 64512
    %s23 = scalar_lea.vmem [#allocation0], 192
    %24 = vst.msk [vmem:[%s23] ss:$8 sm:$0xf] %vm22, %v21
    %s25 = scalar_lea.vmem [#allocation0], 192
    %26 = vst.msk [vmem:[%s25] ss:$8 sm:$0xf0] %vm22, %v21
    %v27 = vld [vmem:[%s0] sm:$0xff]
    %28 = vrot.lane.b32.xlu0 %v27, 120
    %v29 = vpop.permute.xlu0 %28
    %vm30 = vcmask 64512
    %s31 = scalar_lea.vmem [#allocation0], 1
    %32 = vst.msk [vmem:[%s31] ss:$8 sm:$0xf] %vm30, %v29
    %s33 = scalar_lea.vmem [#allocation0], 1
    %34 = vst.msk [vmem:[%s33] ss:$8 sm:$0xf0] %vm30, %v29
    %s35 = scalar_lea.vmem %s0, 8
    %v36 = vld [vmem:[%s35] sm:$0xff]
    %37 = vrot.lane.b32.xlu0 %v36, 120
    %v38 = vpop.permute.xlu0 %37
    %vm39 = vcmask 64512
    %s40 = scalar_lea.vmem [#allocation0], 65
    %41 = vst.msk [vmem:[%s40] ss:$8 sm:$0xf] %vm39, %v38
    %s42 = scalar_lea.vmem [#allocation0], 65
    %43 = vst.msk [vmem:[%s42] ss:$8 sm:$0xf0] %vm39, %v38
    %s44 = scalar_lea.vmem %s0, 16
    %v45 = vld [vmem:[%s44] sm:$0xff]
    %46 = vrot.lane.b32.xlu0 %v45, 120
    %v47 = vpop.permute.xlu0 %46
    %vm48 = vcmask 64512
    %s49 = scalar_lea.vmem [#allocation0], 129
    %50 = vst.msk [vmem:[%s49] ss:$8 sm:$0xf] %vm48, %v47
    %s51 = scalar_lea.vmem [#allocation0], 129
    %52 = vst.msk [vmem:[%s51] ss:$8 sm:$0xf0] %vm48, %v47
    %s53 = scalar_lea.vmem %s0, 24
    %v54 = vld [vmem:[%s53] sm:$0xff]
    %55 = vrot.lane.b32.xlu0 %v54, 120
    %v56 = vpop.permute.xlu0 %55
    %vm57 = vcmask 64512
    %s58 = scalar_lea.vmem [#allocation0], 193
    %59 = vst.msk [vmem:[%s58] ss:$8 sm:$0xf] %vm57, %v56
    %s60 = scalar_lea.vmem [#allocation0], 193
    %61 = vst.msk [vmem:[%s60] ss:$8 sm:$0xf0] %vm57, %v56
    %s63 = ssub.s32 4, 1
    %v64 = vld [vmem:[#allocation0] sm:%s63]
    %s66 = ssub.s32 4, 1
    %67 = vst [vmem:[%s1] sm:%s66] %v64
    %s68 = scalar_lea.vmem [#allocation0], 8
    %v69 = vld [vmem:[%s68] sm:%s63]
    %s71 = ssub.s32 4, 1
    %s72 = scalar_lea.vmem %s1, 2
    %73 = vst [vmem:[%s72] sm:%s71] %v69
    %s74 = scalar_lea.vmem [#allocation0], 16
    %v75 = vld [vmem:[%s74] sm:%s63]
    %s77 = ssub.s32 4, 1
    %s78 = scalar_lea.vmem %s1, 4
    %79 = vst [vmem:[%s78] sm:%s77] %v75
    %s80 = scalar_lea.vmem [#allocation0], 24
    %v81 = vld [vmem:[%s80] sm:%s63]
    %s83 = ssub.s32 4, 1
    %s84 = scalar_lea.vmem %s1, 6
    %85 = vst [vmem:[%s84] sm:%s83] %v81
    %s86 = scalar_lea.vmem [#allocation0], 32
    %v87 = vld [vmem:[%s86] sm:%s63]
    %s89 = ssub.s32 4, 1
    %s90 = scalar_lea.vmem %s1, 8
    %91 = vst [vmem:[%s90] sm:%s89] %v87
    %s92 = scalar_lea.vmem [#allocation0], 40
    %v93 = vld [vmem:[%s92] sm:%s63]
    %s95 = ssub.s32 4, 1
    %s96 = scalar_lea.vmem %s1, 10
    %97 = vst [vmem:[%s96] sm:%s95] %v93
    %s98 = scalar_lea.vmem [#allocation0], 48
    %v99 = vld [vmem:[%s98] sm:%s63]
    %s101 = ssub.s32 4, 1
    %s102 = scalar_lea.vmem %s1, 12
    %103 = vst [vmem:[%s102] sm:%s101] %v99
    %s104 = scalar_lea.vmem [#allocation0], 56
    %v105 = vld [vmem:[%s104] sm:%s63]
    %s107 = ssub.s32 4, 1
    %s108 = scalar_lea.vmem %s1, 14
    %109 = vst [vmem:[%s108] sm:%s107] %v105
    %s110 = scalar_lea.vmem [#allocation0], 64
    %v111 = vld [vmem:[%s110] sm:%s63]
    %s113 = ssub.s32 4, 1
    %s114 = scalar_lea.vmem %s1, 16
    %115 = vst [vmem:[%s114] sm:%s113] %v111
    %s116 = scalar_lea.vmem [#allocation0], 72
    %v117 = vld [vmem:[%s116] sm:%s63]
    %s119 = ssub.s32 4, 1
    %s120 = scalar_lea.vmem %s1, 18
    %121 = vst [vmem:[%s120] sm:%s119] %v117
    %s122 = scalar_lea.vmem [#allocation0], 80
    %v123 = vld [vmem:[%s122] sm:%s63]
    %s125 = ssub.s32 4, 1
    %s126 = scalar_lea.vmem %s1, 20
    %127 = vst [vmem:[%s126] sm:%s125] %v123
    %s128 = scalar_lea.vmem [#allocation0], 88
    %v129 = vld [vmem:[%s128] sm:%s63]
    %s131 = ssub.s32 4, 1
    %s132 = scalar_lea.vmem %s1, 22
    %133 = vst [vmem:[%s132] sm:%s131] %v129
    %s134 = scalar_lea.vmem [#allocation0], 96
    %v135 = vld [vmem:[%s134] sm:%s63]
    %s137 = ssub.s32 4, 1
    %s138 = scalar_lea.vmem %s1, 24
    %139 = vst [vmem:[%s138] sm:%s137] %v135
    %s140 = scalar_lea.vmem [#allocation0], 104
    %v141 = vld [vmem:[%s140] sm:%s63]
    %s143 = ssub.s32 4, 1
    %s144 = scalar_lea.vmem %s1, 26
    %145 = vst [vmem:[%s144] sm:%s143] %v141
    %s146 = scalar_lea.vmem [#allocation0], 112
    %v147 = vld [vmem:[%s146] sm:%s63]
    %s149 = ssub.s32 4, 1
    %s150 = scalar_lea.vmem %s1, 28
    %151 = vst [vmem:[%s150] sm:%s149] %v147
    %s152 = scalar_lea.vmem [#allocation0], 120
    %v153 = vld [vmem:[%s152] sm:%s63]
    %s155 = ssub.s32 4, 1
    %s156 = scalar_lea.vmem %s1, 30
    %157 = vst [vmem:[%s156] sm:%s155] %v153
    %s158 = scalar_lea.vmem [#allocation0], 128
    %v159 = vld [vmem:[%s158] sm:%s63]
    %s161 = ssub.s32 4, 1
    %s162 = scalar_lea.vmem %s1, 32
    %163 = vst [vmem:[%s162] sm:%s161] %v159
    %s164 = scalar_lea.vmem [#allocation0], 136
    %v165 = vld [vmem:[%s164] sm:%s63]
    %s167 = ssub.s32 4, 1
    %s168 = scalar_lea.vmem %s1, 34
    %169 = vst [vmem:[%s168] sm:%s167] %v165
    %s170 = scalar_lea.vmem [#allocation0], 144
    %v171 = vld [vmem:[%s170] sm:%s63]
    %s173 = ssub.s32 4, 1
    %s174 = scalar_lea.vmem %s1, 36
    %175 = vst [vmem:[%s174] sm:%s173] %v171
    %s176 = scalar_lea.vmem [#allocation0], 152
    %v177 = vld [vmem:[%s176] sm:%s63]
    %s179 = ssub.s32 4, 1
    %s180 = scalar_lea.vmem %s1, 38
    %181 = vst [vmem:[%s180] sm:%s179] %v177
    %s182 = scalar_lea.vmem [#allocation0], 160
    %v183 = vld [vmem:[%s182] sm:%s63]
    %s185 = ssub.s32 4, 1
    %s186 = scalar_lea.vmem %s1, 40
    %187 = vst [vmem:[%s186] sm:%s185] %v183
    %s188 = scalar_lea.vmem [#allocation0], 168
    %v189 = vld [vmem:[%s188] sm:%s63]
    %s191 = ssub.s32 4, 1
    %s192 = scalar_lea.vmem %s1, 42
    %193 = vst [vmem:[%s192] sm:%s191] %v189
    %s194 = scalar_lea.vmem [#allocation0], 176
    %v195 = vld [vmem:[%s194] sm:%s63]
    %s197 = ssub.s32 4, 1
    %s198 = scalar_lea.vmem %s1, 44
    %199 = vst [vmem:[%s198] sm:%s197] %v195
    %s200 = scalar_lea.vmem [#allocation0], 184
    %v201 = vld [vmem:[%s200] sm:%s63]
    %s203 = ssub.s32 4, 1
    %s204 = scalar_lea.vmem %s1, 46
    %205 = vst [vmem:[%s204] sm:%s203] %v201
    %s206 = scalar_lea.vmem [#allocation0], 192
    %v207 = vld [vmem:[%s206] sm:%s63]
    %s209 = ssub.s32 4, 1
    %s210 = scalar_lea.vmem %s1, 48
    %211 = vst [vmem:[%s210] sm:%s209] %v207
    %s212 = scalar_lea.vmem [#allocation0], 200
    %v213 = vld [vmem:[%s212] sm:%s63]
    %s215 = ssub.s32 4, 1
    %s216 = scalar_lea.vmem %s1, 50
    %217 = vst [vmem:[%s216] sm:%s215] %v213
    %s218 = scalar_lea.vmem [#allocation0], 208
    %v219 = vld [vmem:[%s218] sm:%s63]
    %s221 = ssub.s32 4, 1
    %s222 = scalar_lea.vmem %s1, 52
    %223 = vst [vmem:[%s222] sm:%s221] %v219
    %s224 = scalar_lea.vmem [#allocation0], 216
    %v225 = vld [vmem:[%s224] sm:%s63]
    %s227 = ssub.s32 4, 1
    %s228 = scalar_lea.vmem %s1, 54
    %229 = vst [vmem:[%s228] sm:%s227] %v225
    %s230 = scalar_lea.vmem [#allocation0], 224
    %v231 = vld [vmem:[%s230] sm:%s63]
    %s233 = ssub.s32 4, 1
    %s234 = scalar_lea.vmem %s1, 56
    %235 = vst [vmem:[%s234] sm:%s233] %v231
    %s236 = scalar_lea.vmem [#allocation0], 232
    %v237 = vld [vmem:[%s236] sm:%s63]
    %s239 = ssub.s32 4, 1
    %s240 = scalar_lea.vmem %s1, 58
    %241 = vst [vmem:[%s240] sm:%s239] %v237
    %s242 = scalar_lea.vmem [#allocation0], 240
    %v243 = vld [vmem:[%s242] sm:%s63]
    %s245 = ssub.s32 4, 1
    %s246 = scalar_lea.vmem %s1, 60
    %247 = vst [vmem:[%s246] sm:%s245] %v243
    %s248 = scalar_lea.vmem [#allocation0], 248
    %v249 = vld [vmem:[%s248] sm:%s63]
    %s251 = ssub.s32 4, 1
    %s252 = scalar_lea.vmem %s1, 62
    %253 = vst [vmem:[%s252] sm:%s251] %v249

// kernel: squeeze.4
$region0: #{squeeze.4}
  %s0 = inlined_call_operand.vmem [shape: f32[1,1,2,32,32], index: 0, kind: input, shape index: {}]
  %s1 = inlined_call_operand.vmem [shape: f32[1,2,4,8,4,8], index: 1, kind: output, shape index: {}]
  $region1: #{squeeze.4} parent=0
    #allocation0 [shape = 'u8[262144]{0}', space=vmem, size = 0x40000, scoped, tag = 'scoped mem for output reshape']
    %v2 = vld [vmem:[%s0] sm:$0xff]
    %vm3 = vcmask 64512
    %4 = vst.msk [vmem:[#allocation0] ss:$8 sm:$0xf] %vm3, %v2
    %5 = vst.msk [vmem:[#allocation0] ss:$8 sm:$0xf0] %vm3, %v2
    %s6 = scalar_lea.vmem %s0, 8
    %v7 = vld [vmem:[%s6] sm:$0xff]
    %vm8 = vcmask 64512
    %s9 = scalar_lea.vmem [#allocation0], 64
    %10 = vst.msk [vmem:[%s9] ss:$8 sm:$0xf] %vm8, %v7
    %s11 = scalar_lea.vmem [#allocation0], 64
    %12 = vst.msk [vmem:[%s11] ss:$8 sm:$0xf0] %vm8, %v7
    %s13 = scalar_lea.vmem %s0, 16
    %v14 = vld [vmem:[%s13] sm:$0xff]
    %vm15 = vcmask 64512
    %s16 = scalar_lea.vmem [#allocation0], 128
    %17 = vst.msk [vmem:[%s16] ss:$8 sm:$0xf] %vm15, %v14
    %s18 = scalar_lea.vmem [#allocation0], 128
    %19 = vst.msk [vmem:[%s18] ss:$8 sm:$0xf0] %vm15, %v14
    %s20 = scalar_lea.vmem %s0, 24
    %v21 = vld [vmem:[%s20] sm:$0xff]
    %vm22 = vcmask 64512
    %s23 = scalar_lea.vmem [#allocation0], 192
    %24 = vst.msk [vmem:[%s23] ss:$8 sm:$0xf] %vm22, %v21
    %s25 = scalar_lea.vmem [#allocation0], 192
    %26 = vst.msk [vmem:[%s25] ss:$8 sm:$0xf0] %vm22, %v21
    %s27 = scalar_lea.vmem %s0, 32
    %v28 = vld [vmem:[%s27] sm:$0xff]
    %vm29 = vcmask 64512
    %s30 = scalar_lea.vmem [#allocation0], 256
    %31 = vst.msk [vmem:[%s30] ss:$8 sm:$0xf] %vm29, %v28
    %s32 = scalar_lea.vmem [#allocation0], 256
    %33 = vst.msk [vmem:[%s32] ss:$8 sm:$0xf0] %vm29, %v28
    %s34 = scalar_lea.vmem %s0, 40
    %v35 = vld [vmem:[%s34] sm:$0xff]
    %vm36 = vcmask 64512
    %s37 = scalar_lea.vmem [#allocation0], 320
    %38 = vst.msk [vmem:[%s37] ss:$8 sm:$0xf] %vm36, %v35
    %s39 = scalar_lea.vmem [#allocation0], 320
    %40 = vst.msk [vmem:[%s39] ss:$8 sm:$0xf0] %vm36, %v35
    %s41 = scalar_lea.vmem %s0, 48
    %v42 = vld [vmem:[%s41] sm:$0xff]
    %vm43 = vcmask 64512
    %s44 = scalar_lea.vmem [#allocation0], 384
    %45 = vst.msk [vmem:[%s44] ss:$8 sm:$0xf] %vm43, %v42
    %s46 = scalar_lea.vmem [#allocation0], 384
    %47 = vst.msk [vmem:[%s46] ss:$8 sm:$0xf0] %vm43, %v42
    %s48 = scalar_lea.vmem %s0, 56
    %v49 = vld [vmem:[%s48] sm:$0xff]
    %vm50 = vcmask 64512
    %s51 = scalar_lea.vmem [#allocation0], 448
    %52 = vst.msk [vmem:[%s51] ss:$8 sm:$0xf] %vm50, %v49
    %s53 = scalar_lea.vmem [#allocation0], 448
    %54 = vst.msk [vmem:[%s53] ss:$8 sm:$0xf0] %vm50, %v49
    %v55 = vld [vmem:[%s0] sm:$0xff]
    %56 = vrot.lane.b32.xlu0 %v55, 120
    %v57 = vpop.permute.xlu0 %56
    %vm58 = vcmask 64512
    %s59 = scalar_lea.vmem [#allocation0], 1
    %60 = vst.msk [vmem:[%s59] ss:$8 sm:$0xf] %vm58, %v57
    %s61 = scalar_lea.vmem [#allocation0], 1
    %62 = vst.msk [vmem:[%s61] ss:$8 sm:$0xf0] %vm58, %v57
    %s63 = scalar_lea.vmem %s0, 8
    %v64 = vld [vmem:[%s63] sm:$0xff]
    %65 = vrot.lane.b32.xlu0 %v64, 120
    %v66 = vpop.permute.xlu0 %65
    %vm67 = vcmask 64512
    %s68 = scalar_lea.vmem [#allocation0], 65
    %69 = vst.msk [vmem:[%s68] ss:$8 sm:$0xf] %vm67, %v66
    %s70 = scalar_lea.vmem [#allocation0], 65
    %71 = vst.msk [vmem:[%s70] ss:$8 sm:$0xf0] %vm67, %v66
    %s72 = scalar_lea.vmem %s0, 16
    %v73 = vld [vmem:[%s72] sm:$0xff]
    %74 = vrot.lane.b32.xlu0 %v73, 120
    %v75 = vpop.permute.xlu0 %74
    %vm76 = vcmask 64512
    %s77 = scalar_lea.vmem [#allocation0], 129
    %78 = vst.msk [vmem:[%s77] ss:$8 sm:$0xf] %vm76, %v75
    %s79 = scalar_lea.vmem [#allocation0], 129
    %80 = vst.msk [vmem:[%s79] ss:$8 sm:$0xf0] %vm76, %v75
    %s81 = scalar_lea.vmem %s0, 24
    %v82 = vld [vmem:[%s81] sm:$0xff]
    %83 = vrot.lane.b32.xlu0 %v82, 120
    %v84 = vpop.permute.xlu0 %83
    %vm85 = vcmask 64512
    %s86 = scalar_lea.vmem [#allocation0], 193
    %87 = vst.msk [vmem:[%s86] ss:$8 sm:$0xf] %vm85, %v84
    %s88 = scalar_lea.vmem [#allocation0], 193
    %89 = vst.msk [vmem:[%s88] ss:$8 sm:$0xf0] %vm85, %v84
    %s90 = scalar_lea.vmem %s0, 32
    %v91 = vld [vmem:[%s90] sm:$0xff]
    %92 = vrot.lane.b32.xlu0 %v91, 120
    %v93 = vpop.permute.xlu0 %92
    %vm94 = vcmask 64512
    %s95 = scalar_lea.vmem [#allocation0], 257
    %96 = vst.msk [vmem:[%s95] ss:$8 sm:$0xf] %vm94, %v93
    %s97 = scalar_lea.vmem [#allocation0], 257
    %98 = vst.msk [vmem:[%s97] ss:$8 sm:$0xf0] %vm94, %v93
    %s99 = scalar_lea.vmem %s0, 40
    %v100 = vld [vmem:[%s99] sm:$0xff]
    %101 = vrot.lane.b32.xlu0 %v100, 120
    %v102 = vpop.permute.xlu0 %101
    %vm103 = vcmask 64512
    %s104 = scalar_lea.vmem [#allocation0], 321
    %105 = vst.msk [vmem:[%s104] ss:$8 sm:$0xf] %vm103, %v102
    %s106 = scalar_lea.vmem [#allocation0], 321
    %107 = vst.msk [vmem:[%s106] ss:$8 sm:$0xf0] %vm103, %v102
    %s108 = scalar_lea.vmem %s0, 48
    %v109 = vld [vmem:[%s108] sm:$0xff]
    %110 = vrot.lane.b32.xlu0 %v109, 120
    %v111 = vpop.permute.xlu0 %110
    %vm112 = vcmask 64512
    %s113 = scalar_lea.vmem [#allocation0], 385
    %114 = vst.msk [vmem:[%s113] ss:$8 sm:$0xf] %vm112, %v111
    %s115 = scalar_lea.vmem [#allocation0], 385
    %116 = vst.msk [vmem:[%s115] ss:$8 sm:$0xf0] %vm112, %v111
    %s117 = scalar_lea.vmem %s0, 56
    %v118 = vld [vmem:[%s117] sm:$0xff]
    %119 = vrot.lane.b32.xlu0 %v118, 120
    %v120 = vpop.permute.xlu0 %119
    %vm121 = vcmask 64512
    %s122 = scalar_lea.vmem [#allocation0], 449
    %123 = vst.msk [vmem:[%s122] ss:$8 sm:$0xf] %vm121, %v120
    %s124 = scalar_lea.vmem [#allocation0], 449
    %125 = vst.msk [vmem:[%s124] ss:$8 sm:$0xf0] %vm121, %v120
    %v126 = vld [vmem:[%s0] sm:$0xff]
    %127 = vrot.lane.b32.xlu0 %v126, 112
    %v128 = vpop.permute.xlu0 %127
    %vm129 = vcmask 64512
    %s130 = scalar_lea.vmem [#allocation0], 2
    %131 = vst.msk [vmem:[%s130] ss:$8 sm:$0xf] %vm129, %v128
    %s132 = scalar_lea.vmem [#allocation0], 2
    %133 = vst.msk [vmem:[%s132] ss:$8 sm:$0xf0] %vm129, %v128
    %s134 = scalar_lea.vmem %s0, 8
    %v135 = vld [vmem:[%s134] sm:$0xff]
    %136 = vrot.lane.b32.xlu0 %v135, 112
    %v137 = vpop.permute.xlu0 %136
    %vm138 = vcmask 64512
    %s139 = scalar_lea.vmem [#allocation0], 66
    %140 = vst.msk [vmem:[%s139] ss:$8 sm:$0xf] %vm138, %v137
    %s141 = scalar_lea.vmem [#allocation0], 66
    %142 = vst.msk [vmem:[%s141] ss:$8 sm:$0xf0] %vm138, %v137
    %s143 = scalar_lea.vmem %s0, 16
    %v144 = vld [vmem:[%s143] sm:$0xff]
    %145 = vrot.lane.b32.xlu0 %v144, 112
    %v146 = vpop.permute.xlu0 %145
    %vm147 = vcmask 64512
    %s148 = scalar_lea.vmem [#allocation0], 130
    %149 = vst.msk [vmem:[%s148] ss:$8 sm:$0xf] %vm147, %v146
    %s150 = scalar_lea.vmem [#allocation0], 130
    %151 = vst.msk [vmem:[%s150] ss:$8 sm:$0xf0] %vm147, %v146
    %s152 = scalar_lea.vmem %s0, 24
    %v153 = vld [vmem:[%s152] sm:$0xff]
    %154 = vrot.lane.b32.xlu0 %v153, 112
    %v155 = vpop.permute.xlu0 %154
    %vm156 = vcmask 64512
    %s157 = scalar_lea.vmem [#allocation0], 194
    %158 = vst.msk [vmem:[%s157] ss:$8 sm:$0xf] %vm156, %v155
    %s159 = scalar_lea.vmem [#allocation0], 194
    %160 = vst.msk [vmem:[%s159] ss:$8 sm:$0xf0] %vm156, %v155
    %s161 = scalar_lea.vmem %s0, 32
    %v162 = vld [vmem:[%s161] sm:$0xff]
    %163 = vrot.lane.b32.xlu0 %v162, 112
    %v164 = vpop.permute.xlu0 %163
    %vm165 = vcmask 64512
    %s166 = scalar_lea.vmem [#allocation0], 258
    %167 = vst.msk [vmem:[%s166] ss:$8 sm:$0xf] %vm165, %v164
    %s168 = scalar_lea.vmem [#allocation0], 258
    %169 = vst.msk [vmem:[%s168] ss:$8 sm:$0xf0] %vm165, %v164
    %s170 = scalar_lea.vmem %s0, 40
    %v171 = vld [vmem:[%s170] sm:$0xff]
    %172 = vrot.lane.b32.xlu0 %v171, 112
    %v173 = vpop.permute.xlu0 %172
    %vm174 = vcmask 64512
    %s175 = scalar_lea.vmem [#allocation0], 322
    %176 = vst.msk [vmem:[%s175] ss:$8 sm:$0xf] %vm174, %v173
    %s177 = scalar_lea.vmem [#allocation0], 322
    %178 = vst.msk [vmem:[%s177] ss:$8 sm:$0xf0] %vm174, %v173
    %s179 = scalar_lea.vmem %s0, 48
    %v180 = vld [vmem:[%s179] sm:$0xff]
    %181 = vrot.lane.b32.xlu0 %v180, 112
    %v182 = vpop.permute.xlu0 %181
    %vm183 = vcmask 64512
    %s184 = scalar_lea.vmem [#allocation0], 386
    %185 = vst.msk [vmem:[%s184] ss:$8 sm:$0xf] %vm183, %v182
    %s186 = scalar_lea.vmem [#allocation0], 386
    %187 = vst.msk [vmem:[%s186] ss:$8 sm:$0xf0] %vm183, %v182
    %s188 = scalar_lea.vmem %s0, 56
    %v189 = vld [vmem:[%s188] sm:$0xff]
    %190 = vrot.lane.b32.xlu0 %v189, 112
    %v191 = vpop.permute.xlu0 %190
    %vm192 = vcmask 64512
    %s193 = scalar_lea.vmem [#allocation0], 450
    %194 = vst.msk [vmem:[%s193] ss:$8 sm:$0xf] %vm192, %v191
    %s195 = scalar_lea.vmem [#allocation0], 450
    %196 = vst.msk [vmem:[%s195] ss:$8 sm:$0xf0] %vm192, %v191
    %v197 = vld [vmem:[%s0] sm:$0xff]
    %198 = vrot.lane.b32.xlu0 %v197, 104
    %v199 = vpop.permute.xlu0 %198
    %vm200 = vcmask 64512
    %s201 = scalar_lea.vmem [#allocation0], 3
    %202 = vst.msk [vmem:[%s201] ss:$8 sm:$0xf] %vm200, %v199
    %s203 = scalar_lea.vmem [#allocation0], 3
    %204 = vst.msk [vmem:[%s203] ss:$8 sm:$0xf0] %vm200, %v199
    %s205 = scalar_lea.vmem %s0, 8
    %v206 = vld [vmem:[%s205] sm:$0xff]
    %207 = vrot.lane.b32.xlu0 %v206, 104
    %v208 = vpop.permute.xlu0 %207
    %vm209 = vcmask 64512
    %s210 = scalar_lea.vmem [#allocation0], 67
    %211 = vst.msk [vmem:[%s210] ss:$8 sm:$0xf] %vm209, %v208
    %s212 = scalar_lea.vmem [#allocation0], 67
    %213 = vst.msk [vmem:[%s212] ss:$8 sm:$0xf0] %vm209, %v208
    %s214 = scalar_lea.vmem %s0, 16
    %v215 = vld [vmem:[%s214] sm:$0xff]
    %216 = vrot.lane.b32.xlu0 %v215, 104
    %v217 = vpop.permute.xlu0 %216
    %vm218 = vcmask 64512
    %s219 = scalar_lea.vmem [#allocation0], 131
    %220 = vst.msk [vmem:[%s219] ss:$8 sm:$0xf] %vm218, %v217
    %s221 = scalar_lea.vmem [#allocation0], 131
    %222 = vst.msk [vmem:[%s221] ss:$8 sm:$0xf0] %vm218, %v217
    %s223 = scalar_lea.vmem %s0, 24
    %v224 = vld [vmem:[%s223] sm:$0xff]
    %225 = vrot.lane.b32.xlu0 %v224, 104
    %v226 = vpop.permute.xlu0 %225
    %vm227 = vcmask 64512
    %s228 = scalar_lea.vmem [#allocation0], 195
    %229 = vst.msk [vmem:[%s228] ss:$8 sm:$0xf] %vm227, %v226
    %s230 = scalar_lea.vmem [#allocation0], 195
    %231 = vst.msk [vmem:[%s230] ss:$8 sm:$0xf0] %vm227, %v226
    %s232 = scalar_lea.vmem %s0, 32
    %v233 = vld [vmem:[%s232] sm:$0xff]
    %234 = vrot.lane.b32.xlu0 %v233, 104
    %v235 = vpop.permute.xlu0 %234
    %vm236 = vcmask 64512
    %s237 = scalar_lea.vmem [#allocation0], 259
    %238 = vst.msk [vmem:[%s237] ss:$8 sm:$0xf] %vm236, %v235
    %s239 = scalar_lea.vmem [#allocation0], 259
    %240 = vst.msk [vmem:[%s239] ss:$8 sm:$0xf0] %vm236, %v235
    %s241 = scalar_lea.vmem %s0, 40
    %v242 = vld [vmem:[%s241] sm:$0xff]
    %243 = vrot.lane.b32.xlu0 %v242, 104
    %v244 = vpop.permute.xlu0 %243
    %vm245 = vcmask 64512
    %s246 = scalar_lea.vmem [#allocation0], 323
    %247 = vst.msk [vmem:[%s246] ss:$8 sm:$0xf] %vm245, %v244
    %s248 = scalar_lea.vmem [#allocation0], 323
    %249 = vst.msk [vmem:[%s248] ss:$8 sm:$0xf0] %vm245, %v244
    %s250 = scalar_lea.vmem %s0, 48
    %v251 = vld [vmem:[%s250] sm:$0xff]
    %252 = vrot.lane.b32.xlu0 %v251, 104
    %v253 = vpop.permute.xlu0 %252
    %vm254 = vcmask 64512
    %s255 = scalar_lea.vmem [#allocation0], 387
    %256 = vst.msk [vmem:[%s255] ss:$8 sm:$0xf] %vm254, %v253
    %s257 = scalar_lea.vmem [#allocation0], 387
    %258 = vst.msk [vmem:[%s257] ss:$8 sm:$0xf0] %vm254, %v253
    %s259 = scalar_lea.vmem %s0, 56
    %v260 = vld [vmem:[%s259] sm:$0xff]
    %261 = vrot.lane.b32.xlu0 %v260, 104
    %v262 = vpop.permute.xlu0 %261
    %vm263 = vcmask 64512
    %s264 = scalar_lea.vmem [#allocation0], 451
    %265 = vst.msk [vmem:[%s264] ss:$8 sm:$0xf] %vm263, %v262
    %s266 = scalar_lea.vmem [#allocation0], 451
    %267 = vst.msk [vmem:[%s266] ss:$8 sm:$0xf0] %vm263, %v262
    %s269 = ssub.s32 16, 1
    %v270 = vld [vmem:[#allocation0] sm:%s269]
    %s272 = ssub.s32 16, 1
    %273 = vst [vmem:[%s1] sm:%s272] %v270
    %s274 = scalar_lea.vmem [#allocation0], 8
    %v275 = vld [vmem:[%s274] sm:%s269]
    %s277 = ssub.s32 16, 1
    %s278 = scalar_lea.vmem %s1, 4
    %279 = vst [vmem:[%s278] sm:%s277] %v275
    %s280 = scalar_lea.vmem [#allocation0], 16
    %v281 = vld [vmem:[%s280] sm:%s269]
    %s283 = ssub.s32 16, 1
    %s284 = scalar_lea.vmem %s1, 8
    %285 = vst [vmem:[%s284] sm:%s283] %v281
    %s286 = scalar_lea.vmem [#allocation0], 24
    %v287 = vld [vmem:[%s286] sm:%s269]
    %s289 = ssub.s32 16, 1
    %s290 = scalar_lea.vmem %s1, 12
    %291 = vst [vmem:[%s290] sm:%s289] %v287
    %s292 = scalar_lea.vmem [#allocation0], 32
    %v293 = vld [vmem:[%s292] sm:%s269]
    %s295 = ssub.s32 16, 1
    %s296 = scalar_lea.vmem %s1, 16
    %297 = vst [vmem:[%s296] sm:%s295] %v293
    %s298 = scalar_lea.vmem [#allocation0], 40
    %v299 = vld [vmem:[%s298] sm:%s269]
    %s301 = ssub.s32 16, 1
    %s302 = scalar_lea.vmem %s1, 20
    %303 = vst [vmem:[%s302] sm:%s301] %v299
    %s304 = scalar_lea.vmem [#allocation0], 48
    %v305 = vld [vmem:[%s304] sm:%s269]
    %s307 = ssub.s32 16, 1
    %s308 = scalar_lea.vmem %s1, 24
    %309 = vst [vmem:[%s308] sm:%s307] %v305
    %s310 = scalar_lea.vmem [#allocation0], 56
    %v311 = vld [vmem:[%s310] sm:%s269]
    %s313 = ssub.s32 16, 1
    %s314 = scalar_lea.vmem %s1, 28
    %315 = vst [vmem:[%s314] sm:%s313] %v311
    %s316 = scalar_lea.vmem [#allocation0], 64
    %v317 = vld [vmem:[%s316] sm:%s269]
    %s319 = ssub.s32 16, 1
    %s320 = scalar_lea.vmem %s1, 32
    %321 = vst [vmem:[%s320] sm:%s319] %v317
    %s322 = scalar_lea.vmem [#allocation0], 72
    %v323 = vld [vmem:[%s322] sm:%s269]
    %s325 = ssub.s32 16, 1
    %s326 = scalar_lea.vmem %s1, 36
    %327 = vst [vmem:[%s326] sm:%s325] %v323
    %s328 = scalar_lea.vmem [#allocation0], 80
    %v329 = vld [vmem:[%s328] sm:%s269]
    %s331 = ssub.s32 16, 1
    %s332 = scalar_lea.vmem %s1, 40
    %333 = vst [vmem:[%s332] sm:%s331] %v329
    %s334 = scalar_lea.vmem [#allocation0], 88
    %v335 = vld [vmem:[%s334] sm:%s269]
    %s337 = ssub.s32 16, 1
    %s338 = scalar_lea.vmem %s1, 44
    %339 = vst [vmem:[%s338] sm:%s337] %v335
    %s340 = scalar_lea.vmem [#allocation0], 96
    %v341 = vld [vmem:[%s340] sm:%s269]
    %s343 = ssub.s32 16, 1
    %s344 = scalar_lea.vmem %s1, 48
    %345 = vst [vmem:[%s344] sm:%s343] %v341
    %s346 = scalar_lea.vmem [#allocation0], 104
    %v347 = vld [vmem:[%s346] sm:%s269]
    %s349 = ssub.s32 16, 1
    %s350 = scalar_lea.vmem %s1, 52
    %351 = vst [vmem:[%s350] sm:%s349] %v347
    %s352 = scalar_lea.vmem [#allocation0], 112
    %v353 = vld [vmem:[%s352] sm:%s269]
    %s355 = ssub.s32 16, 1
    %s356 = scalar_lea.vmem %s1, 56
    %357 = vst [vmem:[%s356] sm:%s355] %v353
    %s358 = scalar_lea.vmem [#allocation0], 120
    %v359 = vld [vmem:[%s358] sm:%s269]
    %s361 = ssub.s32 16, 1
    %s362 = scalar_lea.vmem %s1, 60
    %363 = vst [vmem:[%s362] sm:%s361] %v359
    %s364 = scalar_lea.vmem [#allocation0], 128
    %v365 = vld [vmem:[%s364] sm:%s269]
    %s367 = ssub.s32 16, 1
    %s368 = scalar_lea.vmem %s1, 64
    %369 = vst [vmem:[%s368] sm:%s367] %v365
    %s370 = scalar_lea.vmem [#allocation0], 136
    %v371 = vld [vmem:[%s370] sm:%s269]
    %s373 = ssub.s32 16, 1
    %s374 = scalar_lea.vmem %s1, 68
    %375 = vst [vmem:[%s374] sm:%s373] %v371
    %s376 = scalar_lea.vmem [#allocation0], 144
    %v377 = vld [vmem:[%s376] sm:%s269]
    %s379 = ssub.s32 16, 1
    %s380 = scalar_lea.vmem %s1, 72
    %381 = vst [vmem:[%s380] sm:%s379] %v377
    %s382 = scalar_lea.vmem [#allocation0], 152
    %v383 = vld [vmem:[%s382] sm:%s269]
    %s385 = ssub.s32 16, 1
    %s386 = scalar_lea.vmem %s1, 76
    %387 = vst [vmem:[%s386] sm:%s385] %v383
    %s388 = scalar_lea.vmem [#allocation0], 160
    %v389 = vld [vmem:[%s388] sm:%s269]
    %s391 = ssub.s32 16, 1
    %s392 = scalar_lea.vmem %s1, 80
    %393 = vst [vmem:[%s392] sm:%s391] %v389
    %s394 = scalar_lea.vmem [#allocation0], 168
    %v395 = vld [vmem:[%s394] sm:%s269]
    %s397 = ssub.s32 16, 1
    %s398 = scalar_lea.vmem %s1, 84
    %399 = vst [vmem:[%s398] sm:%s397] %v395
    %s400 = scalar_lea.vmem [#allocation0], 176
    %v401 = vld [vmem:[%s400] sm:%s269]
    %s403 = ssub.s32 16, 1
    %s404 = scalar_lea.vmem %s1, 88
    %405 = vst [vmem:[%s404] sm:%s403] %v401
    %s406 = scalar_lea.vmem [#allocation0], 184
    %v407 = vld [vmem:[%s406] sm:%s269]
    %s409 = ssub.s32 16, 1
    %s410 = scalar_lea.vmem %s1, 92
    %411 = vst [vmem:[%s410] sm:%s409] %v407
    %s412 = scalar_lea.vmem [#allocation0], 192
    %v413 = vld [vmem:[%s412] sm:%s269]
    %s415 = ssub.s32 16, 1
    %s416 = scalar_lea.vmem %s1, 96
    %417 = vst [vmem:[%s416] sm:%s415] %v413
    %s418 = scalar_lea.vmem [#allocation0], 200
    %v419 = vld [vmem:[%s418] sm:%s269]
    %s421 = ssub.s32 16, 1
    %s422 = scalar_lea.vmem %s1, 100
    %423 = vst [vmem:[%s422] sm:%s421] %v419
    %s424 = scalar_lea.vmem [#allocation0], 208
    %v425 = vld [vmem:[%s424] sm:%s269]
    %s427 = ssub.s32 16, 1
    %s428 = scalar_lea.vmem %s1, 104
    %429 = vst [vmem:[%s428] sm:%s427] %v425
    %s430 = scalar_lea.vmem [#allocation0], 216
    %v431 = vld [vmem:[%s430] sm:%s269]
    %s433 = ssub.s32 16, 1
    %s434 = scalar_lea.vmem %s1, 108
    %435 = vst [vmem:[%s434] sm:%s433] %v431
    %s436 = scalar_lea.vmem [#allocation0], 224
    %v437 = vld [vmem:[%s436] sm:%s269]
    %s439 = ssub.s32 16, 1
    %s440 = scalar_lea.vmem %s1, 112
    %441 = vst [vmem:[%s440] sm:%s439] %v437
    %s442 = scalar_lea.vmem [#allocation0], 232
    %v443 = vld [vmem:[%s442] sm:%s269]
    %s445 = ssub.s32 16, 1
    %s446 = scalar_lea.vmem %s1, 116
    %447 = vst [vmem:[%s446] sm:%s445] %v443
    %s448 = scalar_lea.vmem [#allocation0], 240
    %v449 = vld [vmem:[%s448] sm:%s269]
    %s451 = ssub.s32 16, 1
    %s452 = scalar_lea.vmem %s1, 120
    %453 = vst [vmem:[%s452] sm:%s451] %v449
    %s454 = scalar_lea.vmem [#allocation0], 248
    %v455 = vld [vmem:[%s454] sm:%s269]
    %s457 = ssub.s32 16, 1
    %s458 = scalar_lea.vmem %s1, 124
    %459 = vst [vmem:[%s458] sm:%s457] %v455
    %s460 = scalar_lea.vmem [#allocation0], 256
    %v461 = vld [vmem:[%s460] sm:%s269]
    %s463 = ssub.s32 16, 1
    %s464 = scalar_lea.vmem %s1, 128
    %465 = vst [vmem:[%s464] sm:%s463] %v461
    %s466 = scalar_lea.vmem [#allocation0], 264
    %v467 = vld [vmem:[%s466] sm:%s269]
    %s469 = ssub.s32 16, 1
    %s470 = scalar_lea.vmem %s1, 132
    %471 = vst [vmem:[%s470] sm:%s469] %v467
    %s472 = scalar_lea.vmem [#allocation0], 272
    %v473 = vld [vmem:[%s472] sm:%s269]
    %s475 = ssub.s32 16, 1
    %s476 = scalar_lea.vmem %s1, 136
    %477 = vst [vmem:[%s476] sm:%s475] %v473
    %s478 = scalar_lea.vmem [#allocation0], 280
    %v479 = vld [vmem:[%s478] sm:%s269]
    %s481 = ssub.s32 16, 1
    %s482 = scalar_lea.vmem %s1, 140
    %483 = vst [vmem:[%s482] sm:%s481] %v479
    %s484 = scalar_lea.vmem [#allocation0], 288
    %v485 = vld [vmem:[%s484] sm:%s269]
    %s487 = ssub.s32 16, 1
    %s488 = scalar_lea.vmem %s1, 144
    %489 = vst [vmem:[%s488] sm:%s487] %v485
    %s490 = scalar_lea.vmem [#allocation0], 296
    %v491 = vld [vmem:[%s490] sm:%s269]
    %s493 = ssub.s32 16, 1
    %s494 = scalar_lea.vmem %s1, 148
    %495 = vst [vmem:[%s494] sm:%s493] %v491
    %s496 = scalar_lea.vmem [#allocation0], 304
    %v497 = vld [vmem:[%s496] sm:%s269]
    %s499 = ssub.s32 16, 1
    %s500 = scalar_lea.vmem %s1, 152
    %501 = vst [vmem:[%s500] sm:%s499] %v497
    %s502 = scalar_lea.vmem [#allocation0], 312
    %v503 = vld [vmem:[%s502] sm:%s269]
    %s505 = ssub.s32 16, 1
    %s506 = scalar_lea.vmem %s1, 156
    %507 = vst [vmem:[%s506] sm:%s505] %v503
    %s508 = scalar_lea.vmem [#allocation0], 320
    %v509 = vld [vmem:[%s508] sm:%s269]
    %s511 = ssub.s32 16, 1
    %s512 = scalar_lea.vmem %s1, 160
    %513 = vst [vmem:[%s512] sm:%s511] %v509
    %s514 = scalar_lea.vmem [#allocation0], 328
    %v515 = vld [vmem:[%s514] sm:%s269]
    %s517 = ssub.s32 16, 1
    %s518 = scalar_lea.vmem %s1, 164
    %519 = vst [vmem:[%s518] sm:%s517] %v515
    %s520 = scalar_lea.vmem [#allocation0], 336
    %v521 = vld [vmem:[%s520] sm:%s269]
    %s523 = ssub.s32 16, 1
    %s524 = scalar_lea.vmem %s1, 168
    %525 = vst [vmem:[%s524] sm:%s523] %v521
    %s526 = scalar_lea.vmem [#allocation0], 344
    %v527 = vld [vmem:[%s526] sm:%s269]
    %s529 = ssub.s32 16, 1
    %s530 = scalar_lea.vmem %s1, 172
    %531 = vst [vmem:[%s530] sm:%s529] %v527
    %s532 = scalar_lea.vmem [#allocation0], 352
    %v533 = vld [vmem:[%s532] sm:%s269]
    %s535 = ssub.s32 16, 1
    %s536 = scalar_lea.vmem %s1, 176
    %537 = vst [vmem:[%s536] sm:%s535] %v533
    %s538 = scalar_lea.vmem [#allocation0], 360
    %v539 = vld [vmem:[%s538] sm:%s269]
    %s541 = ssub.s32 16, 1
    %s542 = scalar_lea.vmem %s1, 180
    %543 = vst [vmem:[%s542] sm:%s541] %v539
    %s544 = scalar_lea.vmem [#allocation0], 368
    %v545 = vld [vmem:[%s544] sm:%s269]
    %s547 = ssub.s32 16, 1
    %s548 = scalar_lea.vmem %s1, 184
    %549 = vst [vmem:[%s548] sm:%s547] %v545
    %s550 = scalar_lea.vmem [#allocation0], 376
    %v551 = vld [vmem:[%s550] sm:%s269]
    %s553 = ssub.s32 16, 1
    %s554 = scalar_lea.vmem %s1, 188
    %555 = vst [vmem:[%s554] sm:%s553] %v551
    %s556 = scalar_lea.vmem [#allocation0], 384
    %v557 = vld [vmem:[%s556] sm:%s269]
    %s559 = ssub.s32 16, 1
    %s560 = scalar_lea.vmem %s1, 192
    %561 = vst [vmem:[%s560] sm:%s559] %v557
    %s562 = scalar_lea.vmem [#allocation0], 392
    %v563 = vld [vmem:[%s562] sm:%s269]
    %s565 = ssub.s32 16, 1
    %s566 = scalar_lea.vmem %s1, 196
    %567 = vst [vmem:[%s566] sm:%s565] %v563
    %s568 = scalar_lea.vmem [#allocation0], 400
    %v569 = vld [vmem:[%s568] sm:%s269]
    %s571 = ssub.s32 16, 1
    %s572 = scalar_lea.vmem %s1, 200
    %573 = vst [vmem:[%s572] sm:%s571] %v569
    %s574 = scalar_lea.vmem [#allocation0], 408
    %v575 = vld [vmem:[%s574] sm:%s269]
    %s577 = ssub.s32 16, 1
    %s578 = scalar_lea.vmem %s1, 204
    %579 = vst [vmem:[%s578] sm:%s577] %v575
    %s580 = scalar_lea.vmem [#allocation0], 416
    %v581 = vld [vmem:[%s580] sm:%s269]
    %s583 = ssub.s32 16, 1
    %s584 = scalar_lea.vmem %s1, 208
    %585 = vst [vmem:[%s584] sm:%s583] %v581
    %s586 = scalar_lea.vmem [#allocation0], 424
    %v587 = vld [vmem:[%s586] sm:%s269]
    %s589 = ssub.s32 16, 1
    %s590 = scalar_lea.vmem %s1, 212
    %591 = vst [vmem:[%s590] sm:%s589] %v587
    %s592 = scalar_lea.vmem [#allocation0], 432
    %v593 = vld [vmem:[%s592] sm:%s269]
    %s595 = ssub.s32 16, 1
    %s596 = scalar_lea.vmem %s1, 216
    %597 = vst [vmem:[%s596] sm:%s595] %v593
    %s598 = scalar_lea.vmem [#allocation0], 440
    %v599 = vld [vmem:[%s598] sm:%s269]
    %s601 = ssub.s32 16, 1
    %s602 = scalar_lea.vmem %s1, 220
    %603 = vst [vmem:[%s602] sm:%s601] %v599
    %s604 = scalar_lea.vmem [#allocation0], 448
    %v605 = vld [vmem:[%s604] sm:%s269]
    %s607 = ssub.s32 16, 1
    %s608 = scalar_lea.vmem %s1, 224
    %609 = vst [vmem:[%s608] sm:%s607] %v605
    %s610 = scalar_lea.vmem [#allocation0], 456
    %v611 = vld [vmem:[%s610] sm:%s269]
    %s613 = ssub.s32 16, 1
    %s614 = scalar_lea.vmem %s1, 228
    %615 = vst [vmem:[%s614] sm:%s613] %v611
    %s616 = scalar_lea.vmem [#allocation0], 464
    %v617 = vld [vmem:[%s616] sm:%s269]
    %s619 = ssub.s32 16, 1
    %s620 = scalar_lea.vmem %s1, 232
    %621 = vst [vmem:[%s620] sm:%s619] %v617
    %s622 = scalar_lea.vmem [#allocation0], 472
    %v623 = vld [vmem:[%s622] sm:%s269]
    %s625 = ssub.s32 16, 1
    %s626 = scalar_lea.vmem %s1, 236
    %627 = vst [vmem:[%s626] sm:%s625] %v623
    %s628 = scalar_lea.vmem [#allocation0], 480
    %v629 = vld [vmem:[%s628] sm:%s269]
    %s631 = ssub.s32 16, 1
    %s632 = scalar_lea.vmem %s1, 240
    %633 = vst [vmem:[%s632] sm:%s631] %v629
    %s634 = scalar_lea.vmem [#allocation0], 488
    %v635 = vld [vmem:[%s634] sm:%s269]
    %s637 = ssub.s32 16, 1
    %s638 = scalar_lea.vmem %s1, 244
    %639 = vst [vmem:[%s638] sm:%s637] %v635
    %s640 = scalar_lea.vmem [#allocation0], 496
    %v641 = vld [vmem:[%s640] sm:%s269]
    %s643 = ssub.s32 16, 1
    %s644 = scalar_lea.vmem %s1, 248
    %645 = vst [vmem:[%s644] sm:%s643] %v641
    %s646 = scalar_lea.vmem [#allocation0], 504
    %v647 = vld [vmem:[%s646] sm:%s269]
    %s649 = ssub.s32 16, 1
    %s650 = scalar_lea.vmem %s1, 252
    %651 = vst [vmem:[%s650] sm:%s649] %v647

// kernel: squeeze.5
$region0: #{squeeze.5}
  %s0 = inlined_call_operand.vmem [shape: f32[1,1,2,64,64], index: 0, kind: input, shape index: {}]
  %s1 = inlined_call_operand.vmem [shape: f32[1,2,8,8,8,8], index: 1, kind: output, shape index: {}]
  %v2 = vld [vmem:[%s0] sm:$0xff]
  %vm3 = vcmask 64512
  %4 = vst.msk [vmem:[%s1] ss:$8 sm:$0xf] %vm3, %v2
  %5 = vst.msk [vmem:[%s1] ss:$8 sm:$0xf0] %vm3, %v2
  %s6 = scalar_lea.vmem %s0, 8
  %v7 = vld [vmem:[%s6] sm:$0xff]
  %vm8 = vcmask 64512
  %s9 = scalar_lea.vmem %s1, 64
  %10 = vst.msk [vmem:[%s9] ss:$8 sm:$0xf] %vm8, %v7
  %s11 = scalar_lea.vmem %s1, 64
  %12 = vst.msk [vmem:[%s11] ss:$8 sm:$0xf0] %vm8, %v7
  %s13 = scalar_lea.vmem %s0, 16
  %v14 = vld [vmem:[%s13] sm:$0xff]
  %vm15 = vcmask 64512
  %s16 = scalar_lea.vmem %s1, 128
  %17 = vst.msk [vmem:[%s16] ss:$8 sm:$0xf] %vm15, %v14
  %s18 = scalar_lea.vmem %s1, 128
  %19 = vst.msk [vmem:[%s18] ss:$8 sm:$0xf0] %vm15, %v14
  %s20 = scalar_lea.vmem %s0, 24
  %v21 = vld [vmem:[%s20] sm:$0xff]
  %vm22 = vcmask 64512
  %s23 = scalar_lea.vmem %s1, 192
  %24 = vst.msk [vmem:[%s23] ss:$8 sm:$0xf] %vm22, %v21
  %s25 = scalar_lea.vmem %s1, 192
  %26 = vst.msk [vmem:[%s25] ss:$8 sm:$0xf0] %vm22, %v21
  %s27 = scalar_lea.vmem %s0, 32
  %v28 = vld [vmem:[%s27] sm:$0xff]
  %vm29 = vcmask 64512
  %s30 = scalar_lea.vmem %s1, 256
  %31 = vst.msk [vmem:[%s30] ss:$8 sm:$0xf] %vm29, %v28
  %s32 = scalar_lea.vmem %s1, 256
  %33 = vst.msk [vmem:[%s32] ss:$8 sm:$0xf0] %vm29, %v28
  %s34 = scalar_lea.vmem %s0, 40
  %v35 = vld [vmem:[%s34] sm:$0xff]
  %vm36 = vcmask 64512
  %s37 = scalar_lea.vmem %s1, 320
  %38 = vst.msk [vmem:[%s37] ss:$8 sm:$0xf] %vm36, %v35
  %s39 = scalar_lea.vmem %s1, 320
  %40 = vst.msk [vmem:[%s39] ss:$8 sm:$0xf0] %vm36, %v35
  %s41 = scalar_lea.vmem %s0, 48
  %v42 = vld [vmem:[%s41] sm:$0xff]
  %vm43 = vcmask 64512
  %s44 = scalar_lea.vmem %s1, 384
  %45 = vst.msk [vmem:[%s44] ss:$8 sm:$0xf] %vm43, %v42
  %s46 = scalar_lea.vmem %s1, 384
  %47 = vst.msk [vmem:[%s46] ss:$8 sm:$0xf0] %vm43, %v42
  %s48 = scalar_lea.vmem %s0, 56
  %v49 = vld [vmem:[%s48] sm:$0xff]
  %vm50 = vcmask 64512
  %s51 = scalar_lea.vmem %s1, 448
  %52 = vst.msk [vmem:[%s51] ss:$8 sm:$0xf] %vm50, %v49
  %s53 = scalar_lea.vmem %s1, 448
  %54 = vst.msk [vmem:[%s53] ss:$8 sm:$0xf0] %vm50, %v49
  %s55 = scalar_lea.vmem %s0, 64
  %v56 = vld [vmem:[%s55] sm:$0xff]
  %vm57 = vcmask 64512
  %s58 = scalar_lea.vmem %s1, 512
  %59 = vst.msk [vmem:[%s58] ss:$8 sm:$0xf] %vm57, %v56
  %s60 = scalar_lea.vmem %s1, 512
  %61 = vst.msk [vmem:[%s60] ss:$8 sm:$0xf0] %vm57, %v56
  %s62 = scalar_lea.vmem %s0, 72
  %v63 = vld [vmem:[%s62] sm:$0xff]
  %vm64 = vcmask 64512
  %s65 = scalar_lea.vmem %s1, 576
  %66 = vst.msk [vmem:[%s65] ss:$8 sm:$0xf] %vm64, %v63
  %s67 = scalar_lea.vmem %s1, 576
  %68 = vst.msk [vmem:[%s67] ss:$8 sm:$0xf0] %vm64, %v63
  %s69 = scalar_lea.vmem %s0, 80
  %v70 = vld [vmem:[%s69] sm:$0xff]
  %vm71 = vcmask 64512
  %s72 = scalar_lea.vmem %s1, 640
  %73 = vst.msk [vmem:[%s72] ss:$8 sm:$0xf] %vm71, %v70
  %s74 = scalar_lea.vmem %s1, 640
  %75 = vst.msk [vmem:[%s74] ss:$8 sm:$0xf0] %vm71, %v70
  %s76 = scalar_lea.vmem %s0, 88
  %v77 = vld [vmem:[%s76] sm:$0xff]
  %vm78 = vcmask 64512
  %s79 = scalar_lea.vmem %s1, 704
  %80 = vst.msk [vmem:[%s79] ss:$8 sm:$0xf] %vm78, %v77
  %s81 = scalar_lea.vmem %s1, 704
  %82 = vst.msk [vmem:[%s81] ss:$8 sm:$0xf0] %vm78, %v77
  %s83 = scalar_lea.vmem %s0, 96
  %v84 = vld [vmem:[%s83] sm:$0xff]
  %vm85 = vcmask 64512
  %s86 = scalar_lea.vmem %s1, 768
  %87 = vst.msk [vmem:[%s86] ss:$8 sm:$0xf] %vm85, %v84
  %s88 = scalar_lea.vmem %s1, 768
  %89 = vst.msk [vmem:[%s88] ss:$8 sm:$0xf0] %vm85, %v84
  %s90 = scalar_lea.vmem %s0, 104
  %v91 = vld [vmem:[%s90] sm:$0xff]
  %vm92 = vcmask 64512
  %s93 = scalar_lea.vmem %s1, 832
  %94 = vst.msk [vmem:[%s93] ss:$8 sm:$0xf] %vm92, %v91
  %s95 = scalar_lea.vmem %s1, 832
  %96 = vst.msk [vmem:[%s95] ss:$8 sm:$0xf0] %vm92, %v91
  %s97 = scalar_lea.vmem %s0, 112
  %v98 = vld [vmem:[%s97] sm:$0xff]
  %vm99 = vcmask 64512
  %s100 = scalar_lea.vmem %s1, 896
  %101 = vst.msk [vmem:[%s100] ss:$8 sm:$0xf] %vm99, %v98
  %s102 = scalar_lea.vmem %s1, 896
  %103 = vst.msk [vmem:[%s102] ss:$8 sm:$0xf0] %vm99, %v98
  %s104 = scalar_lea.vmem %s0, 120
  %v105 = vld [vmem:[%s104] sm:$0xff]
  %vm106 = vcmask 64512
  %s107 = scalar_lea.vmem %s1, 960
  %108 = vst.msk [vmem:[%s107] ss:$8 sm:$0xf] %vm106, %v105
  %s109 = scalar_lea.vmem %s1, 960
  %110 = vst.msk [vmem:[%s109] ss:$8 sm:$0xf0] %vm106, %v105
  %v111 = vld [vmem:[%s0] sm:$0xff]
  %112 = vrot.lane.b32.xlu0 %v111, 120
  %v113 = vpop.permute.xlu0 %112
  %vm114 = vcmask 64512
  %s115 = scalar_lea.vmem %s1, 1
  %116 = vst.msk [vmem:[%s115] ss:$8 sm:$0xf] %vm114, %v113
  %s117 = scalar_lea.vmem %s1, 1
  %118 = vst.msk [vmem:[%s117] ss:$8 sm:$0xf0] %vm114, %v113
  %s119 = scalar_lea.vmem %s0, 8
  %v120 = vld [vmem:[%s119] sm:$0xff]
  %121 = vrot.lane.b32.xlu0 %v120, 120
  %v122 = vpop.permute.xlu0 %121
  %vm123 = vcmask 64512
  %s124 = scalar_lea.vmem %s1, 65
  %125 = vst.msk [vmem:[%s124] ss:$8 sm:$0xf] %vm123, %v122
  %s126 = scalar_lea.vmem %s1, 65
  %127 = vst.msk [vmem:[%s126] ss:$8 sm:$0xf0] %vm123, %v122
  %s128 = scalar_lea.vmem %s0, 16
  %v129 = vld [vmem:[%s128] sm:$0xff]
  %130 = vrot.lane.b32.xlu0 %v129, 120
  %v131 = vpop.permute.xlu0 %130
  %vm132 = vcmask 64512
  %s133 = scalar_lea.vmem %s1, 129
  %134 = vst.msk [vmem:[%s133] ss:$8 sm:$0xf] %vm132, %v131
  %s135 = scalar_lea.vmem %s1, 129
  %136 = vst.msk [vmem:[%s135] ss:$8 sm:$0xf0] %vm132, %v131
  %s137 = scalar_lea.vmem %s0, 24
  %v138 = vld [vmem:[%s137] sm:$0xff]
  %139 = vrot.lane.b32.xlu0 %v138, 120
  %v140 = vpop.permute.xlu0 %139
  %vm141 = vcmask 64512
  %s142 = scalar_lea.vmem %s1, 193
  %143 = vst.msk [vmem:[%s142] ss:$8 sm:$0xf] %vm141, %v140
  %s144 = scalar_lea.vmem %s1, 193
  %145 = vst.msk [vmem:[%s144] ss:$8 sm:$0xf0] %vm141, %v140
  %s146 = scalar_lea.vmem %s0, 32
  %v147 = vld [vmem:[%s146] sm:$0xff]
  %148 = vrot.lane.b32.xlu0 %v147, 120
  %v149 = vpop.permute.xlu0 %148
  %vm150 = vcmask 64512
  %s151 = scalar_lea.vmem %s1, 257
  %152 = vst.msk [vmem:[%s151] ss:$8 sm:$0xf] %vm150, %v149
  %s153 = scalar_lea.vmem %s1, 257
  %154 = vst.msk [vmem:[%s153] ss:$8 sm:$0xf0] %vm150, %v149
  %s155 = scalar_lea.vmem %s0, 40
  %v156 = vld [vmem:[%s155] sm:$0xff]
  %157 = vrot.lane.b32.xlu0 %v156, 120
  %v158 = vpop.permute.xlu0 %157
  %vm159 = vcmask 64512
  %s160 = scalar_lea.vmem %s1, 321
  %161 = vst.msk [vmem:[%s160] ss:$8 sm:$0xf] %vm159, %v158
  %s162 = scalar_lea.vmem %s1, 321
  %163 = vst.msk [vmem:[%s162] ss:$8 sm:$0xf0] %vm159, %v158
  %s164 = scalar_lea.vmem %s0, 48
  %v165 = vld [vmem:[%s164] sm:$0xff]
  %166 = vrot.lane.b32.xlu0 %v165, 120
  %v167 = vpop.permute.xlu0 %166
  %vm168 = vcmask 64512
  %s169 = scalar_lea.vmem %s1, 385
  %170 = vst.msk [vmem:[%s169] ss:$8 sm:$0xf] %vm168, %v167
  %s171 = scalar_lea.vmem %s1, 385
  %172 = vst.msk [vmem:[%s171] ss:$8 sm:$0xf0] %vm168, %v167
  %s173 = scalar_lea.vmem %s0, 56
  %v174 = vld [vmem:[%s173] sm:$0xff]
  %175 = vrot.lane.b32.xlu0 %v174, 120
  %v176 = vpop.permute.xlu0 %175
  %vm177 = vcmask 64512
  %s178 = scalar_lea.vmem %s1, 449
  %179 = vst.msk [vmem:[%s178] ss:$8 sm:$0xf] %vm177, %v176
  %s180 = scalar_lea.vmem %s1, 449
  %181 = vst.msk [vmem:[%s180] ss:$8 sm:$0xf0] %vm177, %v176
  %s182 = scalar_lea.vmem %s0, 64
  %v183 = vld [vmem:[%s182] sm:$0xff]
  %184 = vrot.lane.b32.xlu0 %v183, 120
  %v185 = vpop.permute.xlu0 %184
  %vm186 = vcmask 64512
  %s187 = scalar_lea.vmem %s1, 513
  %188 = vst.msk [vmem:[%s187] ss:$8 sm:$0xf] %vm186, %v185
  %s189 = scalar_lea.vmem %s1, 513
  %190 = vst.msk [vmem:[%s189] ss:$8 sm:$0xf0] %vm186, %v185
  %s191 = scalar_lea.vmem %s0, 72
  %v192 = vld [vmem:[%s191] sm:$0xff]
  %193 = vrot.lane.b32.xlu0 %v192, 120
  %v194 = vpop.permute.xlu0 %193
  %vm195 = vcmask 64512
  %s196 = scalar_lea.vmem %s1, 577
  %197 = vst.msk [vmem:[%s196] ss:$8 sm:$0xf] %vm195, %v194
  %s198 = scalar_lea.vmem %s1, 577
  %199 = vst.msk [vmem:[%s198] ss:$8 sm:$0xf0] %vm195, %v194
  %s200 = scalar_lea.vmem %s0, 80
  %v201 = vld [vmem:[%s200] sm:$0xff]
  %202 = vrot.lane.b32.xlu0 %v201, 120
  %v203 = vpop.permute.xlu0 %202
  %vm204 = vcmask 64512
  %s205 = scalar_lea.vmem %s1, 641
  %206 = vst.msk [vmem:[%s205] ss:$8 sm:$0xf] %vm204, %v203
  %s207 = scalar_lea.vmem %s1, 641
  %208 = vst.msk [vmem:[%s207] ss:$8 sm:$0xf0] %vm204, %v203
  %s209 = scalar_lea.vmem %s0, 88
  %v210 = vld [vmem:[%s209] sm:$0xff]
  %211 = vrot.lane.b32.xlu0 %v210, 120
  %v212 = vpop.permute.xlu0 %211
  %vm213 = vcmask 64512
  %s214 = scalar_lea.vmem %s1, 705
  %215 = vst.msk [vmem:[%s214] ss:$8 sm:$0xf] %vm213, %v212
  %s216 = scalar_lea.vmem %s1, 705
  %217 = vst.msk [vmem:[%s216] ss:$8 sm:$0xf0] %vm213, %v212
  %s218 = scalar_lea.vmem %s0, 96
  %v219 = vld [vmem:[%s218] sm:$0xff]
  %220 = vrot.lane.b32.xlu0 %v219, 120
  %v221 = vpop.permute.xlu0 %220
  %vm222 = vcmask 64512
  %s223 = scalar_lea.vmem %s1, 769
  %224 = vst.msk [vmem:[%s223] ss:$8 sm:$0xf] %vm222, %v221
  %s225 = scalar_lea.vmem %s1, 769
  %226 = vst.msk [vmem:[%s225] ss:$8 sm:$0xf0] %vm222, %v221
  %s227 = scalar_lea.vmem %s0, 104
  %v228 = vld [vmem:[%s227] sm:$0xff]
  %229 = vrot.lane.b32.xlu0 %v228, 120
  %v230 = vpop.permute.xlu0 %229
  %vm231 = vcmask 64512
  %s232 = scalar_lea.vmem %s1, 833
  %233 = vst.msk [vmem:[%s232] ss:$8 sm:$0xf] %vm231, %v230
  %s234 = scalar_lea.vmem %s1, 833
  %235 = vst.msk [vmem:[%s234] ss:$8 sm:$0xf0] %vm231, %v230
  %s236 = scalar_lea.vmem %s0, 112
  %v237 = vld [vmem:[%s236] sm:$0xff]
  %238 = vrot.lane.b32.xlu0 %v237, 120
  %v239 = vpop.permute.xlu0 %238
  %vm240 = vcmask 64512
  %s241 = scalar_lea.vmem %s1, 897
  %242 = vst.msk [vmem:[%s241] ss:$8 sm:$0xf] %vm240, %v239
  %s243 = scalar_lea.vmem %s1, 897
  %244 = vst.msk [vmem:[%s243] ss:$8 sm:$0xf0] %vm240, %v239
  %s245 = scalar_lea.vmem %s0, 120
  %v246 = vld [vmem:[%s245] sm:$0xff]
  %247 = vrot.lane.b32.xlu0 %v246, 120
  %v248 = vpop.permute.xlu0 %247
  %vm249 = vcmask 64512
  %s250 = scalar_lea.vmem %s1, 961
  %251 = vst.msk [vmem:[%s250] ss:$8 sm:$0xf] %vm249, %v248
  %s252 = scalar_lea.vmem %s1, 961
  %253 = vst.msk [vmem:[%s252] ss:$8 sm:$0xf0] %vm249, %v248
  %v254 = vld [vmem:[%s0] sm:$0xff]
  %255 = vrot.lane.b32.xlu0 %v254, 112
  %v256 = vpop.permute.xlu0 %255
  %vm257 = vcmask 64512
  %s258 = scalar_lea.vmem %s1, 2
  %259 = vst.msk [vmem:[%s258] ss:$8 sm:$0xf] %vm257, %v256
  %s260 = scalar_lea.vmem %s1, 2
  %261 = vst.msk [vmem:[%s260] ss:$8 sm:$0xf0] %vm257, %v256
  %s262 = scalar_lea.vmem %s0, 8
  %v263 = vld [vmem:[%s262] sm:$0xff]
  %264 = vrot.lane.b32.xlu0 %v263, 112
  %v265 = vpop.permute.xlu0 %264
  %vm266 = vcmask 64512
  %s267 = scalar_lea.vmem %s1, 66
  %268 = vst.msk [vmem:[%s267] ss:$8 sm:$0xf] %vm266, %v265
  %s269 = scalar_lea.vmem %s1, 66
  %270 = vst.msk [vmem:[%s269] ss:$8 sm:$0xf0] %vm266, %v265
  %s271 = scalar_lea.vmem %s0, 16
  %v272 = vld [vmem:[%s271] sm:$0xff]
  %273 = vrot.lane.b32.xlu0 %v272, 112
  %v274 = vpop.permute.xlu0 %273
  %vm275 = vcmask 64512
  %s276 = scalar_lea.vmem %s1, 130
  %277 = vst.msk [vmem:[%s276] ss:$8 sm:$0xf] %vm275, %v274
  %s278 = scalar_lea.vmem %s1, 130
  %279 = vst.msk [vmem:[%s278] ss:$8 sm:$0xf0] %vm275, %v274
  %s280 = scalar_lea.vmem %s0, 24
  %v281 = vld [vmem:[%s280] sm:$0xff]
  %282 = vrot.lane.b32.xlu0 %v281, 112
  %v283 = vpop.permute.xlu0 %282
  %vm284 = vcmask 64512
  %s285 = scalar_lea.vmem %s1, 194
  %286 = vst.msk [vmem:[%s285] ss:$8 sm:$0xf] %vm284, %v283
  %s287 = scalar_lea.vmem %s1, 194
  %288 = vst.msk [vmem:[%s287] ss:$8 sm:$0xf0] %vm284, %v283
  %s289 = scalar_lea.vmem %s0, 32
  %v290 = vld [vmem:[%s289] sm:$0xff]
  %291 = vrot.lane.b32.xlu0 %v290, 112
  %v292 = vpop.permute.xlu0 %291
  %vm293 = vcmask 64512
  %s294 = scalar_lea.vmem %s1, 258
  %295 = vst.msk [vmem:[%s294] ss:$8 sm:$0xf] %vm293, %v292
  %s296 = scalar_lea.vmem %s1, 258
  %297 = vst.msk [vmem:[%s296] ss:$8 sm:$0xf0] %vm293, %v292
  %s298 = scalar_lea.vmem %s0, 40
  %v299 = vld [vmem:[%s298] sm:$0xff]
  %300 = vrot.lane.b32.xlu0 %v299, 112
  %v301 = vpop.permute.xlu0 %300
  %vm302 = vcmask 64512
  %s303 = scalar_lea.vmem %s1, 322
  %304 = vst.msk [vmem:[%s303] ss:$8 sm:$0xf] %vm302, %v301
  %s305 = scalar_lea.vmem %s1, 322
  %306 = vst.msk [vmem:[%s305] ss:$8 sm:$0xf0] %vm302, %v301
  %s307 = scalar_lea.vmem %s0, 48
  %v308 = vld [vmem:[%s307] sm:$0xff]
  %309 = vrot.lane.b32.xlu0 %v308, 112
  %v310 = vpop.permute.xlu0 %309
  %vm311 = vcmask 64512
  %s312 = scalar_lea.vmem %s1, 386
  %313 = vst.msk [vmem:[%s312] ss:$8 sm:$0xf] %vm311, %v310
  %s314 = scalar_lea.vmem %s1, 386
  %315 = vst.msk [vmem:[%s314] ss:$8 sm:$0xf0] %vm311, %v310
  %s316 = scalar_lea.vmem %s0, 56
  %v317 = vld [vmem:[%s316] sm:$0xff]
  %318 = vrot.lane.b32.xlu0 %v317, 112
  %v319 = vpop.permute.xlu0 %318
  %vm320 = vcmask 64512
  %s321 = scalar_lea.vmem %s1, 450
  %322 = vst.msk [vmem:[%s321] ss:$8 sm:$0xf] %vm320, %v319
  %s323 = scalar_lea.vmem %s1, 450
  %324 = vst.msk [vmem:[%s323] ss:$8 sm:$0xf0] %vm320, %v319
  %s325 = scalar_lea.vmem %s0, 64
  %v326 = vld [vmem:[%s325] sm:$0xff]
  %327 = vrot.lane.b32.xlu0 %v326, 112
  %v328 = vpop.permute.xlu0 %327
  %vm329 = vcmask 64512
  %s330 = scalar_lea.vmem %s1, 514
  %331 = vst.msk [vmem:[%s330] ss:$8 sm:$0xf] %vm329, %v328
  %s332 = scalar_lea.vmem %s1, 514
  %333 = vst.msk [vmem:[%s332] ss:$8 sm:$0xf0] %vm329, %v328
  %s334 = scalar_lea.vmem %s0, 72
  %v335 = vld [vmem:[%s334] sm:$0xff]
  %336 = vrot.lane.b32.xlu0 %v335, 112
  %v337 = vpop.permute.xlu0 %336
  %vm338 = vcmask 64512
  %s339 = scalar_lea.vmem %s1, 578
  %340 = vst.msk [vmem:[%s339] ss:$8 sm:$0xf] %vm338, %v337
  %s341 = scalar_lea.vmem %s1, 578
  %342 = vst.msk [vmem:[%s341] ss:$8 sm:$0xf0] %vm338, %v337
  %s343 = scalar_lea.vmem %s0, 80
  %v344 = vld [vmem:[%s343] sm:$0xff]
  %345 = vrot.lane.b32.xlu0 %v344, 112
  %v346 = vpop.permute.xlu0 %345
  %vm347 = vcmask 64512
  %s348 = scalar_lea.vmem %s1, 642
  %349 = vst.msk [vmem:[%s348] ss:$8 sm:$0xf] %vm347, %v346
  %s350 = scalar_lea.vmem %s1, 642
  %351 = vst.msk [vmem:[%s350] ss:$8 sm:$0xf0] %vm347, %v346
  %s352 = scalar_lea.vmem %s0, 88
  %v353 = vld [vmem:[%s352] sm:$0xff]
  %354 = vrot.lane.b32.xlu0 %v353, 112
  %v355 = vpop.permute.xlu0 %354
  %vm356 = vcmask 64512
  %s357 = scalar_lea.vmem %s1, 706
  %358 = vst.msk [vmem:[%s357] ss:$8 sm:$0xf] %vm356, %v355
  %s359 = scalar_lea.vmem %s1, 706
  %360 = vst.msk [vmem:[%s359] ss:$8 sm:$0xf0] %vm356, %v355
  %s361 = scalar_lea.vmem %s0, 96
  %v362 = vld [vmem:[%s361] sm:$0xff]
  %363 = vrot.lane.b32.xlu0 %v362, 112
  %v364 = vpop.permute.xlu0 %363
  %vm365 = vcmask 64512
  %s366 = scalar_lea.vmem %s1, 770
  %367 = vst.msk [vmem:[%s366] ss:$8 sm:$0xf] %vm365, %v364
  %s368 = scalar_lea.vmem %s1, 770
  %369 = vst.msk [vmem:[%s368] ss:$8 sm:$0xf0] %vm365, %v364
  %s370 = scalar_lea.vmem %s0, 104
  %v371 = vld [vmem:[%s370] sm:$0xff]
  %372 = vrot.lane.b32.xlu0 %v371, 112
  %v373 = vpop.permute.xlu0 %372
  %vm374 = vcmask 64512
  %s375 = scalar_lea.vmem %s1, 834
  %376 = vst.msk [vmem:[%s375] ss:$8 sm:$0xf] %vm374, %v373
  %s377 = scalar_lea.vmem %s1, 834
  %378 = vst.msk [vmem:[%s377] ss:$8 sm:$0xf0] %vm374, %v373
  %s379 = scalar_lea.vmem %s0, 112
  %v380 = vld [vmem:[%s379] sm:$0xff]
  %381 = vrot.lane.b32.xlu0 %v380, 112
  %v382 = vpop.permute.xlu0 %381
  %vm383 = vcmask 64512
  %s384 = scalar_lea.vmem %s1, 898
  %385 = vst.msk [vmem:[%s384] ss:$8 sm:$0xf] %vm383, %v382
  %s386 = scalar_lea.vmem %s1, 898
  %387 = vst.msk [vmem:[%s386] ss:$8 sm:$0xf0] %vm383, %v382
  %s388 = scalar_lea.vmem %s0, 120
  %v389 = vld [vmem:[%s388] sm:$0xff]
  %390 = vrot.lane.b32.xlu0 %v389, 112
  %v391 = vpop.permute.xlu0 %390
  %vm392 = vcmask 64512
  %s393 = scalar_lea.vmem %s1, 962
  %394 = vst.msk [vmem:[%s393] ss:$8 sm:$0xf] %vm392, %v391
  %s395 = scalar_lea.vmem %s1, 962
  %396 = vst.msk [vmem:[%s395] ss:$8 sm:$0xf0] %vm392, %v391
  %v397 = vld [vmem:[%s0] sm:$0xff]
  %398 = vrot.lane.b32.xlu0 %v397, 104
  %v399 = vpop.permute.xlu0 %398
  %vm400 = vcmask 64512
  %s401 = scalar_lea.vmem %s1, 3
  %402 = vst.msk [vmem:[%s401] ss:$8 sm:$0xf] %vm400, %v399
  %s403 = scalar_lea.vmem %s1, 3
  %404 = vst.msk [vmem:[%s403] ss:$8 sm:$0xf0] %vm400, %v399
  %s405 = scalar_lea.vmem %s0, 8
  %v406 = vld [vmem:[%s405] sm:$0xff]
  %407 = vrot.lane.b32.xlu0 %v406, 104
  %v408 = vpop.permute.xlu0 %407
  %vm409 = vcmask 64512
  %s410 = scalar_lea.vmem %s1, 67
  %411 = vst.msk [vmem:[%s410] ss:$8 sm:$0xf] %vm409, %v408
  %s412 = scalar_lea.vmem %s1, 67
  %413 = vst.msk [vmem:[%s412] ss:$8 sm:$0xf0] %vm409, %v408
  %s414 = scalar_lea.vmem %s0, 16
  %v415 = vld [vmem:[%s414] sm:$0xff]
  %416 = vrot.lane.b32.xlu0 %v415, 104
  %v417 = vpop.permute.xlu0 %416
  %vm418 = vcmask 64512
  %s419 = scalar_lea.vmem %s1, 131
  %420 = vst.msk [vmem:[%s419] ss:$8 sm:$0xf] %vm418, %v417
  %s421 = scalar_lea.vmem %s1, 131
  %422 = vst.msk [vmem:[%s421] ss:$8 sm:$0xf0] %vm418, %v417
  %s423 = scalar_lea.vmem %s0, 24
  %v424 = vld [vmem:[%s423] sm:$0xff]
  %425 = vrot.lane.b32.xlu0 %v424, 104
  %v426 = vpop.permute.xlu0 %425
  %vm427 = vcmask 64512
  %s428 = scalar_lea.vmem %s1, 195
  %429 = vst.msk [vmem:[%s428] ss:$8 sm:$0xf] %vm427, %v426
  %s430 = scalar_lea.vmem %s1, 195
  %431 = vst.msk [vmem:[%s430] ss:$8 sm:$0xf0] %vm427, %v426
  %s432 = scalar_lea.vmem %s0, 32
  %v433 = vld [vmem:[%s432] sm:$0xff]
  %434 = vrot.lane.b32.xlu0 %v433, 104
  %v435 = vpop.permute.xlu0 %434
  %vm436 = vcmask 64512
  %s437 = scalar_lea.vmem %s1, 259
  %438 = vst.msk [vmem:[%s437] ss:$8 sm:$0xf] %vm436, %v435
  %s439 = scalar_lea.vmem %s1, 259
  %440 = vst.msk [vmem:[%s439] ss:$8 sm:$0xf0] %vm436, %v435
  %s441 = scalar_lea.vmem %s0, 40
  %v442 = vld [vmem:[%s441] sm:$0xff]
  %443 = vrot.lane.b32.xlu0 %v442, 104
  %v444 = vpop.permute.xlu0 %443
  %vm445 = vcmask 64512
  %s446 = scalar_lea.vmem %s1, 323
  %447 = vst.msk [vmem:[%s446] ss:$8 sm:$0xf] %vm445, %v444
  %s448 = scalar_lea.vmem %s1, 323
  %449 = vst.msk [vmem:[%s448] ss:$8 sm:$0xf0] %vm445, %v444
  %s450 = scalar_lea.vmem %s0, 48
  %v451 = vld [vmem:[%s450] sm:$0xff]
  %452 = vrot.lane.b32.xlu0 %v451, 104
  %v453 = vpop.permute.xlu0 %452
  %vm454 = vcmask 64512
  %s455 = scalar_lea.vmem %s1, 387
  %456 = vst.msk [vmem:[%s455] ss:$8 sm:$0xf] %vm454, %v453
  %s457 = scalar_lea.vmem %s1, 387
  %458 = vst.msk [vmem:[%s457] ss:$8 sm:$0xf0] %vm454, %v453
  %s459 = scalar_lea.vmem %s0, 56
  %v460 = vld [vmem:[%s459] sm:$0xff]
  %461 = vrot.lane.b32.xlu0 %v460, 104
  %v462 = vpop.permute.xlu0 %461
  %vm463 = vcmask 64512
  %s464 = scalar_lea.vmem %s1, 451
  %465 = vst.msk [vmem:[%s464] ss:$8 sm:$0xf] %vm463, %v462
  %s466 = scalar_lea.vmem %s1, 451
  %467 = vst.msk [vmem:[%s466] ss:$8 sm:$0xf0] %vm463, %v462
  %s468 = scalar_lea.vmem %s0, 64
  %v469 = vld [vmem:[%s468] sm:$0xff]
  %470 = vrot.lane.b32.xlu0 %v469, 104
  %v471 = vpop.permute.xlu0 %470
  %vm472 = vcmask 64512
  %s473 = scalar_lea.vmem %s1, 515
  %474 = vst.msk [vmem:[%s473] ss:$8 sm:$0xf] %vm472, %v471
  %s475 = scalar_lea.vmem %s1, 515
  %476 = vst.msk [vmem:[%s475] ss:$8 sm:$0xf0] %vm472, %v471
  %s477 = scalar_lea.vmem %s0, 72
  %v478 = vld [vmem:[%s477] sm:$0xff]
  %479 = vrot.lane.b32.xlu0 %v478, 104
  %v480 = vpop.permute.xlu0 %479
  %vm481 = vcmask 64512
  %s482 = scalar_lea.vmem %s1, 579
  %483 = vst.msk [vmem:[%s482] ss:$8 sm:$0xf] %vm481, %v480
  %s484 = scalar_lea.vmem %s1, 579
  %485 = vst.msk [vmem:[%s484] ss:$8 sm:$0xf0] %vm481, %v480
  %s486 = scalar_lea.vmem %s0, 80
  %v487 = vld [vmem:[%s486] sm:$0xff]
  %488 = vrot.lane.b32.xlu0 %v487, 104
  %v489 = vpop.permute.xlu0 %488
  %vm490 = vcmask 64512
  %s491 = scalar_lea.vmem %s1, 643
  %492 = vst.msk [vmem:[%s491] ss:$8 sm:$0xf] %vm490, %v489
  %s493 = scalar_lea.vmem %s1, 643
  %494 = vst.msk [vmem:[%s493] ss:$8 sm:$0xf0] %vm490, %v489
  %s495 = scalar_lea.vmem %s0, 88
  %v496 = vld [vmem:[%s495] sm:$0xff]
  %497 = vrot.lane.b32.xlu0 %v496, 104
  %v498 = vpop.permute.xlu0 %497
  %vm499 = vcmask 64512
  %s500 = scalar_lea.vmem %s1, 707
  %501 = vst.msk [vmem:[%s500] ss:$8 sm:$0xf] %vm499, %v498
  %s502 = scalar_lea.vmem %s1, 707
  %503 = vst.msk [vmem:[%s502] ss:$8 sm:$0xf0] %vm499, %v498
  %s504 = scalar_lea.vmem %s0, 96
  %v505 = vld [vmem:[%s504] sm:$0xff]
  %506 = vrot.lane.b32.xlu0 %v505, 104
  %v507 = vpop.permute.xlu0 %506
  %vm508 = vcmask 64512
  %s509 = scalar_lea.vmem %s1, 771
  %510 = vst.msk [vmem:[%s509] ss:$8 sm:$0xf] %vm508, %v507
  %s511 = scalar_lea.vmem %s1, 771
  %512 = vst.msk [vmem:[%s511] ss:$8 sm:$0xf0] %vm508, %v507
  %s513 = scalar_lea.vmem %s0, 104
  %v514 = vld [vmem:[%s513] sm:$0xff]
  %515 = vrot.lane.b32.xlu0 %v514, 104
  %v516 = vpop.permute.xlu0 %515
  %vm517 = vcmask 64512
  %s518 = scalar_lea.vmem %s1, 835
  %519 = vst.msk [vmem:[%s518] ss:$8 sm:$0xf] %vm517, %v516
  %s520 = scalar_lea.vmem %s1, 835
  %521 = vst.msk [vmem:[%s520] ss:$8 sm:$0xf0] %vm517, %v516
  %s522 = scalar_lea.vmem %s0, 112
  %v523 = vld [vmem:[%s522] sm:$0xff]
  %524 = vrot.lane.b32.xlu0 %v523, 104
  %v525 = vpop.permute.xlu0 %524
  %vm526 = vcmask 64512
  %s527 = scalar_lea.vmem %s1, 899
  %528 = vst.msk [vmem:[%s527] ss:$8 sm:$0xf] %vm526, %v525
  %s529 = scalar_lea.vmem %s1, 899
  %530 = vst.msk [vmem:[%s529] ss:$8 sm:$0xf0] %vm526, %v525
  %s531 = scalar_lea.vmem %s0, 120
  %v532 = vld [vmem:[%s531] sm:$0xff]
  %533 = vrot.lane.b32.xlu0 %v532, 104
  %v534 = vpop.permute.xlu0 %533
  %vm535 = vcmask 64512
  %s536 = scalar_lea.vmem %s1, 963
  %537 = vst.msk [vmem:[%s536] ss:$8 sm:$0xf] %vm535, %v534
  %s538 = scalar_lea.vmem %s1, 963
  %539 = vst.msk [vmem:[%s538] ss:$8 sm:$0xf0] %vm535, %v534
  %v540 = vld [vmem:[%s0] sm:$0xff]
  %541 = vrot.lane.b32.xlu0 %v540, 96
  %v542 = vpop.permute.xlu0 %541
  %vm543 = vcmask 64512
  %s544 = scalar_lea.vmem %s1, 4
  %545 = vst.msk [vmem:[%s544] ss:$8 sm:$0xf] %vm543, %v542
  %s546 = scalar_lea.vmem %s1, 4
  %547 = vst.msk [vmem:[%s546] ss:$8 sm:$0xf0] %vm543, %v542
  %s548 = scalar_lea.vmem %s0, 8
  %v549 = vld [vmem:[%s548] sm:$0xff]
  %550 = vrot.lane.b32.xlu0 %v549, 96
  %v551 = vpop.permute.xlu0 %550
  %vm552 = vcmask 64512
  %s553 = scalar_lea.vmem %s1, 68
  %554 = vst.msk [vmem:[%s553] ss:$8 sm:$0xf] %vm552, %v551
  %s555 = scalar_lea.vmem %s1, 68
  %556 = vst.msk [vmem:[%s555] ss:$8 sm:$0xf0] %vm552, %v551
  %s557 = scalar_lea.vmem %s0, 16
  %v558 = vld [vmem:[%s557] sm:$0xff]
  %559 = vrot.lane.b32.xlu0 %v558, 96
  %v560 = vpop.permute.xlu0 %559
  %vm561 = vcmask 64512
  %s562 = scalar_lea.vmem %s1, 132
  %563 = vst.msk [vmem:[%s562] ss:$8 sm:$0xf] %vm561, %v560
  %s564 = scalar_lea.vmem %s1, 132
  %565 = vst.msk [vmem:[%s564] ss:$8 sm:$0xf0] %vm561, %v560
  %s566 = scalar_lea.vmem %s0, 24
  %v567 = vld [vmem:[%s566] sm:$0xff]
  %568 = vrot.lane.b32.xlu0 %v567, 96
  %v569 = vpop.permute.xlu0 %568
  %vm570 = vcmask 64512
  %s571 = scalar_lea.vmem %s1, 196
  %572 = vst.msk [vmem:[%s571] ss:$8 sm:$0xf] %vm570, %v569
  %s573 = scalar_lea.vmem %s1, 196
  %574 = vst.msk [vmem:[%s573] ss:$8 sm:$0xf0] %vm570, %v569
  %s575 = scalar_lea.vmem %s0, 32
  %v576 = vld [vmem:[%s575] sm:$0xff]
  %577 = vrot.lane.b32.xlu0 %v576, 96
  %v578 = vpop.permute.xlu0 %577
  %vm579 = vcmask 64512
  %s580 = scalar_lea.vmem %s1, 260
  %581 = vst.msk [vmem:[%s580] ss:$8 sm:$0xf] %vm579, %v578
  %s582 = scalar_lea.vmem %s1, 260
  %583 = vst.msk [vmem:[%s582] ss:$8 sm:$0xf0] %vm579, %v578
  %s584 = scalar_lea.vmem %s0, 40
  %v585 = vld [vmem:[%s584] sm:$0xff]
  %586 = vrot.lane.b32.xlu0 %v585, 96
  %v587 = vpop.permute.xlu0 %586
  %vm588 = vcmask 64512
  %s589 = scalar_lea.vmem %s1, 324
  %590 = vst.msk [vmem:[%s589] ss:$8 sm:$0xf] %vm588, %v587
  %s591 = scalar_lea.vmem %s1, 324
  %592 = vst.msk [vmem:[%s591] ss:$8 sm:$0xf0] %vm588, %v587
  %s593 = scalar_lea.vmem %s0, 48
  %v594 = vld [vmem:[%s593] sm:$0xff]
  %595 = vrot.lane.b32.xlu0 %v594, 96
  %v596 = vpop.permute.xlu0 %595
  %vm597 = vcmask 64512
  %s598 = scalar_lea.vmem %s1, 388
  %599 = vst.msk [vmem:[%s598] ss:$8 sm:$0xf] %vm597, %v596
  %s600 = scalar_lea.vmem %s1, 388
  %601 = vst.msk [vmem:[%s600] ss:$8 sm:$0xf0] %vm597, %v596
  %s602 = scalar_lea.vmem %s0, 56
  %v603 = vld [vmem:[%s602] sm:$0xff]
  %604 = vrot.lane.b32.xlu0 %v603, 96
  %v605 = vpop.permute.xlu0 %604
  %vm606 = vcmask 64512
  %s607 = scalar_lea.vmem %s1, 452
  %608 = vst.msk [vmem:[%s607] ss:$8 sm:$0xf] %vm606, %v605
  %s609 = scalar_lea.vmem %s1, 452
  %610 = vst.msk [vmem:[%s609] ss:$8 sm:$0xf0] %vm606, %v605
  %s611 = scalar_lea.vmem %s0, 64
  %v612 = vld [vmem:[%s611] sm:$0xff]
  %613 = vrot.lane.b32.xlu0 %v612, 96
  %v614 = vpop.permute.xlu0 %613
  %vm615 = vcmask 64512
  %s616 = scalar_lea.vmem %s1, 516
  %617 = vst.msk [vmem:[%s616] ss:$8 sm:$0xf] %vm615, %v614
  %s618 = scalar_lea.vmem %s1, 516
  %619 = vst.msk [vmem:[%s618] ss:$8 sm:$0xf0] %vm615, %v614
  %s620 = scalar_lea.vmem %s0, 72
  %v621 = vld [vmem:[%s620] sm:$0xff]
  %622 = vrot.lane.b32.xlu0 %v621, 96
  %v623 = vpop.permute.xlu0 %622
  %vm624 = vcmask 64512
  %s625 = scalar_lea.vmem %s1, 580
  %626 = vst.msk [vmem:[%s625] ss:$8 sm:$0xf] %vm624, %v623
  %s627 = scalar_lea.vmem %s1, 580
  %628 = vst.msk [vmem:[%s627] ss:$8 sm:$0xf0] %vm624, %v623
  %s629 = scalar_lea.vmem %s0, 80
  %v630 = vld [vmem:[%s629] sm:$0xff]
  %631 = vrot.lane.b32.xlu0 %v630, 96
  %v632 = vpop.permute.xlu0 %631
  %vm633 = vcmask 64512
  %s634 = scalar_lea.vmem %s1, 644
  %635 = vst.msk [vmem:[%s634] ss:$8 sm:$0xf] %vm633, %v632
  %s636 = scalar_lea.vmem %s1, 644
  %637 = vst.msk [vmem:[%s636] ss:$8 sm:$0xf0] %vm633, %v632
  %s638 = scalar_lea.vmem %s0, 88
  %v639 = vld [vmem:[%s638] sm:$0xff]
  %640 = vrot.lane.b32.xlu0 %v639, 96
  %v641 = vpop.permute.xlu0 %640
  %vm642 = vcmask 64512
  %s643 = scalar_lea.vmem %s1, 708
  %644 = vst.msk [vmem:[%s643] ss:$8 sm:$0xf] %vm642, %v641
  %s645 = scalar_lea.vmem %s1, 708
  %646 = vst.msk [vmem:[%s645] ss:$8 sm:$0xf0] %vm642, %v641
  %s647 = scalar_lea.vmem %s0, 96
  %v648 = vld [vmem:[%s647] sm:$0xff]
  %649 = vrot.lane.b32.xlu0 %v648, 96
  %v650 = vpop.permute.xlu0 %649
  %vm651 = vcmask 64512
  %s652 = scalar_lea.vmem %s1, 772
  %653 = vst.msk [vmem:[%s652] ss:$8 sm:$0xf] %vm651, %v650
  %s654 = scalar_lea.vmem %s1, 772
  %655 = vst.msk [vmem:[%s654] ss:$8 sm:$0xf0] %vm651, %v650
  %s656 = scalar_lea.vmem %s0, 104
  %v657 = vld [vmem:[%s656] sm:$0xff]
  %658 = vrot.lane.b32.xlu0 %v657, 96
  %v659 = vpop.permute.xlu0 %658
  %vm660 = vcmask 64512
  %s661 = scalar_lea.vmem %s1, 836
  %662 = vst.msk [vmem:[%s661] ss:$8 sm:$0xf] %vm660, %v659
  %s663 = scalar_lea.vmem %s1, 836
  %664 = vst.msk [vmem:[%s663] ss:$8 sm:$0xf0] %vm660, %v659
  %s665 = scalar_lea.vmem %s0, 112
  %v666 = vld [vmem:[%s665] sm:$0xff]
  %667 = vrot.lane.b32.xlu0 %v666, 96
  %v668 = vpop.permute.xlu0 %667
  %vm669 = vcmask 64512
  %s670 = scalar_lea.vmem %s1, 900
  %671 = vst.msk [vmem:[%s670] ss:$8 sm:$0xf] %vm669, %v668
  %s672 = scalar_lea.vmem %s1, 900
  %673 = vst.msk [vmem:[%s672] ss:$8 sm:$0xf0] %vm669, %v668
  %s674 = scalar_lea.vmem %s0, 120
  %v675 = vld [vmem:[%s674] sm:$0xff]
  %676 = vrot.lane.b32.xlu0 %v675, 96
  %v677 = vpop.permute.xlu0 %676
  %vm678 = vcmask 64512
  %s679 = scalar_lea.vmem %s1, 964
  %680 = vst.msk [vmem:[%s679] ss:$8 sm:$0xf] %vm678, %v677
  %s681 = scalar_lea.vmem %s1, 964
  %682 = vst.msk [vmem:[%s681] ss:$8 sm:$0xf0] %vm678, %v677
  %v683 = vld [vmem:[%s0] sm:$0xff]
  %684 = vrot.lane.b32.xlu0 %v683, 88
  %v685 = vpop.permute.xlu0 %684
  %vm686 = vcmask 64512
  %s687 = scalar_lea.vmem %s1, 5
  %688 = vst.msk [vmem:[%s687] ss:$8 sm:$0xf] %vm686, %v685
  %s689 = scalar_lea.vmem %s1, 5
  %690 = vst.msk [vmem:[%s689] ss:$8 sm:$0xf0] %vm686, %v685
  %s691 = scalar_lea.vmem %s0, 8
  %v692 = vld [vmem:[%s691] sm:$0xff]
  %693 = vrot.lane.b32.xlu0 %v692, 88
  %v694 = vpop.permute.xlu0 %693
  %vm695 = vcmask 64512
  %s696 = scalar_lea.vmem %s1, 69
  %697 = vst.msk [vmem:[%s696] ss:$8 sm:$0xf] %vm695, %v694
  %s698 = scalar_lea.vmem %s1, 69
  %699 = vst.msk [vmem:[%s698] ss:$8 sm:$0xf0] %vm695, %v694
  %s700 = scalar_lea.vmem %s0, 16
  %v701 = vld [vmem:[%s700] sm:$0xff]
  %702 = vrot.lane.b32.xlu0 %v701, 88
  %v703 = vpop.permute.xlu0 %702
  %vm704 = vcmask 64512
  %s705 = scalar_lea.vmem %s1, 133
  %706 = vst.msk [vmem:[%s705] ss:$8 sm:$0xf] %vm704, %v703
  %s707 = scalar_lea.vmem %s1, 133
  %708 = vst.msk [vmem:[%s707] ss:$8 sm:$0xf0] %vm704, %v703
  %s709 = scalar_lea.vmem %s0, 24
  %v710 = vld [vmem:[%s709] sm:$0xff]
  %711 = vrot.lane.b32.xlu0 %v710, 88
  %v712 = vpop.permute.xlu0 %711
  %vm713 = vcmask 64512
  %s714 = scalar_lea.vmem %s1, 197
  %715 = vst.msk [vmem:[%s714] ss:$8 sm:$0xf] %vm713, %v712
  %s716 = scalar_lea.vmem %s1, 197
  %717 = vst.msk [vmem:[%s716] ss:$8 sm:$0xf0] %vm713, %v712
  %s718 = scalar_lea.vmem %s0, 32
  %v719 = vld [vmem:[%s718] sm:$0xff]
  %720 = vrot.lane.b32.xlu0 %v719, 88
  %v721 = vpop.permute.xlu0 %720
  %vm722 = vcmask 64512
  %s723 = scalar_lea.vmem %s1, 261
  %724 = vst.msk [vmem:[%s723] ss:$8 sm:$0xf] %vm722, %v721
  %s725 = scalar_lea.vmem %s1, 261
  %726 = vst.msk [vmem:[%s725] ss:$8 sm:$0xf0] %vm722, %v721
  %s727 = scalar_lea.vmem %s0, 40
  %v728 = vld [vmem:[%s727] sm:$0xff]
  %729 = vrot.lane.b32.xlu0 %v728, 88
  %v730 = vpop.permute.xlu0 %729
  %vm731 = vcmask 64512
  %s732 = scalar_lea.vmem %s1, 325
  %733 = vst.msk [vmem:[%s732] ss:$8 sm:$0xf] %vm731, %v730
  %s734 = scalar_lea.vmem %s1, 325
  %735 = vst.msk [vmem:[%s734] ss:$8 sm:$0xf0] %vm731, %v730
  %s736 = scalar_lea.vmem %s0, 48
  %v737 = vld [vmem:[%s736] sm:$0xff]
  %738 = vrot.lane.b32.xlu0 %v737, 88
  %v739 = vpop.permute.xlu0 %738
  %vm740 = vcmask 64512
  %s741 = scalar_lea.vmem %s1, 389
  %742 = vst.msk [vmem:[%s741] ss:$8 sm:$0xf] %vm740, %v739
  %s743 = scalar_lea.vmem %s1, 389
  %744 = vst.msk [vmem:[%s743] ss:$8 sm:$0xf0] %vm740, %v739
  %s745 = scalar_lea.vmem %s0, 56
  %v746 = vld [vmem:[%s745] sm:$0xff]
  %747 = vrot.lane.b32.xlu0 %v746, 88
  %v748 = vpop.permute.xlu0 %747
  %vm749 = vcmask 64512
  %s750 = scalar_lea.vmem %s1, 453
  %751 = vst.msk [vmem:[%s750] ss:$8 sm:$0xf] %vm749, %v748
  %s752 = scalar_lea.vmem %s1, 453
  %753 = vst.msk [vmem:[%s752] ss:$8 sm:$0xf0] %vm749, %v748
  %s754 = scalar_lea.vmem %s0, 64
  %v755 = vld [vmem:[%s754] sm:$0xff]
  %756 = vrot.lane.b32.xlu0 %v755, 88
  %v757 = vpop.permute.xlu0 %756
  %vm758 = vcmask 64512
  %s759 = scalar_lea.vmem %s1, 517
  %760 = vst.msk [vmem:[%s759] ss:$8 sm:$0xf] %vm758, %v757
  %s761 = scalar_lea.vmem %s1, 517
  %762 = vst.msk [vmem:[%s761] ss:$8 sm:$0xf0] %vm758, %v757
  %s763 = scalar_lea.vmem %s0, 72
  %v764 = vld [vmem:[%s763] sm:$0xff]
  %765 = vrot.lane.b32.xlu0 %v764, 88
  %v766 = vpop.permute.xlu0 %765
  %vm767 = vcmask 64512
  %s768 = scalar_lea.vmem %s1, 581
  %769 = vst.msk [vmem:[%s768] ss:$8 sm:$0xf] %vm767, %v766
  %s770 = scalar_lea.vmem %s1, 581
  %771 = vst.msk [vmem:[%s770] ss:$8 sm:$0xf0] %vm767, %v766
  %s772 = scalar_lea.vmem %s0, 80
  %v773 = vld [vmem:[%s772] sm:$0xff]
  %774 = vrot.lane.b32.xlu0 %v773, 88
  %v775 = vpop.permute.xlu0 %774
  %vm776 = vcmask 64512
  %s777 = scalar_lea.vmem %s1, 645
  %778 = vst.msk [vmem:[%s777] ss:$8 sm:$0xf] %vm776, %v775
  %s779 = scalar_lea.vmem %s1, 645
  %780 = vst.msk [vmem:[%s779] ss:$8 sm:$0xf0] %vm776, %v775
  %s781 = scalar_lea.vmem %s0, 88
  %v782 = vld [vmem:[%s781] sm:$0xff]
  %783 = vrot.lane.b32.xlu0 %v782, 88
  %v784 = vpop.permute.xlu0 %783
  %vm785 = vcmask 64512
  %s786 = scalar_lea.vmem %s1, 709
  %787 = vst.msk [vmem:[%s786] ss:$8 sm:$0xf] %vm785, %v784
  %s788 = scalar_lea.vmem %s1, 709
  %789 = vst.msk [vmem:[%s788] ss:$8 sm:$0xf0] %vm785, %v784
  %s790 = scalar_lea.vmem %s0, 96
  %v791 = vld [vmem:[%s790] sm:$0xff]
  %792 = vrot.lane.b32.xlu0 %v791, 88
  %v793 = vpop.permute.xlu0 %792
  %vm794 = vcmask 64512
  %s795 = scalar_lea.vmem %s1, 773
  %796 = vst.msk [vmem:[%s795] ss:$8 sm:$0xf] %vm794, %v793
  %s797 = scalar_lea.vmem %s1, 773
  %798 = vst.msk [vmem:[%s797] ss:$8 sm:$0xf0] %vm794, %v793
  %s799 = scalar_lea.vmem %s0, 104
  %v800 = vld [vmem:[%s799] sm:$0xff]
  %801 = vrot.lane.b32.xlu0 %v800, 88
  %v802 = vpop.permute.xlu0 %801
  %vm803 = vcmask 64512
  %s804 = scalar_lea.vmem %s1, 837
  %805 = vst.msk [vmem:[%s804] ss:$8 sm:$0xf] %vm803, %v802
  %s806 = scalar_lea.vmem %s1, 837
  %807 = vst.msk [vmem:[%s806] ss:$8 sm:$0xf0] %vm803, %v802
  %s808 = scalar_lea.vmem %s0, 112
  %v809 = vld [vmem:[%s808] sm:$0xff]
  %810 = vrot.lane.b32.xlu0 %v809, 88
  %v811 = vpop.permute.xlu0 %810
  %vm812 = vcmask 64512
  %s813 = scalar_lea.vmem %s1, 901
  %814 = vst.msk [vmem:[%s813] ss:$8 sm:$0xf] %vm812, %v811
  %s815 = scalar_lea.vmem %s1, 901
  %816 = vst.msk [vmem:[%s815] ss:$8 sm:$0xf0] %vm812, %v811
  %s817 = scalar_lea.vmem %s0, 120
  %v818 = vld [vmem:[%s817] sm:$0xff]
  %819 = vrot.lane.b32.xlu0 %v818, 88
  %v820 = vpop.permute.xlu0 %819
  %vm821 = vcmask 64512
  %s822 = scalar_lea.vmem %s1, 965
  %823 = vst.msk [vmem:[%s822] ss:$8 sm:$0xf] %vm821, %v820
  %s824 = scalar_lea.vmem %s1, 965
  %825 = vst.msk [vmem:[%s824] ss:$8 sm:$0xf0] %vm821, %v820
  %v826 = vld [vmem:[%s0] sm:$0xff]
  %827 = vrot.lane.b32.xlu0 %v826, 80
  %v828 = vpop.permute.xlu0 %827
  %vm829 = vcmask 64512
  %s830 = scalar_lea.vmem %s1, 6
  %831 = vst.msk [vmem:[%s830] ss:$8 sm:$0xf] %vm829, %v828
  %s832 = scalar_lea.vmem %s1, 6
  %833 = vst.msk [vmem:[%s832] ss:$8 sm:$0xf0] %vm829, %v828
  %s834 = scalar_lea.vmem %s0, 8
  %v835 = vld [vmem:[%s834] sm:$0xff]
  %836 = vrot.lane.b32.xlu0 %v835, 80
  %v837 = vpop.permute.xlu0 %836
  %vm838 = vcmask 64512
  %s839 = scalar_lea.vmem %s1, 70
  %840 = vst.msk [vmem:[%s839] ss:$8 sm:$0xf] %vm838, %v837
  %s841 = scalar_lea.vmem %s1, 70
  %842 = vst.msk [vmem:[%s841] ss:$8 sm:$0xf0] %vm838, %v837
  %s843 = scalar_lea.vmem %s0, 16
  %v844 = vld [vmem:[%s843] sm:$0xff]
  %845 = vrot.lane.b32.xlu0 %v844, 80
  %v846 = vpop.permute.xlu0 %845
  %vm847 = vcmask 64512
  %s848 = scalar_lea.vmem %s1, 134
  %849 = vst.msk [vmem:[%s848] ss:$8 sm:$0xf] %vm847, %v846
  %s850 = scalar_lea.vmem %s1, 134
  %851 = vst.msk [vmem:[%s850] ss:$8 sm:$0xf0] %vm847, %v846
  %s852 = scalar_lea.vmem %s0, 24
  %v853 = vld [vmem:[%s852] sm:$0xff]
  %854 = vrot.lane.b32.xlu0 %v853, 80
  %v855 = vpop.permute.xlu0 %854
  %vm856 = vcmask 64512
  %s857 = scalar_lea.vmem %s1, 198
  %858 = vst.msk [vmem:[%s857] ss:$8 sm:$0xf] %vm856, %v855
  %s859 = scalar_lea.vmem %s1, 198
  %860 = vst.msk [vmem:[%s859] ss:$8 sm:$0xf0] %vm856, %v855
  %s861 = scalar_lea.vmem %s0, 32
  %v862 = vld [vmem:[%s861] sm:$0xff]
  %863 = vrot.lane.b32.xlu0 %v862, 80
  %v864 = vpop.permute.xlu0 %863
  %vm865 = vcmask 64512
  %s866 = scalar_lea.vmem %s1, 262
  %867 = vst.msk [vmem:[%s866] ss:$8 sm:$0xf] %vm865, %v864
  %s868 = scalar_lea.vmem %s1, 262
  %869 = vst.msk [vmem:[%s868] ss:$8 sm:$0xf0] %vm865, %v864
  %s870 = scalar_lea.vmem %s0, 40
  %v871 = vld [vmem:[%s870] sm:$0xff]
  %872 = vrot.lane.b32.xlu0 %v871, 80
  %v873 = vpop.permute.xlu0 %872
  %vm874 = vcmask 64512
  %s875 = scalar_lea.vmem %s1, 326
  %876 = vst.msk [vmem:[%s875] ss:$8 sm:$0xf] %vm874, %v873
  %s877 = scalar_lea.vmem %s1, 326
  %878 = vst.msk [vmem:[%s877] ss:$8 sm:$0xf0] %vm874, %v873
  %s879 = scalar_lea.vmem %s0, 48
  %v880 = vld [vmem:[%s879] sm:$0xff]
  %881 = vrot.lane.b32.xlu0 %v880, 80
  %v882 = vpop.permute.xlu0 %881
  %vm883 = vcmask 64512
  %s884 = scalar_lea.vmem %s1, 390
  %885 = vst.msk [vmem:[%s884] ss:$8 sm:$0xf] %vm883, %v882
  %s886 = scalar_lea.vmem %s1, 390
  %887 = vst.msk [vmem:[%s886] ss:$8 sm:$0xf0] %vm883, %v882
  %s888 = scalar_lea.vmem %s0, 56
  %v889 = vld [vmem:[%s888] sm:$0xff]
  %890 = vrot.lane.b32.xlu0 %v889, 80
  %v891 = vpop.permute.xlu0 %890
  %vm892 = vcmask 64512
  %s893 = scalar_lea.vmem %s1, 454
  %894 = vst.msk [vmem:[%s893] ss:$8 sm:$0xf] %vm892, %v891
  %s895 = scalar_lea.vmem %s1, 454
  %896 = vst.msk [vmem:[%s895] ss:$8 sm:$0xf0] %vm892, %v891
  %s897 = scalar_lea.vmem %s0, 64
  %v898 = vld [vmem:[%s897] sm:$0xff]
  %899 = vrot.lane.b32.xlu0 %v898, 80
  %v900 = vpop.permute.xlu0 %899
  %vm901 = vcmask 64512
  %s902 = scalar_lea.vmem %s1, 518
  %903 = vst.msk [vmem:[%s902] ss:$8 sm:$0xf] %vm901, %v900
  %s904 = scalar_lea.vmem %s1, 518
  %905 = vst.msk [vmem:[%s904] ss:$8 sm:$0xf0] %vm901, %v900
  %s906 = scalar_lea.vmem %s0, 72
  %v907 = vld [vmem:[%s906] sm:$0xff]
  %908 = vrot.lane.b32.xlu0 %v907, 80
  %v909 = vpop.permute.xlu0 %908
  %vm910 = vcmask 64512
  %s911 = scalar_lea.vmem %s1, 582
  %912 = vst.msk [vmem:[%s911] ss:$8 sm:$0xf] %vm910, %v909
  %s913 = scalar_lea.vmem %s1, 582
  %914 = vst.msk [vmem:[%s913] ss:$8 sm:$0xf0] %vm910, %v909
  %s915 = scalar_lea.vmem %s0, 80
  %v916 = vld [vmem:[%s915] sm:$0xff]
  %917 = vrot.lane.b32.xlu0 %v916, 80
  %v918 = vpop.permute.xlu0 %917
  %vm919 = vcmask 64512
  %s920 = scalar_lea.vmem %s1, 646
  %921 = vst.msk [vmem:[%s920] ss:$8 sm:$0xf] %vm919, %v918
  %s922 = scalar_lea.vmem %s1, 646
  %923 = vst.msk [vmem:[%s922] ss:$8 sm:$0xf0] %vm919, %v918
  %s924 = scalar_lea.vmem %s0, 88
  %v925 = vld [vmem:[%s924] sm:$0xff]
  %926 = vrot.lane.b32.xlu0 %v925, 80
  %v927 = vpop.permute.xlu0 %926
  %vm928 = vcmask 64512
  %s929 = scalar_lea.vmem %s1, 710
  %930 = vst.msk [vmem:[%s929] ss:$8 sm:$0xf] %vm928, %v927
  %s931 = scalar_lea.vmem %s1, 710
  %932 = vst.msk [vmem:[%s931] ss:$8 sm:$0xf0] %vm928, %v927
  %s933 = scalar_lea.vmem %s0, 96
  %v934 = vld [vmem:[%s933] sm:$0xff]
  %935 = vrot.lane.b32.xlu0 %v934, 80
  %v936 = vpop.permute.xlu0 %935
  %vm937 = vcmask 64512
  %s938 = scalar_lea.vmem %s1, 774
  %939 = vst.msk [vmem:[%s938] ss:$8 sm:$0xf] %vm937, %v936
  %s940 = scalar_lea.vmem %s1, 774
  %941 = vst.msk [vmem:[%s940] ss:$8 sm:$0xf0] %vm937, %v936
  %s942 = scalar_lea.vmem %s0, 104
  %v943 = vld [vmem:[%s942] sm:$0xff]
  %944 = vrot.lane.b32.xlu0 %v943, 80
  %v945 = vpop.permute.xlu0 %944
  %vm946 = vcmask 64512
  %s947 = scalar_lea.vmem %s1, 838
  %948 = vst.msk [vmem:[%s947] ss:$8 sm:$0xf] %vm946, %v945
  %s949 = scalar_lea.vmem %s1, 838
  %950 = vst.msk [vmem:[%s949] ss:$8 sm:$0xf0] %vm946, %v945
  %s951 = scalar_lea.vmem %s0, 112
  %v952 = vld [vmem:[%s951] sm:$0xff]
  %953 = vrot.lane.b32.xlu0 %v952, 80
  %v954 = vpop.permute.xlu0 %953
  %vm955 = vcmask 64512
  %s956 = scalar_lea.vmem %s1, 902
  %957 = vst.msk [vmem:[%s956] ss:$8 sm:$0xf] %vm955, %v954
  %s958 = scalar_lea.vmem %s1, 902
  %959 = vst.msk [vmem:[%s958] ss:$8 sm:$0xf0] %vm955, %v954
  %s960 = scalar_lea.vmem %s0, 120
  %v961 = vld [vmem:[%s960] sm:$0xff]
  %962 = vrot.lane.b32.xlu0 %v961, 80
  %v963 = vpop.permute.xlu0 %962
  %vm964 = vcmask 64512
  %s965 = scalar_lea.vmem %s1, 966
  %966 = vst.msk [vmem:[%s965] ss:$8 sm:$0xf] %vm964, %v963
  %s967 = scalar_lea.vmem %s1, 966
  %968 = vst.msk [vmem:[%s967] ss:$8 sm:$0xf0] %vm964, %v963
  %v969 = vld [vmem:[%s0] sm:$0xff]
  %970 = vrot.lane.b32.xlu0 %v969, 72
  %v971 = vpop.permute.xlu0 %970
  %vm972 = vcmask 64512
  %s973 = scalar_lea.vmem %s1, 7
  %974 = vst.msk [vmem:[%s973] ss:$8 sm:$0xf] %vm972, %v971
  %s975 = scalar_lea.vmem %s1, 7
  %976 = vst.msk [vmem:[%s975] ss:$8 sm:$0xf0] %vm972, %v971
  %s977 = scalar_lea.vmem %s0, 8
  %v978 = vld [vmem:[%s977] sm:$0xff]
  %979 = vrot.lane.b32.xlu0 %v978, 72
  %v980 = vpop.permute.xlu0 %979
  %vm981 = vcmask 64512
  %s982 = scalar_lea.vmem %s1, 71
  %983 = vst.msk [vmem:[%s982] ss:$8 sm:$0xf] %vm981, %v980
  %s984 = scalar_lea.vmem %s1, 71
  %985 = vst.msk [vmem:[%s984] ss:$8 sm:$0xf0] %vm981, %v980
  %s986 = scalar_lea.vmem %s0, 16
  %v987 = vld [vmem:[%s986] sm:$0xff]
  %988 = vrot.lane.b32.xlu0 %v987, 72
  %v989 = vpop.permute.xlu0 %988
  %vm990 = vcmask 64512
  %s991 = scalar_lea.vmem %s1, 135
  %992 = vst.msk [vmem:[%s991] ss:$8 sm:$0xf] %vm990, %v989
  %s993 = scalar_lea.vmem %s1, 135
  %994 = vst.msk [vmem:[%s993] ss:$8 sm:$0xf0] %vm990, %v989
  %s995 = scalar_lea.vmem %s0, 24
  %v996 = vld [vmem:[%s995] sm:$0xff]
  %997 = vrot.lane.b32.xlu0 %v996, 72
  %v998 = vpop.permute.xlu0 %997
  %vm999 = vcmask 64512
  %s1000 = scalar_lea.vmem %s1, 199
  %1001 = vst.msk [vmem:[%s1000] ss:$8 sm:$0xf] %vm999, %v998
  %s1002 = scalar_lea.vmem %s1, 199
  %1003 = vst.msk [vmem:[%s1002] ss:$8 sm:$0xf0] %vm999, %v998
  %s1004 = scalar_lea.vmem %s0, 32
  %v1005 = vld [vmem:[%s1004] sm:$0xff]
  %1006 = vrot.lane.b32.xlu0 %v1005, 72
  %v1007 = vpop.permute.xlu0 %1006
  %vm1008 = vcmask 64512
  %s1009 = scalar_lea.vmem %s1, 263
  %1010 = vst.msk [vmem:[%s1009] ss:$8 sm:$0xf] %vm1008, %v1007
  %s1011 = scalar_lea.vmem %s1, 263
  %1012 = vst.msk [vmem:[%s1011] ss:$8 sm:$0xf0] %vm1008, %v1007
  %s1013 = scalar_lea.vmem %s0, 40
  %v1014 = vld [vmem:[%s1013] sm:$0xff]
  %1015 = vrot.lane.b32.xlu0 %v1014, 72
  %v1016 = vpop.permute.xlu0 %1015
  %vm1017 = vcmask 64512
  %s1018 = scalar_lea.vmem %s1, 327
  %1019 = vst.msk [vmem:[%s1018] ss:$8 sm:$0xf] %vm1017, %v1016
  %s1020 = scalar_lea.vmem %s1, 327
  %1021 = vst.msk [vmem:[%s1020] ss:$8 sm:$0xf0] %vm1017, %v1016
  %s1022 = scalar_lea.vmem %s0, 48
  %v1023 = vld [vmem:[%s1022] sm:$0xff]
  %1024 = vrot.lane.b32.xlu0 %v1023, 72
  %v1025 = vpop.permute.xlu0 %1024
  %vm1026 = vcmask 64512
  %s1027 = scalar_lea.vmem %s1, 391
  %1028 = vst.msk [vmem:[%s1027] ss:$8 sm:$0xf] %vm1026, %v1025
  %s1029 = scalar_lea.vmem %s1, 391
  %1030 = vst.msk [vmem:[%s1029] ss:$8 sm:$0xf0] %vm1026, %v1025
  %s1031 = scalar_lea.vmem %s0, 56
  %v1032 = vld [vmem:[%s1031] sm:$0xff]
  %1033 = vrot.lane.b32.xlu0 %v1032, 72
  %v1034 = vpop.permute.xlu0 %1033
  %vm1035 = vcmask 64512
  %s1036 = scalar_lea.vmem %s1, 455
  %1037 = vst.msk [vmem:[%s1036] ss:$8 sm:$0xf] %vm1035, %v1034
  %s1038 = scalar_lea.vmem %s1, 455
  %1039 = vst.msk [vmem:[%s1038] ss:$8 sm:$0xf0] %vm1035, %v1034
  %s1040 = scalar_lea.vmem %s0, 64
  %v1041 = vld [vmem:[%s1040] sm:$0xff]
  %1042 = vrot.lane.b32.xlu0 %v1041, 72
  %v1043 = vpop.permute.xlu0 %1042
  %vm1044 = vcmask 64512
  %s1045 = scalar_lea.vmem %s1, 519
  %1046 = vst.msk [vmem:[%s1045] ss:$8 sm:$0xf] %vm1044, %v1043
  %s1047 = scalar_lea.vmem %s1, 519
  %1048 = vst.msk [vmem:[%s1047] ss:$8 sm:$0xf0] %vm1044, %v1043
  %s1049 = scalar_lea.vmem %s0, 72
  %v1050 = vld [vmem:[%s1049] sm:$0xff]
  %1051 = vrot.lane.b32.xlu0 %v1050, 72
  %v1052 = vpop.permute.xlu0 %1051
  %vm1053 = vcmask 64512
  %s1054 = scalar_lea.vmem %s1, 583
  %1055 = vst.msk [vmem:[%s1054] ss:$8 sm:$0xf] %vm1053, %v1052
  %s1056 = scalar_lea.vmem %s1, 583
  %1057 = vst.msk [vmem:[%s1056] ss:$8 sm:$0xf0] %vm1053, %v1052
  %s1058 = scalar_lea.vmem %s0, 80
  %v1059 = vld [vmem:[%s1058] sm:$0xff]
  %1060 = vrot.lane.b32.xlu0 %v1059, 72
  %v1061 = vpop.permute.xlu0 %1060
  %vm1062 = vcmask 64512
  %s1063 = scalar_lea.vmem %s1, 647
  %1064 = vst.msk [vmem:[%s1063] ss:$8 sm:$0xf] %vm1062, %v1061
  %s1065 = scalar_lea.vmem %s1, 647
  %1066 = vst.msk [vmem:[%s1065] ss:$8 sm:$0xf0] %vm1062, %v1061
  %s1067 = scalar_lea.vmem %s0, 88
  %v1068 = vld [vmem:[%s1067] sm:$0xff]
  %1069 = vrot.lane.b32.xlu0 %v1068, 72
  %v1070 = vpop.permute.xlu0 %1069
  %vm1071 = vcmask 64512
  %s1072 = scalar_lea.vmem %s1, 711
  %1073 = vst.msk [vmem:[%s1072] ss:$8 sm:$0xf] %vm1071, %v1070
  %s1074 = scalar_lea.vmem %s1, 711
  %1075 = vst.msk [vmem:[%s1074] ss:$8 sm:$0xf0] %vm1071, %v1070
  %s1076 = scalar_lea.vmem %s0, 96
  %v1077 = vld [vmem:[%s1076] sm:$0xff]
  %1078 = vrot.lane.b32.xlu0 %v1077, 72
  %v1079 = vpop.permute.xlu0 %1078
  %vm1080 = vcmask 64512
  %s1081 = scalar_lea.vmem %s1, 775
  %1082 = vst.msk [vmem:[%s1081] ss:$8 sm:$0xf] %vm1080, %v1079
  %s1083 = scalar_lea.vmem %s1, 775
  %1084 = vst.msk [vmem:[%s1083] ss:$8 sm:$0xf0] %vm1080, %v1079
  %s1085 = scalar_lea.vmem %s0, 104
  %v1086 = vld [vmem:[%s1085] sm:$0xff]
  %1087 = vrot.lane.b32.xlu0 %v1086, 72
  %v1088 = vpop.permute.xlu0 %1087
  %vm1089 = vcmask 64512
  %s1090 = scalar_lea.vmem %s1, 839
  %1091 = vst.msk [vmem:[%s1090] ss:$8 sm:$0xf] %vm1089, %v1088
  %s1092 = scalar_lea.vmem %s1, 839
  %1093 = vst.msk [vmem:[%s1092] ss:$8 sm:$0xf0] %vm1089, %v1088
  %s1094 = scalar_lea.vmem %s0, 112
  %v1095 = vld [vmem:[%s1094] sm:$0xff]
  %1096 = vrot.lane.b32.xlu0 %v1095, 72
  %v1097 = vpop.permute.xlu0 %1096
  %vm1098 = vcmask 64512
  %s1099 = scalar_lea.vmem %s1, 903
  %1100 = vst.msk [vmem:[%s1099] ss:$8 sm:$0xf] %vm1098, %v1097
  %s1101 = scalar_lea.vmem %s1, 903
  %1102 = vst.msk [vmem:[%s1101] ss:$8 sm:$0xf0] %vm1098, %v1097
  %s1103 = scalar_lea.vmem %s0, 120
  %v1104 = vld [vmem:[%s1103] sm:$0xff]
  %1105 = vrot.lane.b32.xlu0 %v1104, 72
  %v1106 = vpop.permute.xlu0 %1105
  %vm1107 = vcmask 64512
  %s1108 = scalar_lea.vmem %s1, 967
  %1109 = vst.msk [vmem:[%s1108] ss:$8 sm:$0xf] %vm1107, %v1106
  %s1110 = scalar_lea.vmem %s1, 967
  %1111 = vst.msk [vmem:[%s1110] ss:$8 sm:$0xf0] %vm1107, %v1106

// kernel: transmamba_forward.1
$region0: #{transmamba_forward.1}
  #allocation0 [shape = 'u32[]', space=smem, size = 0x4, offset = 0x4, fixed_abs, tag = 'smem constant byte address 0x4 - core index']
  #allocation1 [shape = 'u32[72,128]{1,0:T(1,128)}', space=vmem, size = 0x9000, scoped, tag = 'internal scratch']
  #allocation2 [shape = 's32[1]{0}', space=sflag, size = 0x4, scoped, tag = 'scoped memory for transmamba_forward.1']
  #allocation3 [shape = 'u8[512]{0}', space=smem, size = 0x200, scoped, tag = 'prefetched SMEM operand 0']
  %s0 = inlined_call_operand.vmem [shape: s32[3], index: 0, kind: input, shape index: {}]
  %s1 = inlined_call_operand.vmem [shape: f32[3,64,8], index: 1, kind: input, shape index: {}]
  %s2 = inlined_call_operand.vmem [shape: f32[3,3,8,32], index: 2, kind: input, shape index: {}]
  %s3 = inlined_call_operand.vmem [shape: f32[3,64,32], index: 3, kind: input, shape index: {}]
  %s4 = inlined_call_operand.vmem [shape: f32[1,32,32], index: 4, kind: input, shape index: {}]
  %s5 = inlined_call_operand.vmem [shape: f32[1,1,32], index: 5, kind: input, shape index: {}]
  %s6 = inlined_call_operand.vmem [shape: f32[1,32,32], index: 6, kind: input, shape index: {}]
  %s7 = inlined_call_operand.vmem [shape: f32[1,1,32], index: 7, kind: input, shape index: {}]
  %s8 = inlined_call_operand.vmem [shape: f32[3,1,2,64,128], index: 8, kind: output, shape index: {}]
  %s9 = sld [smem:[#allocation0]]
  $region61: #{transmamba_forward.1} parent=0
    _
  %s11 = ssub.s32 1, %s9
  %s12 = scalar_select 0, %s11, %s9
  %s14 = sshll.u32 %s0, 4
  %s15 = int_to_ptr.vmem [resolvable:$true] %s14
  %17 = dma.vmem_to_smem %s15, 16, [#allocation3], [#allocation2]
  %19 = dma.done [#allocation2], 16
  %20 = sfence
  loop: start=0, step=1, limit=5
  $region2: #{transmamba_forward.1} parent=0 // loop_pre_header
    _
  $region3: #{transmamba_forward.1} parent=0 // loop_header
    %s22 = sphi 0, %s26
    %p23 = scmp.ge.s32.totalorder %s22, 5
    %s32 = sphi 0, %s34
    %s35 = sphi 0, %s32
    %s36 = sphi 0, %s35
    %s52 = sphi 0, %s36
    %s58 = sphi 0, %s60
    %s61 = sphi 0, %s58
    %s62 = sphi 0, %s61
    %s78 = sphi 0, %s62
    %s84 = sphi 0, %s86
    %s87 = sphi 0, %s84
    %s88 = sphi 0, %s87
    %s104 = sphi 0, %s88
    %s108 = sphi 0, %s108
    %s110 = sphi 0, %s108
    %s111 = sphi 0, %s110
    %s125 = sphi 0, %s111
    %s129 = sphi 0, %s129
    %s131 = sphi 0, %s129
    %s132 = sphi 0, %s131
    %s146 = sphi 0, %s132
    %s150 = sphi 0, %s150
    %s152 = sphi 0, %s150
    %s153 = sphi 0, %s152
    %s167 = sphi 0, %s153
    %s171 = sphi 0, %s171
    %s173 = sphi 0, %s171
    %s174 = sphi 0, %s173
    %s188 = sphi 0, %s174
    %s194 = sphi 0, %s196
    %s197 = sphi 0, %s194
    %s198 = sphi 0, %s197
    %s214 = sphi 0, %s198
  $region4: #{transmamba_forward.1} parent=0 // loop_header_branch
    %25 = sbr.rel (%p23) target = $region8
  $region5: #{transmamba_forward.1} parent=0 // loop_body
    %s27 = ssub.s32 %s22, 1
    %s28 = ssub.s32 %s22, 2
    %s29 = sadd.s32 %s22, 1
    %s30 = ssub.s32 %s22, %s29
    %p31 = scmp.eq.s32.totalorder %s30, 0
    %s33 = sadd.s32 %s32, 1
    %s34 = scalar_select %p31, %s32, %s33
    %p37 = pneg %p31
    %p38 = scmp.eq.s32.totalorder %s22, 2
    %p39 = por %p37, %p38
    %p40 = scmp.ne.s32.totalorder %s32, %s35
    %p41 = scmp.eq.s32.totalorder %s22, 0
    %p42 = por %p40, %p41
    %p43 = scmp.ne.s32.totalorder %s32, %s35
    %p44 = scmp.eq.s32.totalorder %s27, 2
    %p45 = por %p43, %p44
    %p46 = scmp.ne.s32.totalorder %s35, %s36
    %p47 = scmp.eq.s32.totalorder %s27, 0
    %p48 = por %p46, %p47
    %p49 = scmp.ne.s32.totalorder %s35, %s36
    %p50 = scmp.eq.s32.totalorder %s28, 2
    %p51 = por %p49, %p50
    %p53 = scmp.ne.s32.totalorder %s36, %s52
    %p54 = scmp.eq.s32.totalorder %s28, 0
    %p55 = por %p53, %p54
    %s56 = ssub.s32 %s22, %s29
    %p57 = scmp.eq.s32.totalorder %s56, 0
    %s59 = sadd.s32 %s58, 1
    %s60 = scalar_select %p57, %s58, %s59
    %p63 = pneg %p57
    %p64 = scmp.eq.s32.totalorder %s22, 2
    %p65 = por %p63, %p64
    %p66 = scmp.ne.s32.totalorder %s58, %s61
    %p67 = scmp.eq.s32.totalorder %s22, 0
    %p68 = por %p66, %p67
    %p69 = scmp.ne.s32.totalorder %s58, %s61
    %p70 = scmp.eq.s32.totalorder %s27, 2
    %p71 = por %p69, %p70
    %p72 = scmp.ne.s32.totalorder %s61, %s62
    %p73 = scmp.eq.s32.totalorder %s27, 0
    %p74 = por %p72, %p73
    %p75 = scmp.ne.s32.totalorder %s61, %s62
    %p76 = scmp.eq.s32.totalorder %s28, 2
    %p77 = por %p75, %p76
    %p79 = scmp.ne.s32.totalorder %s62, %s78
    %p80 = scmp.eq.s32.totalorder %s28, 0
    %p81 = por %p79, %p80
    %s82 = ssub.s32 %s22, %s29
    %p83 = scmp.eq.s32.totalorder %s82, 0
    %s85 = sadd.s32 %s84, 1
    %s86 = scalar_select %p83, %s84, %s85
    %p89 = pneg %p83
    %p90 = scmp.eq.s32.totalorder %s22, 2
    %p91 = por %p89, %p90
    %p92 = scmp.ne.s32.totalorder %s84, %s87
    %p93 = scmp.eq.s32.totalorder %s22, 0
    %p94 = por %p92, %p93
    %p95 = scmp.ne.s32.totalorder %s84, %s87
    %p96 = scmp.eq.s32.totalorder %s27, 2
    %p97 = por %p95, %p96
    %p98 = scmp.ne.s32.totalorder %s87, %s88
    %p99 = scmp.eq.s32.totalorder %s27, 0
    %p100 = por %p98, %p99
    %p101 = scmp.ne.s32.totalorder %s87, %s88
    %p102 = scmp.eq.s32.totalorder %s28, 2
    %p103 = por %p101, %p102
    %p105 = scmp.ne.s32.totalorder %s88, %s104
    %p106 = scmp.eq.s32.totalorder %s28, 0
    %p107 = por %p105, %p106
    %s109 = sadd.s32 %s108, 1
    %p112 = scmp.eq.s32.totalorder %s22, 2
    %p113 = scmp.ne.s32.totalorder %s108, %s110
    %p114 = scmp.eq.s32.totalorder %s22, 0
    %p115 = por %p113, %p114
    %p116 = scmp.ne.s32.totalorder %s108, %s110
    %p117 = scmp.eq.s32.totalorder %s27, 2
    %p118 = por %p116, %p117
    %p119 = scmp.ne.s32.totalorder %s110, %s111
    %p120 = scmp.eq.s32.totalorder %s27, 0
    %p121 = por %p119, %p120
    %p122 = scmp.ne.s32.totalorder %s110, %s111
    %p123 = scmp.eq.s32.totalorder %s28, 2
    %p124 = por %p122, %p123
    %p126 = scmp.ne.s32.totalorder %s111, %s125
    %p127 = scmp.eq.s32.totalorder %s28, 0
    %p128 = por %p126, %p127
    %s130 = sadd.s32 %s129, 1
    %p133 = scmp.eq.s32.totalorder %s22, 2
    %p134 = scmp.ne.s32.totalorder %s129, %s131
    %p135 = scmp.eq.s32.totalorder %s22, 0
    %p136 = por %p134, %p135
    %p137 = scmp.ne.s32.totalorder %s129, %s131
    %p138 = scmp.eq.s32.totalorder %s27, 2
    %p139 = por %p137, %p138
    %p140 = scmp.ne.s32.totalorder %s131, %s132
    %p141 = scmp.eq.s32.totalorder %s27, 0
    %p142 = por %p140, %p141
    %p143 = scmp.ne.s32.totalorder %s131, %s132
    %p144 = scmp.eq.s32.totalorder %s28, 2
    %p145 = por %p143, %p144
    %p147 = scmp.ne.s32.totalorder %s132, %s146
    %p148 = scmp.eq.s32.totalorder %s28, 0
    %p149 = por %p147, %p148
    %s151 = sadd.s32 %s150, 1
    %p154 = scmp.eq.s32.totalorder %s22, 2
    %p155 = scmp.ne.s32.totalorder %s150, %s152
    %p156 = scmp.eq.s32.totalorder %s22, 0
    %p157 = por %p155, %p156
    %p158 = scmp.ne.s32.totalorder %s150, %s152
    %p159 = scmp.eq.s32.totalorder %s27, 2
    %p160 = por %p158, %p159
    %p161 = scmp.ne.s32.totalorder %s152, %s153
    %p162 = scmp.eq.s32.totalorder %s27, 0
    %p163 = por %p161, %p162
    %p164 = scmp.ne.s32.totalorder %s152, %s153
    %p165 = scmp.eq.s32.totalorder %s28, 2
    %p166 = por %p164, %p165
    %p168 = scmp.ne.s32.totalorder %s153, %s167
    %p169 = scmp.eq.s32.totalorder %s28, 0
    %p170 = por %p168, %p169
    %s172 = sadd.s32 %s171, 1
    %p175 = scmp.eq.s32.totalorder %s22, 2
    %p176 = scmp.ne.s32.totalorder %s171, %s173
    %p177 = scmp.eq.s32.totalorder %s22, 0
    %p178 = por %p176, %p177
    %p179 = scmp.ne.s32.totalorder %s171, %s173
    %p180 = scmp.eq.s32.totalorder %s27, 2
    %p181 = por %p179, %p180
    %p182 = scmp.ne.s32.totalorder %s173, %s174
    %p183 = scmp.eq.s32.totalorder %s27, 0
    %p184 = por %p182, %p183
    %p185 = scmp.ne.s32.totalorder %s173, %s174
    %p186 = scmp.eq.s32.totalorder %s28, 2
    %p187 = por %p185, %p186
    %p189 = scmp.ne.s32.totalorder %s174, %s188
    %p190 = scmp.eq.s32.totalorder %s28, 0
    %p191 = por %p189, %p190
    %s192 = ssub.s32 %s22, %s29
    %p193 = scmp.eq.s32.totalorder %s192, 0
    %s195 = sadd.s32 %s194, 1
    %s196 = scalar_select %p193, %s194, %s195
    %p199 = pneg %p193
    %p200 = scmp.eq.s32.totalorder %s22, 2
    %p201 = por %p199, %p200
    %p202 = scmp.ne.s32.totalorder %s194, %s197
    %p203 = scmp.eq.s32.totalorder %s22, 0
    %p204 = por %p202, %p203
    %p205 = scmp.ne.s32.totalorder %s194, %s197
    %p206 = scmp.eq.s32.totalorder %s27, 2
    %p207 = por %p205, %p206
    %p208 = scmp.ne.s32.totalorder %s197, %s198
    %p209 = scmp.eq.s32.totalorder %s27, 0
    %p210 = por %p208, %p209
    %p211 = scmp.ne.s32.totalorder %s197, %s198
    %p212 = scmp.eq.s32.totalorder %s28, 2
    %p213 = por %p211, %p212
    %p215 = scmp.ne.s32.totalorder %s198, %s214
    %p216 = scmp.eq.s32.totalorder %s28, 0
    %p217 = por %p215, %p216
    %p218 = scmp.le.s32.totalorder 1, %s22
    %p219 = scmp.lt.s32.totalorder %s22, 4
    %p220 = pnand %p218, %p219
    %p221 = pneg %p220
    // Predicated region
    $region9: #{transmamba_forward.1} parent=5 // pred_check
      _
    $region10: #{transmamba_forward.1} parent=5 // pred_check_branch
      %223 = sbr.rel (%p220) target = $region12
    $region11: #{transmamba_forward.1} parent=5 // pred_region
      %s224 = ssub.s32 %s22, 1
      // Predicated region
      $region13: #{transmamba_forward.1} parent=11 // pred_check
        %p225 = pneg %p121
      $region14: #{transmamba_forward.1} parent=11 // pred_check_branch
        %227 = sbr.rel (%p225) target = $region16
      $region15: #{transmamba_forward.1} parent=11 // pred_region
        _
      $region16: #{transmamba_forward.1} parent=11 // pred_fallthru
        _
      // Predicated region
      $region17: #{transmamba_forward.1} parent=11 // pred_check
        %p228 = pneg %p142
      $region18: #{transmamba_forward.1} parent=11 // pred_check_branch
        %230 = sbr.rel (%p228) target = $region20
      $region19: #{transmamba_forward.1} parent=11 // pred_region
        _
      $region20: #{transmamba_forward.1} parent=11 // pred_fallthru
        _
      // Predicated region
      $region21: #{transmamba_forward.1} parent=11 // pred_check
        %p231 = pneg %p163
      $region22: #{transmamba_forward.1} parent=11 // pred_check_branch
        %233 = sbr.rel (%p231) target = $region24
      $region23: #{transmamba_forward.1} parent=11 // pred_region
        _
      $region24: #{transmamba_forward.1} parent=11 // pred_fallthru
        _
      // Predicated region
      $region25: #{transmamba_forward.1} parent=11 // pred_check
        %p234 = pneg %p184
      $region26: #{transmamba_forward.1} parent=11 // pred_check_branch
        %236 = sbr.rel (%p234) target = $region28
      $region27: #{transmamba_forward.1} parent=11 // pred_region
        _
      $region28: #{transmamba_forward.1} parent=11 // pred_fallthru
        _
    $region12: #{transmamba_forward.1} parent=5 // pred_fallthru
      _
    %p237 = scmp.lt.s32.totalorder %s22, 3
    // Predicated region
    $region29: #{transmamba_forward.1} parent=5 // pred_check
      %p238 = pneg %p237
    $region30: #{transmamba_forward.1} parent=5 // pred_check_branch
      %240 = sbr.rel (%p238) target = $region32
    $region31: #{transmamba_forward.1} parent=5 // pred_region
      // Predicated region
      $region33: #{transmamba_forward.1} parent=31 // pred_check
        %p241 = pneg %p42
      $region34: #{transmamba_forward.1} parent=31 // pred_check_branch
        %243 = sbr.rel (%p241) target = $region36
      $region35: #{transmamba_forward.1} parent=31 // pred_region
        %p244 = scmp.lt.s32.totalorder %s22, 2
        %s245 = scalar_select %p244, %s22, 2
        %s246 = smul.addr %s245, 8
        %s247 = smul.addr %s246, 8
        %s248 = scalar_lea.vmem %s1, %s247
      $region36: #{transmamba_forward.1} parent=31 // pred_fallthru
        _
      // Predicated region
      $region37: #{transmamba_forward.1} parent=31 // pred_check
        %p249 = pneg %p68
      $region38: #{transmamba_forward.1} parent=31 // pred_check_branch
        %251 = sbr.rel (%p249) target = $region40
      $region39: #{transmamba_forward.1} parent=31 // pred_region
        %p252 = scmp.lt.s32.totalorder %s22, 2
        %s253 = scalar_select %p252, %s22, 2
        %s254 = smul.addr %s253, 3
        %s255 = smul.addr %s254, 8
        %s256 = scalar_lea.vmem %s2, %s255
      $region40: #{transmamba_forward.1} parent=31 // pred_fallthru
        _
      // Predicated region
      $region41: #{transmamba_forward.1} parent=31 // pred_check
        %p257 = pneg %p94
      $region42: #{transmamba_forward.1} parent=31 // pred_check_branch
        %259 = sbr.rel (%p257) target = $region44
      $region43: #{transmamba_forward.1} parent=31 // pred_region
        %p260 = scmp.lt.s32.totalorder %s22, 2
        %s261 = scalar_select %p260, %s22, 2
        %s262 = smul.addr %s261, 8
        %s263 = smul.addr %s262, 8
        %s264 = scalar_lea.vmem %s3, %s263
      $region44: #{transmamba_forward.1} parent=31 // pred_fallthru
        _
    $region32: #{transmamba_forward.1} parent=5 // pred_fallthru
      _
    %p265 = scmp.le.s32.totalorder 1, %s22
    %p266 = scmp.lt.s32.totalorder %s22, 4
    %p267 = pnand %p265, %p266
    %p268 = pneg %p267
    // Predicated region
    $region45: #{transmamba_forward.1} parent=5 // pred_check
      _
    $region46: #{transmamba_forward.1} parent=5 // pred_check_branch
      %270 = sbr.rel (%p267) target = $region48
    $region47: #{transmamba_forward.1} parent=5 // pred_region
      %s271 = ssub.s32 %s22, 1
      %p272 = scmp.lt.s32.totalorder %s27, 2
      %s273 = scalar_select %p272, %s27, 2
      %s274 = smul.addr %s273, 8
      %s275 = smul.addr %s274, 8
      %s276 = scalar_lea.vmem %s1, %s275
      %p277 = pneg %p48
      %p278 = pneg %p45
      %p279 = scmp.lt.s32.totalorder %s27, 2
      %s280 = scalar_select %p279, %s27, 2
      %s281 = smul.addr %s280, 3
      %s282 = smul.addr %s281, 8
      %s283 = scalar_lea.vmem %s2, %s282
      %p284 = pneg %p74
      %p285 = pneg %p71
      %p286 = scmp.lt.s32.totalorder %s27, 2
      %s287 = scalar_select %p286, %s27, 2
      %s288 = smul.addr %s287, 8
      %s289 = smul.addr %s288, 8
      %s290 = scalar_lea.vmem %s3, %s289
      %p291 = pneg %p100
      %p292 = pneg %p97
      %p293 = pneg %p121
      %p294 = pneg %p118
      %p295 = pneg %p142
      %p296 = pneg %p139
      %p297 = pneg %p163
      %p298 = pneg %p160
      %p299 = pneg %p184
      %p300 = pneg %p181
      %p301 = pneg %p210
      %p302 = pneg %p207
      %p303 = scmp.lt.s32.totalorder %s27, 2
      %s304 = scalar_select %p303, %s27, 2
      %s305 = smul.addr %s304, 16
      %s306 = smul.addr %s305, 8
      %s307 = scalar_lea.vmem %s8, %s306
      %p308 = scmp.lt.s32.totalorder %s27, 2
      %s309 = scalar_select %p308, %s27, 2
      %s310 = smul.addr %s309, 8
      %s311 = smul.addr %s310, 8
      %s312 = scalar_lea.vmem %s1, %s311
      %p313 = scmp.lt.s32.totalorder %s27, 2
      %s314 = scalar_select %p313, %s27, 2
      %s315 = smul.addr %s314, 3
      %s316 = smul.addr %s315, 8
      %s317 = scalar_lea.vmem %s2, %s316
      %p318 = scmp.lt.s32.totalorder %s27, 2
      %s319 = scalar_select %p318, %s27, 2
      %s320 = smul.addr %s319, 8
      %s321 = smul.addr %s320, 8
      %s322 = scalar_lea.vmem %s3, %s321
      %p323 = scmp.lt.s32.totalorder %s27, 2
      %s324 = scalar_select %p323, %s27, 2
      %s325 = smul.addr %s324, 16
      %s326 = smul.addr %s325, 8
      %s327 = scalar_lea.vmem %s8, %s326
      %s328 = sld [smem:[#allocation3 + %s27]]
      %v329 = vld [vmem:[%s312] sm:$0xff]
      %v330 = vld [vmem:[%s312 + $0x8] sm:$0xff]
      %v331 = vld [vmem:[%s312 + $0x10] sm:$0xff]
      %v332 = vld [vmem:[%s312 + $0x18] sm:$0xff]
      %v333 = vld [vmem:[%s312 + $0x20] sm:$0xff]
      %v334 = vld [vmem:[%s312 + $0x28] sm:$0xff]
      %v335 = vld [vmem:[%s312 + $0x30] sm:$0xff]
      %v336 = vld [vmem:[%s312 + $0x38] sm:$0xff]
      %v337 = vld [vmem:[%s317] sm:$0xff]
      %s338 = scalar_lea.vmem %s317, 8
      %v339 = vld [vmem:[%s338] sm:$0xff]
      %vm340 = vcmask 64512
      %v342 = vsel %vm340, %v329, 0
      %v345 = vsel %vm340, %v330, 0
      %v348 = vsel %vm340, %v331, 0
      %v351 = vsel %vm340, %v332, 0
      %v354 = vsel %vm340, %v333, 0
      %v357 = vsel %vm340, %v334, 0
      %v360 = vsel %vm340, %v335, 0
      %v363 = vsel %vm340, %v336, 0
      %365 = vmatpush.msra.mxu0 0.0
      %366 = vmatpush.msra.mxu0 0.0
      %367 = vmatpush.msra.mxu0 0.0
      %368 = vmatpush.msra.mxu0 0.0
      %369 = vmatpush.msra.mxu0 0.0
      %370 = vmatpush.msra.mxu0 0.0
      %371 = vmatpush.msra.mxu0 0.0
      %372 = vmatpush.msra.mxu0 0.0
      %373 = vmatpush.msra.mxu0 0.0
      %374 = vmatpush.msra.mxu0 0.0
      %375 = vmatpush.msra.mxu0 0.0
      %376 = vmatpush.msra.mxu0 0.0
      %377 = vmatpush.msra.mxu0 0.0
      %378 = vmatpush.msra.mxu0 0.0
      %379 = vmatpush.msra.mxu0 0.0
      %380 = vmatpush.msra.mxu0 %v339
      %381 = vmatmul.f32.gmra.mxu0 %v342
      %v382 = vpop.f32.mrf.mxu0
      %v383 = vadd.f32 0.0, %v382
      %384 = vmatmul.f32.gmra.mxu0 %v345
      %v385 = vpop.f32.mrf.mxu0
      %v386 = vadd.f32 0.0, %v385
      %387 = vmatmul.f32.gmra.mxu0 %v348
      %v388 = vpop.f32.mrf.mxu0
      %v389 = vadd.f32 0.0, %v388
      %390 = vmatmul.f32.gmra.mxu0 %v351
      %v391 = vpop.f32.mrf.mxu0
      %v392 = vadd.f32 0.0, %v391
      %393 = vmatmul.f32.gmra.mxu0 %v354
      %v394 = vpop.f32.mrf.mxu0
      %v395 = vadd.f32 0.0, %v394
      %396 = vmatmul.f32.gmra.mxu0 %v357
      %v397 = vpop.f32.mrf.mxu0
      %v398 = vadd.f32 0.0, %v397
      %399 = vmatmul.f32.gmra.mxu0 %v360
      %v400 = vpop.f32.mrf.mxu0
      %v401 = vadd.f32 0.0, %v400
      %402 = vmatmul.f32.gmra.mxu0 %v363
      %v403 = vpop.f32.mrf.mxu0
      %v404 = vadd.f32 0.0, %v403
      %405 = vdwg.mxu0
      %406 = vmatpush.msra.mxu0 0.0
      %407 = vmatpush.msra.mxu0 0.0
      %408 = vmatpush.msra.mxu0 0.0
      %409 = vmatpush.msra.mxu0 0.0
      %410 = vmatpush.msra.mxu0 0.0
      %411 = vmatpush.msra.mxu0 0.0
      %412 = vmatpush.msra.mxu0 0.0
      %413 = vmatpush.msra.mxu0 0.0
      %414 = vmatpush.msra.mxu0 0.0
      %415 = vmatpush.msra.mxu0 0.0
      %416 = vmatpush.msra.mxu0 0.0
      %417 = vmatpush.msra.mxu0 0.0
      %418 = vmatpush.msra.mxu0 0.0
      %419 = vmatpush.msra.mxu0 0.0
      %420 = vmatpush.msra.mxu0 0.0
      %421 = vmatpush.msra.mxu0 %v337
      %422 = vmatmul.f32.gmra.mxu0 %v363
      %v423 = vpop.f32.mrf.mxu0
      %v424 = vadd.f32 %v383, %v423
      %425 = vmatmul.f32.gmra.mxu0 %v342
      %v426 = vpop.f32.mrf.mxu0
      %v427 = vadd.f32 %v386, %v426
      %428 = vmatmul.f32.gmra.mxu0 %v345
      %v429 = vpop.f32.mrf.mxu0
      %v430 = vadd.f32 %v389, %v429
      %431 = vmatmul.f32.gmra.mxu0 %v348
      %v432 = vpop.f32.mrf.mxu0
      %v433 = vadd.f32 %v392, %v432
      %434 = vmatmul.f32.gmra.mxu0 %v351
      %v435 = vpop.f32.mrf.mxu0
      %v436 = vadd.f32 %v395, %v435
      %437 = vmatmul.f32.gmra.mxu0 %v354
      %v438 = vpop.f32.mrf.mxu0
      %v439 = vadd.f32 %v398, %v438
      %440 = vmatmul.f32.gmra.mxu0 %v357
      %v441 = vpop.f32.mrf.mxu0
      %v442 = vadd.f32 %v401, %v441
      %443 = vmatmul.f32.gmra.mxu0 %v360
      %v444 = vpop.f32.mrf.mxu0
      %v445 = vadd.f32 %v404, %v444
      %446 = vdwg.mxu0
      %s447 = scalar_lea.vmem %s317, 16
      %v448 = vld [vmem:[%s447] sm:$0xff]
      %449 = vmatpush.msra.mxu0 0.0
      %450 = vmatpush.msra.mxu0 0.0
      %451 = vmatpush.msra.mxu0 0.0
      %452 = vmatpush.msra.mxu0 0.0
      %453 = vmatpush.msra.mxu0 0.0
      %454 = vmatpush.msra.mxu0 0.0
      %455 = vmatpush.msra.mxu0 0.0
      %456 = vmatpush.msra.mxu0 0.0
      %457 = vmatpush.msra.mxu0 0.0
      %458 = vmatpush.msra.mxu0 0.0
      %459 = vmatpush.msra.mxu0 0.0
      %460 = vmatpush.msra.mxu0 0.0
      %461 = vmatpush.msra.mxu0 0.0
      %462 = vmatpush.msra.mxu0 0.0
      %463 = vmatpush.msra.mxu0 0.0
      %464 = vmatpush.msra.mxu0 %v448
      %465 = vmatmul.f32.gmra.mxu0 %v345
      %v466 = vpop.f32.mrf.mxu0
      %v467 = vadd.f32 0.0, %v466
      %468 = vmatmul.f32.gmra.mxu0 %v348
      %v469 = vpop.f32.mrf.mxu0
      %v470 = vadd.f32 0.0, %v469
      %471 = vmatmul.f32.gmra.mxu0 %v351
      %v472 = vpop.f32.mrf.mxu0
      %v473 = vadd.f32 0.0, %v472
      %474 = vmatmul.f32.gmra.mxu0 %v354
      %v475 = vpop.f32.mrf.mxu0
      %v476 = vadd.f32 0.0, %v475
      %477 = vmatmul.f32.gmra.mxu0 %v357
      %v478 = vpop.f32.mrf.mxu0
      %v479 = vadd.f32 0.0, %v478
      %480 = vmatmul.f32.gmra.mxu0 %v360
      %v481 = vpop.f32.mrf.mxu0
      %v482 = vadd.f32 0.0, %v481
      %483 = vmatmul.f32.gmra.mxu0 %v363
      %v484 = vpop.f32.mrf.mxu0
      %v485 = vadd.f32 0.0, %v484
      %486 = vmatmul.f32.gmra.mxu0 %v342
      %v487 = vpop.f32.mrf.mxu0
      %v488 = vadd.f32 0.0, %v487
      %489 = vdwg.mxu0
      %v490 = vadd.f32 %v424, %v467
      %v491 = vadd.f32 %v427, %v470
      %v492 = vadd.f32 %v430, %v473
      %v493 = vadd.f32 %v433, %v476
      %v494 = vadd.f32 %v436, %v479
      %v495 = vadd.f32 %v439, %v482
      %v496 = vadd.f32 %v442, %v485
      %v497 = vadd.f32 %v445, %v488
      %v498 = vld [vmem:[%s322] sm:$0xff]
      %v499 = vld [vmem:[%s322 + $0x8] sm:$0xff]
      %v500 = vld [vmem:[%s322 + $0x10] sm:$0xff]
      %v501 = vld [vmem:[%s322 + $0x18] sm:$0xff]
      %v502 = vld [vmem:[%s322 + $0x20] sm:$0xff]
      %v503 = vld [vmem:[%s322 + $0x28] sm:$0xff]
      %v504 = vld [vmem:[%s322 + $0x30] sm:$0xff]
      %v505 = vld [vmem:[%s322 + $0x38] sm:$0xff]
      %v506 = vadd.f32 %v490, %v498
      %v507 = vadd.f32 %v491, %v499
      %v508 = vadd.f32 %v492, %v500
      %v509 = vadd.f32 %v493, %v501
      %v510 = vadd.f32 %v494, %v502
      %v511 = vadd.f32 %v495, %v503
      %v512 = vadd.f32 %v496, %v504
      %v513 = vadd.f32 %v497, %v505
      %v514 = vlaneseq
      %v515 = vshrl.u32 %v514, 7
      %v516 = vadd.s32 %v515, 8
      %v517 = vadd.s32 %v515, 16
      %v518 = vadd.s32 %v515, 24
      %v519 = vadd.s32 %v515, 32
      %v520 = vadd.s32 %v515, 40
      %v521 = vadd.s32 %v515, 48
      %v522 = vadd.s32 %v515, 56
      %v523 = vlaneseq
      %v524 = vand.u32 %v523, 127
      %vm525 = vcmp.lt.s32.totalorder %v524, 0
      %v526 = vsub.s32 0, %v524
      %v527 = vsel %vm525, %v526, %v524
      %v528 = vshrl.u32 %v527, 3
      %v529 = vand.u32 %v527, 7
      %v530 = vsub.s32 0, %v529
      %v531 = vsel %vm525, %v530, %v529
      %vm532 = vcmp.ne.s32.totalorder %v531, 0
      %vm533 = vcmp.lt.s32.totalorder %v531, 0
      %vm534 = vmand %vm533, %vm532
      %v535 = vadd.s32 %v531, 8
      %v536 = vsel %vm534, %v535, %v531
      %vm537 = vcmp.lt.s32.totalorder %v515, 0
      %v538 = vsub.s32 0, %v515
      %v539 = vsel %vm537, %v538, %v515
      %v540 = vshrl.u32 %v539, 3
      %v541 = vand.u32 %v539, 7
      %v542 = vsub.s32 0, %v541
      %v543 = vsel %vm537, %v542, %v541
      %vm544 = vcmp.lt.s32.totalorder %v516, 0
      %v545 = vsub.s32 0, %v516
      %v546 = vsel %vm544, %v545, %v516
      %v547 = vshrl.u32 %v546, 3
      %v548 = vand.u32 %v546, 7
      %v549 = vsub.s32 0, %v548
      %v550 = vsel %vm544, %v549, %v548
      %vm551 = vcmp.lt.s32.totalorder %v517, 0
      %v552 = vsub.s32 0, %v517
      %v553 = vsel %vm551, %v552, %v517
      %v554 = vshrl.u32 %v553, 3
      %v555 = vand.u32 %v553, 7
      %v556 = vsub.s32 0, %v555
      %v557 = vsel %vm551, %v556, %v555
      %vm558 = vcmp.lt.s32.totalorder %v518, 0
      %v559 = vsub.s32 0, %v518
      %v560 = vsel %vm558, %v559, %v518
      %v561 = vshrl.u32 %v560, 3
      %v562 = vand.u32 %v560, 7
      %v563 = vsub.s32 0, %v562
      %v564 = vsel %vm558, %v563, %v562
      %vm565 = vcmp.lt.s32.totalorder %v519, 0
      %v566 = vsub.s32 0, %v519
      %v567 = vsel %vm565, %v566, %v519
      %v568 = vshrl.u32 %v567, 3
      %v569 = vand.u32 %v567, 7
      %v570 = vsub.s32 0, %v569
      %v571 = vsel %vm565, %v570, %v569
      %vm572 = vcmp.lt.s32.totalorder %v520, 0
      %v573 = vsub.s32 0, %v520
      %v574 = vsel %vm572, %v573, %v520
      %v575 = vshrl.u32 %v574, 3
      %v576 = vand.u32 %v574, 7
      %v577 = vsub.s32 0, %v576
      %v578 = vsel %vm572, %v577, %v576
      %vm579 = vcmp.lt.s32.totalorder %v521, 0
      %v580 = vsub.s32 0, %v521
      %v581 = vsel %vm579, %v580, %v521
      %v582 = vshrl.u32 %v581, 3
      %v583 = vand.u32 %v581, 7
      %v584 = vsub.s32 0, %v583
      %v585 = vsel %vm579, %v584, %v583
      %vm586 = vcmp.lt.s32.totalorder %v522, 0
      %v587 = vsub.s32 0, %v522
      %v588 = vsel %vm586, %v587, %v522
      %v589 = vshrl.u32 %v588, 3
      %v590 = vand.u32 %v588, 7
      %v591 = vsub.s32 0, %v590
      %v592 = vsel %vm586, %v591, %v590
      %vm593 = vcmp.ne.s32.totalorder %v543, 0
      %vm594 = vcmp.ne.s32.totalorder %v550, 0
      %vm595 = vcmp.ne.s32.totalorder %v557, 0
      %vm596 = vcmp.ne.s32.totalorder %v564, 0
      %vm597 = vcmp.ne.s32.totalorder %v571, 0
      %vm598 = vcmp.ne.s32.totalorder %v578, 0
      %vm599 = vcmp.ne.s32.totalorder %v585, 0
      %vm600 = vcmp.ne.s32.totalorder %v592, 0
      %vm601 = vcmp.lt.s32.totalorder %v543, 0
      %vm602 = vcmp.lt.s32.totalorder %v550, 0
      %vm603 = vcmp.lt.s32.totalorder %v557, 0
      %vm604 = vcmp.lt.s32.totalorder %v564, 0
      %vm605 = vcmp.lt.s32.totalorder %v571, 0
      %vm606 = vcmp.lt.s32.totalorder %v578, 0
      %vm607 = vcmp.lt.s32.totalorder %v585, 0
      %vm608 = vcmp.lt.s32.totalorder %v592, 0
      %vm609 = vmand %vm601, %vm593
      %vm610 = vmand %vm602, %vm594
      %vm611 = vmand %vm603, %vm595
      %vm612 = vmand %vm604, %vm596
      %vm613 = vmand %vm605, %vm597
      %vm614 = vmand %vm606, %vm598
      %vm615 = vmand %vm607, %vm599
      %vm616 = vmand %vm608, %vm600
      %v617 = vadd.s32 %v543, 8
      %v618 = vadd.s32 %v550, 8
      %v619 = vadd.s32 %v557, 8
      %v620 = vadd.s32 %v564, 8
      %v621 = vadd.s32 %v571, 8
      %v622 = vadd.s32 %v578, 8
      %v623 = vadd.s32 %v585, 8
      %v624 = vadd.s32 %v592, 8
      %v625 = vsel %vm609, %v617, %v543
      %v626 = vsel %vm610, %v618, %v550
      %v627 = vsel %vm611, %v619, %v557
      %v628 = vsel %vm612, %v620, %v564
      %v629 = vsel %vm613, %v621, %v571
      %v630 = vsel %vm614, %v622, %v578
      %v631 = vsel %vm615, %v623, %v585
      %v632 = vsel %vm616, %v624, %v592
      %vm633 = vcmp.eq.s32.totalorder %v536, %v625
      %vm634 = vcmp.eq.s32.totalorder %v536, %v626
      %vm635 = vcmp.eq.s32.totalorder %v536, %v627
      %vm636 = vcmp.eq.s32.totalorder %v536, %v628
      %vm637 = vcmp.eq.s32.totalorder %v536, %v629
      %vm638 = vcmp.eq.s32.totalorder %v536, %v630
      %vm639 = vcmp.eq.s32.totalorder %v536, %v631
      %vm640 = vcmp.eq.s32.totalorder %v536, %v632
      %v641 = vstv %s328
      %vm642 = vcmp.lt.s32.totalorder %v524, %v641
      %vm643 = vmand %vm633, %vm642
      %vm644 = vmand %vm634, %vm642
      %vm645 = vmand %vm635, %vm642
      %vm646 = vmand %vm636, %vm642
      %vm647 = vmand %vm637, %vm642
      %vm648 = vmand %vm638, %vm642
      %vm649 = vmand %vm639, %vm642
      %vm650 = vmand %vm640, %vm642
      %v651 = vld [vmem:[%s4] sm:$0xff]
      %v652 = vld [vmem:[%s4 + $0x8] sm:$0xff]
      %v653 = vld [vmem:[%s4 + $0x10] sm:$0xff]
      %v654 = vld [vmem:[%s4 + $0x18] sm:$0xff]
      %v655 = vld [vmem:[%s5] sm:$0x1]
      %v657 = vperm.slane %v655, 0
      %vm659 = vcmask 261120
      %v661 = vsel %vm659, %v506, 0
      %v664 = vsel %vm659, %v507, 0
      %v667 = vsel %vm659, %v508, 0
      %v670 = vsel %vm659, %v509, 0
      %v673 = vsel %vm659, %v510, 0
      %v676 = vsel %vm659, %v511, 0
      %v679 = vsel %vm659, %v512, 0
      %v682 = vsel %vm659, %v513, 0
      %684 = vmatpush.msra.mxu0 0.0
      %685 = vmatpush.msra.mxu0 0.0
      %686 = vmatpush.msra.mxu0 0.0
      %687 = vmatpush.msra.mxu0 0.0
      %688 = vmatpush.msra.mxu0 0.0
      %689 = vmatpush.msra.mxu0 0.0
      %690 = vmatpush.msra.mxu0 0.0
      %691 = vmatpush.msra.mxu0 0.0
      %692 = vmatpush.msra.mxu0 0.0
      %693 = vmatpush.msra.mxu0 0.0
      %694 = vmatpush.msra.mxu0 0.0
      %695 = vmatpush.msra.mxu0 0.0
      %696 = vmatpush.msra.mxu0 %v654
      %697 = vmatpush.msra.mxu0 %v653
      %698 = vmatpush.msra.mxu0 %v652
      %699 = vmatpush.msra.mxu0 %v651
      %700 = vmatmul.f32.gmra.mxu0 %v661
      %v701 = vpop.f32.mrf.mxu0
      %v702 = vadd.f32 %v657, %v701
      %703 = vmatmul.f32.gmra.mxu0 %v664
      %v704 = vpop.f32.mrf.mxu0
      %v705 = vadd.f32 %v657, %v704
      %706 = vmatmul.f32.gmra.mxu0 %v667
      %v707 = vpop.f32.mrf.mxu0
      %v708 = vadd.f32 %v657, %v707
      %709 = vmatmul.f32.gmra.mxu0 %v670
      %v710 = vpop.f32.mrf.mxu0
      %v711 = vadd.f32 %v657, %v710
      %712 = vmatmul.f32.gmra.mxu0 %v673
      %v713 = vpop.f32.mrf.mxu0
      %v714 = vadd.f32 %v657, %v713
      %715 = vmatmul.f32.gmra.mxu0 %v676
      %v716 = vpop.f32.mrf.mxu0
      %v717 = vadd.f32 %v657, %v716
      %718 = vmatmul.f32.gmra.mxu0 %v679
      %v719 = vpop.f32.mrf.mxu0
      %v720 = vadd.f32 %v657, %v719
      %721 = vmatmul.f32.gmra.mxu0 %v682
      %v722 = vpop.f32.mrf.mxu0
      %v723 = vadd.f32 %v657, %v722
      %724 = vdwg.mxu0
      %v725 = vld [vmem:[%s6] sm:$0xff]
      %v726 = vld [vmem:[%s6 + $0x8] sm:$0xff]
      %v727 = vld [vmem:[%s6 + $0x10] sm:$0xff]
      %v728 = vld [vmem:[%s6 + $0x18] sm:$0xff]
      %v729 = vld [vmem:[%s7] sm:$0x1]
      %v731 = vperm.slane %v729, 0
      %733 = vmatpush.msra.mxu0 0.0
      %734 = vmatpush.msra.mxu0 0.0
      %735 = vmatpush.msra.mxu0 0.0
      %736 = vmatpush.msra.mxu0 0.0
      %737 = vmatpush.msra.mxu0 0.0
      %738 = vmatpush.msra.mxu0 0.0
      %739 = vmatpush.msra.mxu0 0.0
      %740 = vmatpush.msra.mxu0 0.0
      %741 = vmatpush.msra.mxu0 0.0
      %742 = vmatpush.msra.mxu0 0.0
      %743 = vmatpush.msra.mxu0 0.0
      %744 = vmatpush.msra.mxu0 0.0
      %745 = vmatpush.msra.mxu0 %v728
      %746 = vmatpush.msra.mxu0 %v727
      %747 = vmatpush.msra.mxu0 %v726
      %748 = vmatpush.msra.mxu0 %v725
      %749 = vmatmul.f32.gmra.mxu0 %v661
      %v750 = vpop.f32.mrf.mxu0
      %v751 = vadd.f32 %v731, %v750
      %752 = vmatmul.f32.gmra.mxu0 %v664
      %v753 = vpop.f32.mrf.mxu0
      %v754 = vadd.f32 %v731, %v753
      %755 = vmatmul.f32.gmra.mxu0 %v667
      %v756 = vpop.f32.mrf.mxu0
      %v757 = vadd.f32 %v731, %v756
      %758 = vmatmul.f32.gmra.mxu0 %v670
      %v759 = vpop.f32.mrf.mxu0
      %v760 = vadd.f32 %v731, %v759
      %761 = vmatmul.f32.gmra.mxu0 %v673
      %v762 = vpop.f32.mrf.mxu0
      %v763 = vadd.f32 %v731, %v762
      %764 = vmatmul.f32.gmra.mxu0 %v676
      %v765 = vpop.f32.mrf.mxu0
      %v766 = vadd.f32 %v731, %v765
      %767 = vmatmul.f32.gmra.mxu0 %v679
      %v768 = vpop.f32.mrf.mxu0
      %v769 = vadd.f32 %v731, %v768
      %770 = vmatmul.f32.gmra.mxu0 %v682
      %v771 = vpop.f32.mrf.mxu0
      %v772 = vadd.f32 %v731, %v771
      %773 = vdwg.mxu0
      %vm774 = vcmask 130048
      %v776 = vsel %vm774, %v702, 0
      %v779 = vsel %vm774, %v705, 0
      %v782 = vsel %vm774, %v708, 0
      %v785 = vsel %vm774, %v711, 0
      %v788 = vsel %vm774, %v714, 0
      %v791 = vsel %vm774, %v717, 0
      %v794 = vsel %vm774, %v720, 0
      %v797 = vsel %vm774, %v723, 0
      %v800 = vsel %vm774, %v751, 0
      %v803 = vsel %vm774, %v754, 0
      %v806 = vsel %vm774, %v757, 0
      %v809 = vsel %vm774, %v760, 0
      %v812 = vsel %vm774, %v763, 0
      %v815 = vsel %vm774, %v766, 0
      %v818 = vsel %vm774, %v769, 0
      %v821 = vsel %vm774, %v772, 0
      %v824 = vsel %vm774, 0.0, 0
      %826 = vmatpush.xpose.msra.mxu0 %v824
      %827 = vmatpush.xpose.msra.mxu0 %v824
      %828 = vmatpush.xpose.msra.mxu0 %v824
      %829 = vmatpush.xpose.msra.mxu0 %v824
      %830 = vmatpush.xpose.msra.mxu0 %v824
      %831 = vmatpush.xpose.msra.mxu0 %v824
      %832 = vmatpush.xpose.msra.mxu0 %v824
      %833 = vmatpush.xpose.msra.mxu0 %v824
      %834 = vmatpush.xpose.msra.mxu0 %v821
      %835 = vmatpush.xpose.msra.mxu0 %v818
      %836 = vmatpush.xpose.msra.mxu0 %v815
      %837 = vmatpush.xpose.msra.mxu0 %v812
      %838 = vmatpush.xpose.msra.mxu0 %v809
      %839 = vmatpush.xpose.msra.mxu0 %v806
      %840 = vmatpush.xpose.msra.mxu0 %v803
      %841 = vmatpush.xpose.msra.mxu0 %v800
      %842 = vmatmul.f32.gmra.mxu0 %v776
      %v843 = vpop.f32.mrf.mxu0
      %v844 = vadd.f32 0.0, %v843
      %845 = vmatmul.f32.gmra.mxu0 %v779
      %v846 = vpop.f32.mrf.mxu0
      %v847 = vadd.f32 0.0, %v846
      %848 = vmatmul.f32.gmra.mxu0 %v782
      %v849 = vpop.f32.mrf.mxu0
      %v850 = vadd.f32 0.0, %v849
      %851 = vmatmul.f32.gmra.mxu0 %v785
      %v852 = vpop.f32.mrf.mxu0
      %v853 = vadd.f32 0.0, %v852
      %854 = vmatmul.f32.gmra.mxu0 %v788
      %v855 = vpop.f32.mrf.mxu0
      %v856 = vadd.f32 0.0, %v855
      %857 = vmatmul.f32.gmra.mxu0 %v791
      %v858 = vpop.f32.mrf.mxu0
      %v859 = vadd.f32 0.0, %v858
      %860 = vmatmul.f32.gmra.mxu0 %v794
      %v861 = vpop.f32.mrf.mxu0
      %v862 = vadd.f32 0.0, %v861
      %863 = vmatmul.f32.gmra.mxu0 %v797
      %v864 = vpop.f32.mrf.mxu0
      %v865 = vadd.f32 0.0, %v864
      %866 = vdwg.mxu0
      %v867 = vmul.f32 %v844, 0.25
      %v868 = vmul.f32 %v847, 0.25
      %v869 = vmul.f32 %v850, 0.25
      %v870 = vmul.f32 %v853, 0.25
      %v871 = vmul.f32 %v856, 0.25
      %v872 = vmul.f32 %v859, 0.25
      %v873 = vmul.f32 %v862, 0.25
      %v874 = vmul.f32 %v865, 0.25
      %v875 = vsel %vm643, %v867, -1e+30
      %v876 = vsel %vm644, %v868, -1e+30
      %v877 = vsel %vm645, %v869, -1e+30
      %v878 = vsel %vm646, %v870, -1e+30
      %v879 = vsel %vm647, %v871, -1e+30
      %v880 = vsel %vm648, %v872, -1e+30
      %v881 = vsel %vm649, %v873, -1e+30
      %v882 = vsel %vm650, %v874, -1e+30
      %883 = vmax.xlane.f32.xlu0 %v875
      %v884 = vpop.xlane.xlu0 %883
      %885 = vmax.xlane.f32.xlu0 %v876
      %v886 = vpop.xlane.xlu0 %885
      %887 = vmax.xlane.f32.xlu0 %v877
      %v888 = vpop.xlane.xlu0 %887
      %889 = vmax.xlane.f32.xlu0 %v878
      %v890 = vpop.xlane.xlu0 %889
      %891 = vmax.xlane.f32.xlu0 %v879
      %v892 = vpop.xlane.xlu0 %891
      %893 = vmax.xlane.f32.xlu0 %v880
      %v894 = vpop.xlane.xlu0 %893
      %895 = vmax.xlane.f32.xlu0 %v881
      %v896 = vpop.xlane.xlu0 %895
      %897 = vmax.xlane.f32.xlu0 %v882
      %v898 = vpop.xlane.xlu0 %897
      %v899 = vsub.f32 %v875, %v884
      %v900 = vsub.f32 %v876, %v886
      %v901 = vsub.f32 %v877, %v888
      %v902 = vsub.f32 %v878, %v890
      %v903 = vsub.f32 %v879, %v892
      %v904 = vsub.f32 %v880, %v894
      %v905 = vsub.f32 %v881, %v896
      %v906 = vsub.f32 %v882, %v898
      %v907 = vmul.f32 %v899, 1.442695
      %v908 = vpow.pop %v907
      %v909 = vmul.f32 %v900, 1.442695
      %v910 = vpow.pop %v909
      %v911 = vmul.f32 %v901, 1.442695
      %v912 = vpow.pop %v911
      %v913 = vmul.f32 %v902, 1.442695
      %v914 = vpow.pop %v913
      %v915 = vmul.f32 %v903, 1.442695
      %v916 = vpow.pop %v915
      %v917 = vmul.f32 %v904, 1.442695
      %v918 = vpow.pop %v917
      %v919 = vmul.f32 %v905, 1.442695
      %v920 = vpow.pop %v919
      %v921 = vmul.f32 %v906, 1.442695
      %v922 = vpow.pop %v921
      %923 = vadd.xlane.f32.xlu0 %v908
      %v924 = vpop.xlane.xlu0 %923
      %925 = vadd.xlane.f32.xlu0 %v910
      %v926 = vpop.xlane.xlu0 %925
      %927 = vadd.xlane.f32.xlu0 %v912
      %v928 = vpop.xlane.xlu0 %927
      %929 = vadd.xlane.f32.xlu0 %v914
      %v930 = vpop.xlane.xlu0 %929
      %931 = vadd.xlane.f32.xlu0 %v916
      %v932 = vpop.xlane.xlu0 %931
      %933 = vadd.xlane.f32.xlu0 %v918
      %v934 = vpop.xlane.xlu0 %933
      %935 = vadd.xlane.f32.xlu0 %v920
      %v936 = vpop.xlane.xlu0 %935
      %937 = vadd.xlane.f32.xlu0 %v922
      %v938 = vpop.xlane.xlu0 %937
      %v939 = vrcp.pop %v924
      %v940 = vrcp.pop %v926
      %v941 = vrcp.pop %v928
      %v942 = vrcp.pop %v930
      %v943 = vrcp.pop %v932
      %v944 = vrcp.pop %v934
      %v945 = vrcp.pop %v936
      %v946 = vrcp.pop %v938
      %v947 = vmul.f32 %v908, %v939
      %v948 = vmul.f32 %v910, %v940
      %v949 = vmul.f32 %v912, %v941
      %v950 = vmul.f32 %v914, %v942
      %v951 = vmul.f32 %v916, %v943
      %v952 = vmul.f32 %v918, %v944
      %v953 = vmul.f32 %v920, %v945
      %v954 = vmul.f32 %v922, %v946
      %955 = vst [vmem:[%s327] sm:$0xff] %v947
      %956 = vst [vmem:[%s327 + $0x8] sm:$0xff] %v948
      %957 = vst [vmem:[%s327 + $0x10] sm:$0xff] %v949
      %958 = vst [vmem:[%s327 + $0x18] sm:$0xff] %v950
      %959 = vst [vmem:[%s327 + $0x20] sm:$0xff] %v951
      %960 = vst [vmem:[%s327 + $0x28] sm:$0xff] %v952
      %961 = vst [vmem:[%s327 + $0x30] sm:$0xff] %v953
      %962 = vst [vmem:[%s327 + $0x38] sm:$0xff] %v954
      %963 = vrot.lane.b32.xlu0 %v702, 112
      %v964 = vpop.permute.xlu0 %963
      %965 = vrot.lane.b32.xlu0 %v705, 112
      %v966 = vpop.permute.xlu0 %965
      %967 = vrot.lane.b32.xlu0 %v708, 112
      %v968 = vpop.permute.xlu0 %967
      %969 = vrot.lane.b32.xlu0 %v711, 112
      %v970 = vpop.permute.xlu0 %969
      %971 = vrot.lane.b32.xlu0 %v714, 112
      %v972 = vpop.permute.xlu0 %971
      %973 = vrot.lane.b32.xlu0 %v717, 112
      %v974 = vpop.permute.xlu0 %973
      %975 = vrot.lane.b32.xlu0 %v720, 112
      %v976 = vpop.permute.xlu0 %975
      %977 = vrot.lane.b32.xlu0 %v723, 112
      %v978 = vpop.permute.xlu0 %977
      %979 = vrot.lane.b32.xlu0 %v751, 112
      %v980 = vpop.permute.xlu0 %979
      %981 = vrot.lane.b32.xlu0 %v754, 112
      %v982 = vpop.permute.xlu0 %981
      %983 = vrot.lane.b32.xlu0 %v757, 112
      %v984 = vpop.permute.xlu0 %983
      %985 = vrot.lane.b32.xlu0 %v760, 112
      %v986 = vpop.permute.xlu0 %985
      %987 = vrot.lane.b32.xlu0 %v763, 112
      %v988 = vpop.permute.xlu0 %987
      %989 = vrot.lane.b32.xlu0 %v766, 112
      %v990 = vpop.permute.xlu0 %989
      %991 = vrot.lane.b32.xlu0 %v769, 112
      %v992 = vpop.permute.xlu0 %991
      %993 = vrot.lane.b32.xlu0 %v772, 112
      %v994 = vpop.permute.xlu0 %993
      %995 = vrot.lane.b32.xlu0 0.0, 112
      %v996 = vpop.permute.xlu0 %995
      %v997 = vsel %vm774, %v964, 0
      %v999 = vsel %vm774, %v966, 0
      %v1001 = vsel %vm774, %v968, 0
      %v1003 = vsel %vm774, %v970, 0
      %v1005 = vsel %vm774, %v972, 0
      %v1007 = vsel %vm774, %v974, 0
      %v1009 = vsel %vm774, %v976, 0
      %v1011 = vsel %vm774, %v978, 0
      %v1013 = vsel %vm774, %v980, 0
      %v1015 = vsel %vm774, %v982, 0
      %v1017 = vsel %vm774, %v984, 0
      %v1019 = vsel %vm774, %v986, 0
      %v1021 = vsel %vm774, %v988, 0
      %v1023 = vsel %vm774, %v990, 0
      %v1025 = vsel %vm774, %v992, 0
      %v1027 = vsel %vm774, %v994, 0
      %v1029 = vsel %vm774, %v996, 0
      %1031 = vmatpush.xpose.msra.mxu0 %v1029
      %1032 = vmatpush.xpose.msra.mxu0 %v1029
      %1033 = vmatpush.xpose.msra.mxu0 %v1029
      %1034 = vmatpush.xpose.msra.mxu0 %v1029
      %1035 = vmatpush.xpose.msra.mxu0 %v1029
      %1036 = vmatpush.xpose.msra.mxu0 %v1029
      %1037 = vmatpush.xpose.msra.mxu0 %v1029
      %1038 = vmatpush.xpose.msra.mxu0 %v1029
      %1039 = vmatpush.xpose.msra.mxu0 %v1027
      %1040 = vmatpush.xpose.msra.mxu0 %v1025
      %1041 = vmatpush.xpose.msra.mxu0 %v1023
      %1042 = vmatpush.xpose.msra.mxu0 %v1021
      %1043 = vmatpush.xpose.msra.mxu0 %v1019
      %1044 = vmatpush.xpose.msra.mxu0 %v1017
      %1045 = vmatpush.xpose.msra.mxu0 %v1015
      %1046 = vmatpush.xpose.msra.mxu0 %v1013
      %1047 = vmatmul.f32.gmra.mxu0 %v997
      %v1048 = vpop.f32.mrf.mxu0
      %v1049 = vadd.f32 0.0, %v1048
      %1050 = vmatmul.f32.gmra.mxu0 %v999
      %v1051 = vpop.f32.mrf.mxu0
      %v1052 = vadd.f32 0.0, %v1051
      %1053 = vmatmul.f32.gmra.mxu0 %v1001
      %v1054 = vpop.f32.mrf.mxu0
      %v1055 = vadd.f32 0.0, %v1054
      %1056 = vmatmul.f32.gmra.mxu0 %v1003
      %v1057 = vpop.f32.mrf.mxu0
      %v1058 = vadd.f32 0.0, %v1057
      %1059 = vmatmul.f32.gmra.mxu0 %v1005
      %v1060 = vpop.f32.mrf.mxu0
      %v1061 = vadd.f32 0.0, %v1060
      %1062 = vmatmul.f32.gmra.mxu0 %v1007
      %v1063 = vpop.f32.mrf.mxu0
      %v1064 = vadd.f32 0.0, %v1063
      %1065 = vmatmul.f32.gmra.mxu0 %v1009
      %v1066 = vpop.f32.mrf.mxu0
      %v1067 = vadd.f32 0.0, %v1066
      %1068 = vmatmul.f32.gmra.mxu0 %v1011
      %v1069 = vpop.f32.mrf.mxu0
      %v1070 = vadd.f32 0.0, %v1069
      %1071 = vdwg.mxu0
      %v1072 = vmul.f32 %v1049, 0.25
      %v1073 = vmul.f32 %v1052, 0.25
      %v1074 = vmul.f32 %v1055, 0.25
      %v1075 = vmul.f32 %v1058, 0.25
      %v1076 = vmul.f32 %v1061, 0.25
      %v1077 = vmul.f32 %v1064, 0.25
      %v1078 = vmul.f32 %v1067, 0.25
      %v1079 = vmul.f32 %v1070, 0.25
      %v1080 = vsel %vm643, %v1072, -1e+30
      %v1081 = vsel %vm644, %v1073, -1e+30
      %v1082 = vsel %vm645, %v1074, -1e+30
      %v1083 = vsel %vm646, %v1075, -1e+30
      %v1084 = vsel %vm647, %v1076, -1e+30
      %v1085 = vsel %vm648, %v1077, -1e+30
      %v1086 = vsel %vm649, %v1078, -1e+30
      %v1087 = vsel %vm650, %v1079, -1e+30
      %1088 = vmax.xlane.f32.xlu0 %v1080
      %v1089 = vpop.xlane.xlu0 %1088
      %1090 = vmax.xlane.f32.xlu0 %v1081
      %v1091 = vpop.xlane.xlu0 %1090
      %1092 = vmax.xlane.f32.xlu0 %v1082
      %v1093 = vpop.xlane.xlu0 %1092
      %1094 = vmax.xlane.f32.xlu0 %v1083
      %v1095 = vpop.xlane.xlu0 %1094
      %1096 = vmax.xlane.f32.xlu0 %v1084
      %v1097 = vpop.xlane.xlu0 %1096
      %1098 = vmax.xlane.f32.xlu0 %v1085
      %v1099 = vpop.xlane.xlu0 %1098
      %1100 = vmax.xlane.f32.xlu0 %v1086
      %v1101 = vpop.xlane.xlu0 %1100
      %1102 = vmax.xlane.f32.xlu0 %v1087
      %v1103 = vpop.xlane.xlu0 %1102
      %v1104 = vsub.f32 %v1080, %v1089
      %v1105 = vsub.f32 %v1081, %v1091
      %v1106 = vsub.f32 %v1082, %v1093
      %v1107 = vsub.f32 %v1083, %v1095
      %v1108 = vsub.f32 %v1084, %v1097
      %v1109 = vsub.f32 %v1085, %v1099
      %v1110 = vsub.f32 %v1086, %v1101
      %v1111 = vsub.f32 %v1087, %v1103
      %v1112 = vmul.f32 %v1104, 1.442695
      %v1113 = vpow.pop %v1112
      %v1114 = vmul.f32 %v1105, 1.442695
      %v1115 = vpow.pop %v1114
      %v1116 = vmul.f32 %v1106, 1.442695
      %v1117 = vpow.pop %v1116
      %v1118 = vmul.f32 %v1107, 1.442695
      %v1119 = vpow.pop %v1118
      %v1120 = vmul.f32 %v1108, 1.442695
      %v1121 = vpow.pop %v1120
      %v1122 = vmul.f32 %v1109, 1.442695
      %v1123 = vpow.pop %v1122
      %v1124 = vmul.f32 %v1110, 1.442695
      %v1125 = vpow.pop %v1124
      %v1126 = vmul.f32 %v1111, 1.442695
      %v1127 = vpow.pop %v1126
      %1128 = vadd.xlane.f32.xlu0 %v1113
      %v1129 = vpop.xlane.xlu0 %1128
      %1130 = vadd.xlane.f32.xlu0 %v1115
      %v1131 = vpop.xlane.xlu0 %1130
      %1132 = vadd.xlane.f32.xlu0 %v1117
      %v1133 = vpop.xlane.xlu0 %1132
      %1134 = vadd.xlane.f32.xlu0 %v1119
      %v1135 = vpop.xlane.xlu0 %1134
      %1136 = vadd.xlane.f32.xlu0 %v1121
      %v1137 = vpop.xlane.xlu0 %1136
      %1138 = vadd.xlane.f32.xlu0 %v1123
      %v1139 = vpop.xlane.xlu0 %1138
      %1140 = vadd.xlane.f32.xlu0 %v1125
      %v1141 = vpop.xlane.xlu0 %1140
      %1142 = vadd.xlane.f32.xlu0 %v1127
      %v1143 = vpop.xlane.xlu0 %1142
      %v1144 = vrcp.pop %v1129
      %v1145 = vrcp.pop %v1131
      %v1146 = vrcp.pop %v1133
      %v1147 = vrcp.pop %v1135
      %v1148 = vrcp.pop %v1137
      %v1149 = vrcp.pop %v1139
      %v1150 = vrcp.pop %v1141
      %v1151 = vrcp.pop %v1143
      %v1152 = vmul.f32 %v1113, %v1144
      %v1153 = vmul.f32 %v1115, %v1145
      %v1154 = vmul.f32 %v1117, %v1146
      %v1155 = vmul.f32 %v1119, %v1147
      %v1156 = vmul.f32 %v1121, %v1148
      %v1157 = vmul.f32 %v1123, %v1149
      %v1158 = vmul.f32 %v1125, %v1150
      %v1159 = vmul.f32 %v1127, %v1151
      %s1160 = scalar_lea.vmem %s327, 64
      %1161 = vst [vmem:[%s1160] sm:$0xff] %v1152
      %1162 = vst [vmem:[%s1160 + $0x8] sm:$0xff] %v1153
      %1163 = vst [vmem:[%s1160 + $0x10] sm:$0xff] %v1154
      %1164 = vst [vmem:[%s1160 + $0x18] sm:$0xff] %v1155
      %1165 = vst [vmem:[%s1160 + $0x20] sm:$0xff] %v1156
      %1166 = vst [vmem:[%s1160 + $0x28] sm:$0xff] %v1157
      %1167 = vst [vmem:[%s1160 + $0x30] sm:$0xff] %v1158
      %1168 = vst [vmem:[%s1160 + $0x38] sm:$0xff] %v1159
      %p1169 = scmp.lt.s32.totalorder %s27, 2
      %s1170 = scalar_select %p1169, %s27, 2
      %s1171 = smul.addr %s1170, 16
      %s1172 = smul.addr %s1171, 8
      %s1173 = scalar_lea.vmem %s8, %s1172
      // Predicated region
      $region49: #{transmamba_forward.1} parent=47 // pred_check
        %p1174 = pneg %p207
      $region50: #{transmamba_forward.1} parent=47 // pred_check_branch
        %1176 = sbr.rel (%p1174) target = $region52
      $region51: #{transmamba_forward.1} parent=47 // pred_region
        _
      $region52: #{transmamba_forward.1} parent=47 // pred_fallthru
        _
    $region48: #{transmamba_forward.1} parent=5 // pred_fallthru
      _
    %p1177 = scmp.le.s32.totalorder 2, %s22
    // Predicated region
    $region53: #{transmamba_forward.1} parent=5 // pred_check
      %p1178 = pneg %p1177
    $region54: #{transmamba_forward.1} parent=5 // pred_check_branch
      %1180 = sbr.rel (%p1178) target = $region56
    $region55: #{transmamba_forward.1} parent=5 // pred_region
      %s1181 = ssub.s32 %s22, 2
      // Predicated region
      $region57: #{transmamba_forward.1} parent=55 // pred_check
        %p1182 = pneg %p213
      $region58: #{transmamba_forward.1} parent=55 // pred_check_branch
        %1184 = sbr.rel (%p1182) target = $region60
      $region59: #{transmamba_forward.1} parent=55 // pred_region
        %p1185 = scmp.lt.s32.totalorder %s28, 2
        %s1186 = scalar_select %p1185, %s28, 2
        %s1187 = smul.addr %s1186, 16
        %s1188 = smul.addr %s1187, 8
        %s1189 = scalar_lea.vmem %s8, %s1188
      $region60: #{transmamba_forward.1} parent=55 // pred_fallthru
        _
    $region56: #{transmamba_forward.1} parent=5 // pred_fallthru
      _
  $region6: #{transmamba_forward.1} parent=0 // loop_footer
    %s26 = sadd.s32 1, %s22
  $region7: #{transmamba_forward.1} parent=0 // loop_footer_branch
    %21 = sbr.rel target = $region3
  $region8: #{transmamba_forward.1} parent=0 // loop_exit
    _

</llo_original>
